<compile_context>
chip_gen: v6e
topology: v6e:2x2x1
jax: 0.10.0
libtpu: 0.0.40
codegen_flags: <defaults>
</compile_context>

<pallas_src>
import jax
import jax.numpy as jnp
from jax.experimental import pallas as pl
from jax.experimental.pallas import tpu as pltpu

IN_FEATURES = 784
H1, H2 = 512, 256
OUT_FEATURES = 10
OUT_PAD = 128           # lane-dense internal logits width (only 10 cols stored)
NEG_BIAS = -1e30        # bias for padded logit columns (kills them in max/LSE)


def _round_up(n, m):
    return ((n + m - 1) // m) * m


def _choose_tile(B, tb):
    """Batch-tile size: MXU/vreg friendly, bounded by `tb`, and (when the batch
    is large enough) leaving >=2 grid steps so v7x's dual TCs both get work."""
    B_aligned = _round_up(max(B, 1), 128)          # >=128 rows: full bf16 packing
    if B_aligned <= 256:
        return B_aligned                           # tiny batch: single step
    half = _round_up(-(-B_aligned // 2), 256)      # ceil(B/2) rounded to 256
    return max(256, min(tb, half))


def prepare_params(w1, b1, w2, b2, w3, b3):
    """One-time conversion (call at model load, NOT per forward):
    bf16 weights for the MXU, f32 biases for the VPU, last layer padded to a
    lane-dense 128 columns with NEG_BIAS on the padded columns."""
    w1b = jnp.asarray(w1, jnp.bfloat16)
    w2b = jnp.asarray(w2, jnp.bfloat16)
    w3b = jnp.pad(jnp.asarray(w3, jnp.bfloat16),
                  ((0, 0), (0, OUT_PAD - OUT_FEATURES)))
    b1f = jnp.asarray(b1, jnp.float32).reshape(1, H1)
    b2f = jnp.asarray(b2, jnp.float32).reshape(1, H2)
    b3f = jnp.pad(jnp.asarray(b3, jnp.float32).reshape(1, OUT_FEATURES),
                  ((0, 0), (0, OUT_PAD - OUT_FEATURES)),
                  constant_values=NEG_BIAS)
    return (w1b, b1f, w2b, b2f, w3b, b3f)


def mlp_kernel(x_ref, w1_ref, b1_ref, w2_ref, b2_ref, w3_ref, b3_ref, o_ref):
    # x_ref: (TB, 784) f32 tile. Cast to bf16 in-kernel (VPU is idle here), so
    # the wrapper never materializes a bf16 copy of x in HBM.
    x = x_ref[...].astype(jnp.bfloat16)
    h1 = jnp.dot(x, w1_ref[...], preferred_element_type=jnp.float32)        # (TB, 512)
    h1 = jnp.maximum(h1 + b1_ref[...], 0.0)                                  # ReLU, f32
    h2 = jnp.dot(h1.astype(jnp.bfloat16), w2_ref[...],
                 preferred_element_type=jnp.float32)                         # (TB, 256)
    h2 = jnp.maximum(h2 + b2_ref[...], 0.0)                                  # ReLU, f32
    logits = jnp.dot(h2.astype(jnp.bfloat16), w3_ref[...],
                     preferred_element_type=jnp.float32) + b3_ref[...]       # (TB, 128)
    # Numerically stable log-softmax in f32; padded columns carry -1e30 so
    # they affect neither the max nor the sum (their exp is exactly 0).
    m = jnp.max(logits, axis=-1, keepdims=True)
    shifted = logits - m
    lse = jnp.log(jnp.sum(jnp.exp(shifted), axis=-1, keepdims=True))
    # Store only the 10 real classes (masked vst; store slot is far from
    # saturated), so no 128-wide f32 padding is written back to HBM.
    o_ref[...] = (shifted - lse)[:, :OUT_FEATURES].astype(o_ref.dtype)


def mlp_forward(x, params, *, tb=512):
    """x: (B, 1, 28, 28) float32 NCHW. params: output of prepare_params().
    Returns (B, 10) float32 log-probabilities."""
    w1b, b1f, w2b, b2f, w3b, b3f = params
    B = x.shape[0]
    x2d = x.reshape(B, -1).astype(jnp.float32)       # nn.Flatten; stays f32 in HBM
    K = x2d.shape[1]

    TB = _choose_tile(B, tb)
    B_pad = _round_up(B, TB)
    if B_pad != B:
        x2d = jnp.pad(x2d, ((0, B_pad - B), (0, 0)))

    grid = (B_pad // TB,)
    resident = lambda shape: pl.BlockSpec(shape, lambda i: (0, 0))  # stays in VMEM

    flops = 2 * B_pad * (K * H1 + H1 * H2 + H2 * OUT_PAD)
    bytes_accessed = (
        (K * H1 + H1 * H2 + H2 * OUT_PAD) * 2        # bf16 weights
        + (H1 + H2 + OUT_PAD) * 4                    # f32 biases
        + B_pad * K * 4                              # f32 input
        + B_pad * OUT_FEATURES * 4                   # f32 output (10 cols only)
    )
    cost = pl.CostEstimate(flops=flops,
                           transcendentals=B_pad * (OUT_PAD + 1),
                           bytes_accessed=bytes_accessed)

    out = pl.pallas_call(
        mlp_kernel,
        out_shape=jax.ShapeDtypeStruct((B_pad, OUT_FEATURES), jnp.float32),
        grid=grid,
        in_specs=[
            pl.BlockSpec((TB, K), lambda i: (i, 0)),   # x tile (double-buffered)
            resident(w1b.shape), resident(b1f.shape),
            resident(w2b.shape), resident(b2f.shape),
            resident(w3b.shape), resident(b3f.shape),
        ],
        # Last dim (10) equals the full array dim, so the (8,128) rule is satisfied.
        out_specs=pl.BlockSpec((TB, OUT_FEATURES), lambda i: (i, 0)),
        compiler_params=pltpu.CompilerParams(
            dimension_semantics=("parallel",),
            vmem_limit_bytes=32 << 20,
        ),
        cost_estimate=cost,
    )(x2d, w1b, b1f, w2b, b2f, w3b, b3f)

    return out[:B]


def init_params(key):
    """Deterministic init mimicking nn.Linear default (uniform +/- 1/sqrt(fan_in)).
    Weights are stored transposed relative to PyTorch: (in, out)."""
    dims = [(IN_FEATURES, H1), (H1, H2), (H2, OUT_FEATURES)]
    params = []
    for i, (fan_in, fan_out) in enumerate(dims):
        kw, kb = jax.random.split(jax.random.fold_in(key, i))
        bound = 1.0 / (fan_in ** 0.5)
        w = jax.random.uniform(kw, (fan_in, fan_out), jnp.float32, -bound, bound)
        b = jax.random.uniform(kb, (1, fan_out), jnp.float32, -bound, bound)
        params += [w, b]
    return params


if __name__ == "__main__":
    key = jax.random.PRNGKey(0)
    kx, kp = jax.random.split(key)

    B = 8
    x = jax.random.normal(kx, (B, 1, 28, 28), dtype=jnp.float32)
    w1, b1, w2, b2, w3, b3 = init_params(kp)

    prepared = prepare_params(w1, b1, w2, b2, w3, b3)   # one-time weight prep
    out = mlp_forward(x, prepared)
    out = jax.block_until_ready(out)

    # Reference mirroring the kernel's math (bf16 MXU operands, f32 accumulate).
    def ref_bf16(xin):
        h = xin.reshape(B, -1).astype(jnp.bfloat16)
        h = jnp.maximum(
            jnp.dot(h, w1.astype(jnp.bfloat16),
                    preferred_element_type=jnp.float32) + b1, 0.0)
        h = jnp.maximum(
            jnp.dot(h.astype(jnp.bfloat16), w2.astype(jnp.bfloat16),
                    preferred_element_type=jnp.float32) + b2, 0.0)
        logits = jnp.dot(h.astype(jnp.bfloat16), w3.astype(jnp.bfloat16),
                         preferred_element_type=jnp.float32) + b3
        return jax.nn.log_softmax(logits, axis=1)

    # Pure f32 reference of the original PyTorch module (loose tolerance: the
    # kernel quantizes matmul operands to bf16).
    def ref_f32(xin):
        h = xin.reshape(B, -1)
        h = jnp.maximum(h @ w1 + b1, 0.0)
        h = jnp.maximum(h @ w2 + b2, 0.0)
        return jax.nn.log_softmax(h @ w3 + b3, axis=1)

    assert out.shape == (B, OUT_FEATURES)
    assert jnp.allclose(out, ref_bf16(x), atol=2e-3, rtol=2e-3)
    assert jnp.allclose(out, ref_f32(x), atol=5e-2, rtol=5e-2)
    # log-softmax rows should exponentiate-sum to 1
    assert jnp.allclose(jnp.sum(jnp.exp(out), axis=1), 1.0, atol=1e-3)

    print("KERNEL_OK")
</pallas_src>

<mosaic_0001>
module attributes {stable_mosaic.version = 11 : i64} {
  func.func @mlp_kernel(%arg0: i32, %arg1: memref<128x784xf32, #tpu.memory_space<vmem>>, %arg2: memref<784x512xbf16, #tpu.memory_space<vmem>>, %arg3: memref<1x512xf32, #tpu.memory_space<vmem>>, %arg4: memref<512x256xbf16, #tpu.memory_space<vmem>>, %arg5: memref<1x256xf32, #tpu.memory_space<vmem>>, %arg6: memref<256x128xbf16, #tpu.memory_space<vmem>>, %arg7: memref<1x128xf32, #tpu.memory_space<vmem>>, %arg8: memref<128x10xf32, #tpu.memory_space<vmem>>) attributes {dimension_semantics = [#tpu.dimension_semantics<parallel>], iteration_bounds = array<i64: 1>, scalar_prefetch = 0 : i64, scratch_operands = 0 : i64, tpu.core_type = #tpu.core_type<tc>, window_params = [{transform_indices = @transform_0, window_bounds = array<i64: 128, 784>}, {pipeline_mode = #tpu.pipeline_mode<synchronous>, transform_indices = @transform_1, window_bounds = array<i64: 784, 512>}, {pipeline_mode = #tpu.pipeline_mode<synchronous>, transform_indices = @transform_2, window_bounds = array<i64: 1, 512>}, {pipeline_mode = #tpu.pipeline_mode<synchronous>, transform_indices = @transform_3, window_bounds = array<i64: 512, 256>}, {pipeline_mode = #tpu.pipeline_mode<synchronous>, transform_indices = @transform_4, window_bounds = array<i64: 1, 256>}, {pipeline_mode = #tpu.pipeline_mode<synchronous>, transform_indices = @transform_5, window_bounds = array<i64: 256, 128>}, {pipeline_mode = #tpu.pipeline_mode<synchronous>, transform_indices = @transform_6, window_bounds = array<i64: 1, 128>}, {transform_indices = @transform_7, window_bounds = array<i64: 128, 10>}]} {
    %c0 = arith.constant 0 : index
    %c0_0 = arith.constant 0 : index
    %0 = vector.load %arg1[%c0, %c0_0] : memref<128x784xf32, #tpu.memory_space<vmem>>, vector<128x784xf32>
    %1 = arith.truncf %0 : vector<128x784xf32> to vector<128x784xbf16>
    %c0_1 = arith.constant 0 : index
    %c0_2 = arith.constant 0 : index
    %2 = vector.load %arg2[%c0_1, %c0_2] : memref<784x512xbf16, #tpu.memory_space<vmem>>, vector<784x512xbf16>
    %cst = arith.constant dense<0.000000e+00> : vector<128x512xf32>
    %3 = tpu.matmul %1, %2, %cst {dimension_numbers = #tpu.dot_dimension_numbers<[1], [0], [0], [1], [0, 0, 1, 1], [], []>} : vector<128x784xbf16>, vector<784x512xbf16>, vector<128x512xf32> -> vector<128x512xf32>
    %c0_3 = arith.constant 0 : index
    %c0_4 = arith.constant 0 : index
    %4 = vector.load %arg3[%c0_3, %c0_4] : memref<1x512xf32, #tpu.memory_space<vmem>>, vector<1x512xf32>
    %5 = vector.broadcast %4 : vector<1x512xf32> to vector<128x512xf32>
    %6 = arith.addf %3, %5 : vector<128x512xf32>
    %cst_5 = arith.constant 0.000000e+00 : f32
    %7 = vector.broadcast %cst_5 : f32 to vector<128x512xf32>
    %8 = arith.maximumf %6, %7 : vector<128x512xf32>
    %9 = arith.truncf %8 : vector<128x512xf32> to vector<128x512xbf16>
    %c0_6 = arith.constant 0 : index
    %c0_7 = arith.constant 0 : index
    %10 = vector.load %arg4[%c0_6, %c0_7] : memref<512x256xbf16, #tpu.memory_space<vmem>>, vector<512x256xbf16>
    %cst_8 = arith.constant dense<0.000000e+00> : vector<128x256xf32>
    %11 = tpu.matmul %9, %10, %cst_8 {dimension_numbers = #tpu.dot_dimension_numbers<[1], [0], [0], [1], [0, 0, 1, 1], [], []>} : vector<128x512xbf16>, vector<512x256xbf16>, vector<128x256xf32> -> vector<128x256xf32>
    %c0_9 = arith.constant 0 : index
    %c0_10 = arith.constant 0 : index
    %12 = vector.load %arg5[%c0_9, %c0_10] : memref<1x256xf32, #tpu.memory_space<vmem>>, vector<1x256xf32>
    %13 = vector.broadcast %12 : vector<1x256xf32> to vector<128x256xf32>
    %14 = arith.addf %11, %13 : vector<128x256xf32>
    %cst_11 = arith.constant 0.000000e+00 : f32
    %15 = vector.broadcast %cst_11 : f32 to vector<128x256xf32>
    %16 = arith.maximumf %14, %15 : vector<128x256xf32>
    %17 = arith.truncf %16 : vector<128x256xf32> to vector<128x256xbf16>
    %c0_12 = arith.constant 0 : index
    %c0_13 = arith.constant 0 : index
    %18 = vector.load %arg6[%c0_12, %c0_13] : memref<256x128xbf16, #tpu.memory_space<vmem>>, vector<256x128xbf16>
    %cst_14 = arith.constant dense<0.000000e+00> : vector<128x128xf32>
    %19 = tpu.matmul %17, %18, %cst_14 {dimension_numbers = #tpu.dot_dimension_numbers<[1], [0], [0], [1], [0, 0, 1, 1], [], []>} : vector<128x256xbf16>, vector<256x128xbf16>, vector<128x128xf32> -> vector<128x128xf32>
    %c0_15 = arith.constant 0 : index
    %c0_16 = arith.constant 0 : index
    %20 = vector.load %arg7[%c0_15, %c0_16] : memref<1x128xf32, #tpu.memory_space<vmem>>, vector<1x128xf32>
    %21 = vector.broadcast %20 : vector<1x128xf32> to vector<128x128xf32>
    %22 = arith.addf %19, %21 : vector<128x128xf32>
    %cst_17 = arith.constant dense<0xFF800000> : vector<128xf32>
    %23 = vector.multi_reduction <maximumf>, %22, %cst_17 [1] : vector<128x128xf32> to vector<128xf32>
    %24 = vector.shape_cast %23 : vector<128xf32> to vector<128x1xf32>
    %25 = vector.broadcast %24 : vector<128x1xf32> to vector<128x128xf32>
    %26 = arith.subf %22, %25 : vector<128x128xf32>
    %27 = math.exp %26 : vector<128x128xf32>
    %cst_18 = arith.constant dense<0.000000e+00> : vector<128xf32>
    %28 = vector.multi_reduction <add>, %27, %cst_18 [1] : vector<128x128xf32> to vector<128xf32>
    %29 = vector.shape_cast %28 : vector<128xf32> to vector<128x1xf32>
    %30 = math.log %29 : vector<128x1xf32>
    %31 = vector.broadcast %30 : vector<128x1xf32> to vector<128x128xf32>
    %32 = arith.subf %26, %31 : vector<128x128xf32>
    %33 = vector.extract_strided_slice %32 {offsets = [0, 0], sizes = [128, 10], strides = [1, 1]} : vector<128x128xf32> to vector<128x10xf32>
    %c0_19 = arith.constant 0 : index
    %c0_20 = arith.constant 0 : index
    %34 = vector.load %arg8[%c0_19, %c0_20] : memref<128x10xf32, #tpu.memory_space<vmem>>, vector<128x10xf32>
    tpu.vector_store %arg8[%c0_19, %c0_20], %33 {strides = array<i32>} : memref<128x10xf32, #tpu.memory_space<vmem>>, vector<128x10xf32>,
    return
  }
  func.func @transform_0(%arg0: i32) -> (i32, i32) {
    %c0_i32 = arith.constant 0 : i32
    %c0_i32_0 = arith.constant 0 : i32
    return %arg0, %c0_i32 : i32, i32
  }
  func.func @transform_1(%arg0: i32) -> (i32, i32) {
    %c0_i32 = arith.constant 0 : i32
    %c0_i32_0 = arith.constant 0 : i32
    %c0_i32_1 = arith.constant 0 : i32
    return %c0_i32, %c0_i32_0 : i32, i32
  }
  func.func @transform_2(%arg0: i32) -> (i32, i32) {
    %c0_i32 = arith.constant 0 : i32
    %c0_i32_0 = arith.constant 0 : i32
    %c0_i32_1 = arith.constant 0 : i32
    return %c0_i32, %c0_i32_0 : i32, i32
  }
  func.func @transform_3(%arg0: i32) -> (i32, i32) {
    %c0_i32 = arith.constant 0 : i32
    %c0_i32_0 = arith.constant 0 : i32
    %c0_i32_1 = arith.constant 0 : i32
    return %c0_i32, %c0_i32_0 : i32, i32
  }
  func.func @transform_4(%arg0: i32) -> (i32, i32) {
    %c0_i32 = arith.constant 0 : i32
    %c0_i32_0 = arith.constant 0 : i32
    %c0_i32_1 = arith.constant 0 : i32
    return %c0_i32, %c0_i32_0 : i32, i32
  }
  func.func @transform_5(%arg0: i32) -> (i32, i32) {
    %c0_i32 = arith.constant 0 : i32
    %c0_i32_0 = arith.constant 0 : i32
    %c0_i32_1 = arith.constant 0 : i32
    return %c0_i32, %c0_i32_0 : i32, i32
  }
  func.func @transform_6(%arg0: i32) -> (i32, i32) {
    %c0_i32 = arith.constant 0 : i32
    %c0_i32_0 = arith.constant 0 : i32
    %c0_i32_1 = arith.constant 0 : i32
    return %c0_i32, %c0_i32_0 : i32, i32
  }
  func.func @transform_7(%arg0: i32) -> (i32, i32) {
    %c0_i32 = arith.constant 0 : i32
    %c0_i32_0 = arith.constant 0 : i32
    return %arg0, %c0_i32 : i32, i32
  }
}

</mosaic_0001>

<llo_original>
// kernel: tpu_custom_call.1
$region0: #{tpu_custom_call.1}
  #allocation0 [shape = 'u32[]', space=smem, size = 0x4, offset = 0x4, fixed_abs, tag = 'smem constant byte address 0x4 - core index']
  #allocation1 [shape = 'u32[144,128]{1,0:T(1,128)}', space=vmem, size = 0x12000, scoped, tag = 'internal scratch']
  %s0 = inlined_call_operand.vmem [shape: f32[128,784], index: 0, kind: input, shape index: {}]
  %s1 = inlined_call_operand.vmem [shape: bf16[784,512], index: 1, kind: input, shape index: {}]
  %s2 = inlined_call_operand.vmem [shape: f32[1,512], index: 2, kind: input, shape index: {}]
  %s3 = inlined_call_operand.hbm [shape: bf16[512,256], index: 3, kind: input, shape index: {}]
  %s4 = inlined_call_operand.vmem [shape: f32[1,256], index: 4, kind: input, shape index: {}]
  %s5 = inlined_call_operand.hbm [shape: bf16[256,128], index: 5, kind: input, shape index: {}]
  %s6 = inlined_call_operand.vmem [shape: f32[1,128], index: 6, kind: input, shape index: {}]
  %s7 = inlined_call_operand.vmem [shape: f32[128,10], index: 7, kind: output, shape index: {}]
  %s8 = sld [smem:[#allocation0]]
  $region46: #{tpu_custom_call.1} parent=0
    _
  %s10 = ssub.s32 1, %s8
  %s11 = scalar_select 0, %s10, %s8
  $region1: #{tpu_custom_call.1} parent=0
    #allocation2 [shape = 'u8[262144]{0}', space=vmem, size = 0x40000, scoped, tag = 'input window, operand 3, single buffered']
    #allocation3 [shape = 's32[1]{0}', space=sflag, size = 0x4, scoped, tag = 'scoped memory for tpu_custom_call.1']
    #allocation4 [shape = 'u8[65536]{0}', space=vmem, size = 0x10000, scoped, tag = 'input window, operand 5, single buffered']
    #allocation5 [shape = 's32[1]{0}', space=sflag, size = 0x4, scoped, tag = 'scoped memory for tpu_custom_call.1']
    %12 = vsyncpa [#allocation3], 0
    %13 = vsyncpa [#allocation5], 0
    // Predicated region
    $region2: #{tpu_custom_call.1} parent=1 // pred_check
      _
    $region3: #{tpu_custom_call.1} parent=1 // pred_check_branch
      %15 = sbr.rel (0) target = $region5
    $region4: #{tpu_custom_call.1} parent=1 // pred_region
      _
    $region5: #{tpu_custom_call.1} parent=1 // pred_fallthru
      _
    // Predicated region
    $region6: #{tpu_custom_call.1} parent=1 // pred_check
      _
    $region7: #{tpu_custom_call.1} parent=1 // pred_check_branch
      %17 = sbr.rel (0) target = $region9
    $region8: #{tpu_custom_call.1} parent=1 // pred_region
      _
    $region9: #{tpu_custom_call.1} parent=1 // pred_fallthru
      _
    // Predicated region
    $region10: #{tpu_custom_call.1} parent=1 // pred_check
      _
    $region11: #{tpu_custom_call.1} parent=1 // pred_check_branch
      %19 = sbr.rel (0) target = $region13
    $region12: #{tpu_custom_call.1} parent=1 // pred_region
      _
    $region13: #{tpu_custom_call.1} parent=1 // pred_fallthru
      _
    // Predicated region
    $region14: #{tpu_custom_call.1} parent=1 // pred_check
      _
    $region15: #{tpu_custom_call.1} parent=1 // pred_check_branch
      %21 = sbr.rel (0) target = $region17
    $region16: #{tpu_custom_call.1} parent=1 // pred_region
      %s23 = ssub.s32 8192, 8192
      %24 = vsyncadd [#allocation3], %s23
      %s25 = sshll.u32 [#allocation2], 4
      %s26 = int_to_ptr.vmem [resolvable:$true] %s25
      %31 = dma.hbm_to_vmem [thread:$0]  %s3, 8192, %s26, [#allocation3], 128, 128, 8
    $region17: #{tpu_custom_call.1} parent=1 // pred_fallthru
      _
    // Predicated region
    $region18: #{tpu_custom_call.1} parent=1 // pred_check
      _
    $region19: #{tpu_custom_call.1} parent=1 // pred_check_branch
      %33 = sbr.rel (0) target = $region21
    $region20: #{tpu_custom_call.1} parent=1 // pred_region
      _
    $region21: #{tpu_custom_call.1} parent=1 // pred_fallthru
      _
    // Predicated region
    $region22: #{tpu_custom_call.1} parent=1 // pred_check
      _
    $region23: #{tpu_custom_call.1} parent=1 // pred_check_branch
      %35 = sbr.rel (0) target = $region25
    $region24: #{tpu_custom_call.1} parent=1 // pred_region
      %s37 = ssub.s32 2048, 2048
      %38 = vsyncadd [#allocation5], %s37
      %s39 = sshll.u32 [#allocation4], 4
      %s40 = int_to_ptr.vmem [resolvable:$true] %s39
      %45 = dma.hbm_to_vmem [thread:$0]  %s5, 2048, %s40, [#allocation5], 64, 64, 4
    $region25: #{tpu_custom_call.1} parent=1 // pred_fallthru
      _
    // Predicated region
    $region26: #{tpu_custom_call.1} parent=1 // pred_check
      _
    $region27: #{tpu_custom_call.1} parent=1 // pred_check_branch
      %47 = sbr.rel (0) target = $region29
    $region28: #{tpu_custom_call.1} parent=1 // pred_region
      _
    $region29: #{tpu_custom_call.1} parent=1 // pred_fallthru
      _
    // Predicated region
    $region30: #{tpu_custom_call.1} parent=1 // pred_check
      _
    $region31: #{tpu_custom_call.1} parent=1 // pred_check_branch
      %49 = sbr.rel (0) target = $region33
    $region32: #{tpu_custom_call.1} parent=1 // pred_region
      %50 = dma.done [#allocation3], 8192
    $region33: #{tpu_custom_call.1} parent=1 // pred_fallthru
      _
    // Predicated region
    $region34: #{tpu_custom_call.1} parent=1 // pred_check
      _
    $region35: #{tpu_custom_call.1} parent=1 // pred_check_branch
      %52 = sbr.rel (0) target = $region37
    $region36: #{tpu_custom_call.1} parent=1 // pred_region
      %53 = dma.done [#allocation5], 2048
    $region37: #{tpu_custom_call.1} parent=1 // pred_fallthru
      _
    %v55 = vld [vmem:[%s0] sm:$0xff]
    %v56 = vld [vmem:[%s0 + $0x8] sm:$0xff]
    %v57 = vld [vmem:[%s0 + $0x10] sm:$0xff]
    %v58 = vld [vmem:[%s0 + $0x18] sm:$0xff]
    %v59 = vld [vmem:[%s0 + $0x20] sm:$0xff]
    %v60 = vld [vmem:[%s0 + $0x28] sm:$0xff]
    %v61 = vld [vmem:[%s0 + $0x30] sm:$0xff]
    %v62 = vld [vmem:[%s0 + $0x38] sm:$0xff]
    %v63 = vld [vmem:[%s0 + $0x40] sm:$0xff]
    %v64 = vld [vmem:[%s0 + $0x48] sm:$0xff]
    %v65 = vld [vmem:[%s0 + $0x50] sm:$0xff]
    %v66 = vld [vmem:[%s0 + $0x58] sm:$0xff]
    %v67 = vld [vmem:[%s0 + $0x60] sm:$0xff]
    %v68 = vld [vmem:[%s0 + $0x68] sm:$0xff]
    %v69 = vld [vmem:[%s0 + $0x70] sm:$0xff]
    %v70 = vld [vmem:[%s0 + $0x78] sm:$0xff]
    %v71 = vld [vmem:[%s0 + $0x80] sm:$0xff]
    %v72 = vld [vmem:[%s0 + $0x88] sm:$0xff]
    %v73 = vld [vmem:[%s0 + $0x90] sm:$0xff]
    %v74 = vld [vmem:[%s0 + $0x98] sm:$0xff]
    %v75 = vld [vmem:[%s0 + $0xa0] sm:$0xff]
    %v76 = vld [vmem:[%s0 + $0xa8] sm:$0xff]
    %v77 = vld [vmem:[%s0 + $0xb0] sm:$0xff]
    %v78 = vld [vmem:[%s0 + $0xb8] sm:$0xff]
    %v79 = vld [vmem:[%s0 + $0xc0] sm:$0xff]
    %v80 = vld [vmem:[%s0 + $0xc8] sm:$0xff]
    %v81 = vld [vmem:[%s0 + $0xd0] sm:$0xff]
    %v82 = vld [vmem:[%s0 + $0xd8] sm:$0xff]
    %v83 = vld [vmem:[%s0 + $0xe0] sm:$0xff]
    %v84 = vld [vmem:[%s0 + $0xe8] sm:$0xff]
    %v85 = vld [vmem:[%s0 + $0xf0] sm:$0xff]
    %v86 = vld [vmem:[%s0 + $0xf8] sm:$0xff]
    %v87 = vld [vmem:[%s0 + $0x100] sm:$0xff]
    %v88 = vld [vmem:[%s0 + $0x108] sm:$0xff]
    %v89 = vld [vmem:[%s0 + $0x110] sm:$0xff]
    %v90 = vld [vmem:[%s0 + $0x118] sm:$0xff]
    %v91 = vld [vmem:[%s0 + $0x120] sm:$0xff]
    %v92 = vld [vmem:[%s0 + $0x128] sm:$0xff]
    %v93 = vld [vmem:[%s0 + $0x130] sm:$0xff]
    %v94 = vld [vmem:[%s0 + $0x138] sm:$0xff]
    %v95 = vld [vmem:[%s0 + $0x140] sm:$0xff]
    %v96 = vld [vmem:[%s0 + $0x148] sm:$0xff]
    %v97 = vld [vmem:[%s0 + $0x150] sm:$0xff]
    %v98 = vld [vmem:[%s0 + $0x158] sm:$0xff]
    %v99 = vld [vmem:[%s0 + $0x160] sm:$0xff]
    %v100 = vld [vmem:[%s0 + $0x168] sm:$0xff]
    %v101 = vld [vmem:[%s0 + $0x170] sm:$0xff]
    %v102 = vld [vmem:[%s0 + $0x178] sm:$0xff]
    %v103 = vld [vmem:[%s0 + $0x180] sm:$0xff]
    %v104 = vld [vmem:[%s0 + $0x188] sm:$0xff]
    %v105 = vld [vmem:[%s0 + $0x190] sm:$0xff]
    %v106 = vld [vmem:[%s0 + $0x198] sm:$0xff]
    %v107 = vld [vmem:[%s0 + $0x1a0] sm:$0xff]
    %v108 = vld [vmem:[%s0 + $0x1a8] sm:$0xff]
    %v109 = vld [vmem:[%s0 + $0x1b0] sm:$0xff]
    %v110 = vld [vmem:[%s0 + $0x1b8] sm:$0xff]
    %v111 = vld [vmem:[%s0 + $0x1c0] sm:$0xff]
    %v112 = vld [vmem:[%s0 + $0x1c8] sm:$0xff]
    %v113 = vld [vmem:[%s0 + $0x1d0] sm:$0xff]
    %v114 = vld [vmem:[%s0 + $0x1d8] sm:$0xff]
    %v115 = vld [vmem:[%s0 + $0x1e0] sm:$0xff]
    %v116 = vld [vmem:[%s0 + $0x1e8] sm:$0xff]
    %v117 = vld [vmem:[%s0 + $0x1f0] sm:$0xff]
    %v118 = vld [vmem:[%s0 + $0x1f8] sm:$0xff]
    %v119 = vld [vmem:[%s0 + $0x200] sm:$0xff]
    %v120 = vld [vmem:[%s0 + $0x208] sm:$0xff]
    %v121 = vld [vmem:[%s0 + $0x210] sm:$0xff]
    %v122 = vld [vmem:[%s0 + $0x218] sm:$0xff]
    %v123 = vld [vmem:[%s0 + $0x220] sm:$0xff]
    %v124 = vld [vmem:[%s0 + $0x228] sm:$0xff]
    %v125 = vld [vmem:[%s0 + $0x230] sm:$0xff]
    %v126 = vld [vmem:[%s0 + $0x238] sm:$0xff]
    %v127 = vld [vmem:[%s0 + $0x240] sm:$0xff]
    %v128 = vld [vmem:[%s0 + $0x248] sm:$0xff]
    %v129 = vld [vmem:[%s0 + $0x250] sm:$0xff]
    %v130 = vld [vmem:[%s0 + $0x258] sm:$0xff]
    %v131 = vld [vmem:[%s0 + $0x260] sm:$0xff]
    %v132 = vld [vmem:[%s0 + $0x268] sm:$0xff]
    %v133 = vld [vmem:[%s0 + $0x270] sm:$0xff]
    %v134 = vld [vmem:[%s0 + $0x278] sm:$0xff]
    %v135 = vld [vmem:[%s0 + $0x280] sm:$0xff]
    %v136 = vld [vmem:[%s0 + $0x288] sm:$0xff]
    %v137 = vld [vmem:[%s0 + $0x290] sm:$0xff]
    %v138 = vld [vmem:[%s0 + $0x298] sm:$0xff]
    %v139 = vld [vmem:[%s0 + $0x2a0] sm:$0xff]
    %v140 = vld [vmem:[%s0 + $0x2a8] sm:$0xff]
    %v141 = vld [vmem:[%s0 + $0x2b0] sm:$0xff]
    %v142 = vld [vmem:[%s0 + $0x2b8] sm:$0xff]
    %v143 = vld [vmem:[%s0 + $0x2c0] sm:$0xff]
    %v144 = vld [vmem:[%s0 + $0x2c8] sm:$0xff]
    %v145 = vld [vmem:[%s0 + $0x2d0] sm:$0xff]
    %v146 = vld [vmem:[%s0 + $0x2d8] sm:$0xff]
    %v147 = vld [vmem:[%s0 + $0x2e0] sm:$0xff]
    %v148 = vld [vmem:[%s0 + $0x2e8] sm:$0xff]
    %v149 = vld [vmem:[%s0 + $0x2f0] sm:$0xff]
    %v150 = vld [vmem:[%s0 + $0x2f8] sm:$0xff]
    %v151 = vld [vmem:[%s0 + $0x300] sm:$0xff]
    %v152 = vld [vmem:[%s0 + $0x308] sm:$0xff]
    %v153 = vld [vmem:[%s0 + $0x310] sm:$0xff]
    %v154 = vld [vmem:[%s0 + $0x318] sm:$0xff]
    %v155 = vld [vmem:[%s0 + $0x320] sm:$0xff]
    %v156 = vld [vmem:[%s0 + $0x328] sm:$0xff]
    %v157 = vld [vmem:[%s0 + $0x330] sm:$0xff]
    %v158 = vld [vmem:[%s0 + $0x338] sm:$0xff]
    %v159 = vld [vmem:[%s0 + $0x340] sm:$0xff]
    %v160 = vld [vmem:[%s0 + $0x348] sm:$0xff]
    %v161 = vld [vmem:[%s0 + $0x350] sm:$0xff]
    %v162 = vld [vmem:[%s0 + $0x358] sm:$0xff]
    %v163 = vld [vmem:[%s0 + $0x360] sm:$0xff]
    %v164 = vld [vmem:[%s0 + $0x368] sm:$0xff]
    %v165 = vld [vmem:[%s0 + $0x370] sm:$0xff]
    %v166 = vld [vmem:[%s0 + $0x378] sm:$0xff]
    %v167 = vpack.c.bf16 %v62, %v55
    %v168 = vpack.c.bf16 %v63, %v56
    %v169 = vpack.c.bf16 %v64, %v57
    %v170 = vpack.c.bf16 %v65, %v58
    %v171 = vpack.c.bf16 %v66, %v59
    %v172 = vpack.c.bf16 %v67, %v60
    %v173 = vpack.c.bf16 %v68, %v61
    %v174 = vpack.c.bf16 %v76, %v69
    %v175 = vpack.c.bf16 %v77, %v70
    %v176 = vpack.c.bf16 %v78, %v71
    %v177 = vpack.c.bf16 %v79, %v72
    %v178 = vpack.c.bf16 %v80, %v73
    %v179 = vpack.c.bf16 %v81, %v74
    %v180 = vpack.c.bf16 %v82, %v75
    %v181 = vpack.c.bf16 %v90, %v83
    %v182 = vpack.c.bf16 %v91, %v84
    %v183 = vpack.c.bf16 %v92, %v85
    %v184 = vpack.c.bf16 %v93, %v86
    %v185 = vpack.c.bf16 %v94, %v87
    %v186 = vpack.c.bf16 %v95, %v88
    %v187 = vpack.c.bf16 %v96, %v89
    %v188 = vpack.c.bf16 %v104, %v97
    %v189 = vpack.c.bf16 %v105, %v98
    %v190 = vpack.c.bf16 %v106, %v99
    %v191 = vpack.c.bf16 %v107, %v100
    %v192 = vpack.c.bf16 %v108, %v101
    %v193 = vpack.c.bf16 %v109, %v102
    %v194 = vpack.c.bf16 %v110, %v103
    %v195 = vpack.c.bf16 %v118, %v111
    %v196 = vpack.c.bf16 %v119, %v112
    %v197 = vpack.c.bf16 %v120, %v113
    %v198 = vpack.c.bf16 %v121, %v114
    %v199 = vpack.c.bf16 %v122, %v115
    %v200 = vpack.c.bf16 %v123, %v116
    %v201 = vpack.c.bf16 %v124, %v117
    %v202 = vpack.c.bf16 %v132, %v125
    %v203 = vpack.c.bf16 %v133, %v126
    %v204 = vpack.c.bf16 %v134, %v127
    %v205 = vpack.c.bf16 %v135, %v128
    %v206 = vpack.c.bf16 %v136, %v129
    %v207 = vpack.c.bf16 %v137, %v130
    %v208 = vpack.c.bf16 %v138, %v131
    %v209 = vpack.c.bf16 %v146, %v139
    %v210 = vpack.c.bf16 %v147, %v140
    %v211 = vpack.c.bf16 %v148, %v141
    %v212 = vpack.c.bf16 %v149, %v142
    %v213 = vpack.c.bf16 %v150, %v143
    %v214 = vpack.c.bf16 %v151, %v144
    %v215 = vpack.c.bf16 %v152, %v145
    %v216 = vpack.c.bf16 %v160, %v153
    %v217 = vpack.c.bf16 %v161, %v154
    %v218 = vpack.c.bf16 %v162, %v155
    %v219 = vpack.c.bf16 %v163, %v156
    %v220 = vpack.c.bf16 %v164, %v157
    %v221 = vpack.c.bf16 %v165, %v158
    %v222 = vpack.c.bf16 %v166, %v159
    %v223 = vld [vmem:[%s1] sm:$0xff]
    %v224 = vld [vmem:[%s1 + $0x8] sm:$0xff]
    %v225 = vld [vmem:[%s1 + $0x10] sm:$0xff]
    %v226 = vld [vmem:[%s1 + $0x18] sm:$0xff]
    %v227 = vld [vmem:[%s1 + $0x20] sm:$0xff]
    %v228 = vld [vmem:[%s1 + $0x28] sm:$0xff]
    %v229 = vld [vmem:[%s1 + $0x30] sm:$0xff]
    %v230 = vld [vmem:[%s1 + $0x38] sm:$0xff]
    %v231 = vld [vmem:[%s1 + $0x40] sm:$0xff]
    %v232 = vld [vmem:[%s1 + $0x48] sm:$0xff]
    %v233 = vld [vmem:[%s1 + $0x50] sm:$0xff]
    %v234 = vld [vmem:[%s1 + $0x58] sm:$0xff]
    %v235 = vld [vmem:[%s1 + $0x60] sm:$0xff]
    %v236 = vld [vmem:[%s1 + $0x68] sm:$0xff]
    %v237 = vld [vmem:[%s1 + $0x70] sm:$0xff]
    %v238 = vld [vmem:[%s1 + $0x78] sm:$0xff]
    %v239 = vld [vmem:[%s1 + $0x80] sm:$0xff]
    %v240 = vld [vmem:[%s1 + $0x88] sm:$0xff]
    %v241 = vld [vmem:[%s1 + $0x90] sm:$0xff]
    %v242 = vld [vmem:[%s1 + $0x98] sm:$0xff]
    %v243 = vld [vmem:[%s1 + $0xa0] sm:$0xff]
    %v244 = vld [vmem:[%s1 + $0xa8] sm:$0xff]
    %v245 = vld [vmem:[%s1 + $0xb0] sm:$0xff]
    %v246 = vld [vmem:[%s1 + $0xb8] sm:$0xff]
    %v247 = vld [vmem:[%s1 + $0xc0] sm:$0xff]
    %v248 = vld [vmem:[%s1 + $0xc8] sm:$0xff]
    %v249 = vld [vmem:[%s1 + $0xd0] sm:$0xff]
    %v250 = vld [vmem:[%s1 + $0xd8] sm:$0xff]
    %v251 = vld [vmem:[%s1 + $0xe0] sm:$0xff]
    %v252 = vld [vmem:[%s1 + $0xe8] sm:$0xff]
    %v253 = vld [vmem:[%s1 + $0xf0] sm:$0xff]
    %v254 = vld [vmem:[%s1 + $0xf8] sm:$0xff]
    %v255 = vld [vmem:[%s1 + $0x100] sm:$0xff]
    %v256 = vld [vmem:[%s1 + $0x108] sm:$0xff]
    %v257 = vld [vmem:[%s1 + $0x110] sm:$0xff]
    %v258 = vld [vmem:[%s1 + $0x118] sm:$0xff]
    %v259 = vld [vmem:[%s1 + $0x120] sm:$0xff]
    %v260 = vld [vmem:[%s1 + $0x128] sm:$0xff]
    %v261 = vld [vmem:[%s1 + $0x130] sm:$0xff]
    %v262 = vld [vmem:[%s1 + $0x138] sm:$0xff]
    %v263 = vld [vmem:[%s1 + $0x140] sm:$0xff]
    %v264 = vld [vmem:[%s1 + $0x148] sm:$0xff]
    %v265 = vld [vmem:[%s1 + $0x150] sm:$0xff]
    %v266 = vld [vmem:[%s1 + $0x158] sm:$0xff]
    %v267 = vld [vmem:[%s1 + $0x160] sm:$0xff]
    %v268 = vld [vmem:[%s1 + $0x168] sm:$0xff]
    %v269 = vld [vmem:[%s1 + $0x170] sm:$0xff]
    %v270 = vld [vmem:[%s1 + $0x178] sm:$0xff]
    %v271 = vld [vmem:[%s1 + $0x180] sm:$0xff]
    %v272 = vld [vmem:[%s1 + $0x188] sm:$0xff]
    %v273 = vld [vmem:[%s1 + $0x190] sm:$0xff]
    %v274 = vld [vmem:[%s1 + $0x198] sm:$0xff]
    %v275 = vld [vmem:[%s1 + $0x1a0] sm:$0xff]
    %v276 = vld [vmem:[%s1 + $0x1a8] sm:$0xff]
    %v277 = vld [vmem:[%s1 + $0x1b0] sm:$0xff]
    %v278 = vld [vmem:[%s1 + $0x1b8] sm:$0xff]
    %v279 = vld [vmem:[%s1 + $0x1c0] sm:$0xff]
    %v280 = vld [vmem:[%s1 + $0x1c8] sm:$0xff]
    %v281 = vld [vmem:[%s1 + $0x1d0] sm:$0xff]
    %v282 = vld [vmem:[%s1 + $0x1d8] sm:$0xff]
    %v283 = vld [vmem:[%s1 + $0x1e0] sm:$0xff]
    %v284 = vld [vmem:[%s1 + $0x1e8] sm:$0xff]
    %v285 = vld [vmem:[%s1 + $0x1f0] sm:$0xff]
    %v286 = vld [vmem:[%s1 + $0x1f8] sm:$0xff]
    %v287 = vld [vmem:[%s1 + $0x200] sm:$0xff]
    %v288 = vld [vmem:[%s1 + $0x208] sm:$0xff]
    %v289 = vld [vmem:[%s1 + $0x210] sm:$0xff]
    %v290 = vld [vmem:[%s1 + $0x218] sm:$0xff]
    %v291 = vld [vmem:[%s1 + $0x220] sm:$0xff]
    %v292 = vld [vmem:[%s1 + $0x228] sm:$0xff]
    %v293 = vld [vmem:[%s1 + $0x230] sm:$0xff]
    %v294 = vld [vmem:[%s1 + $0x238] sm:$0xff]
    %v295 = vld [vmem:[%s1 + $0x240] sm:$0xff]
    %v296 = vld [vmem:[%s1 + $0x248] sm:$0xff]
    %v297 = vld [vmem:[%s1 + $0x250] sm:$0xff]
    %v298 = vld [vmem:[%s1 + $0x258] sm:$0xff]
    %v299 = vld [vmem:[%s1 + $0x260] sm:$0xff]
    %v300 = vld [vmem:[%s1 + $0x268] sm:$0xff]
    %v301 = vld [vmem:[%s1 + $0x270] sm:$0xff]
    %v302 = vld [vmem:[%s1 + $0x278] sm:$0xff]
    %v303 = vld [vmem:[%s1 + $0x280] sm:$0xff]
    %v304 = vld [vmem:[%s1 + $0x288] sm:$0xff]
    %v305 = vld [vmem:[%s1 + $0x290] sm:$0xff]
    %v306 = vld [vmem:[%s1 + $0x298] sm:$0xff]
    %v307 = vld [vmem:[%s1 + $0x2a0] sm:$0xff]
    %v308 = vld [vmem:[%s1 + $0x2a8] sm:$0xff]
    %v309 = vld [vmem:[%s1 + $0x2b0] sm:$0xff]
    %v310 = vld [vmem:[%s1 + $0x2b8] sm:$0xff]
    %v311 = vld [vmem:[%s1 + $0x2c0] sm:$0xff]
    %v312 = vld [vmem:[%s1 + $0x2c8] sm:$0xff]
    %v313 = vld [vmem:[%s1 + $0x2d0] sm:$0xff]
    %v314 = vld [vmem:[%s1 + $0x2d8] sm:$0xff]
    %v315 = vld [vmem:[%s1 + $0x2e0] sm:$0xff]
    %v316 = vld [vmem:[%s1 + $0x2e8] sm:$0xff]
    %v317 = vld [vmem:[%s1 + $0x2f0] sm:$0xff]
    %v318 = vld [vmem:[%s1 + $0x2f8] sm:$0xff]
    %v319 = vld [vmem:[%s1 + $0x300] sm:$0xff]
    %v320 = vld [vmem:[%s1 + $0x308] sm:$0xff]
    %v321 = vld [vmem:[%s1 + $0x310] sm:$0xff]
    %v322 = vld [vmem:[%s1 + $0x318] sm:$0xff]
    %v323 = vld [vmem:[%s1 + $0x320] sm:$0xff]
    %v324 = vld [vmem:[%s1 + $0x328] sm:$0xff]
    %v325 = vld [vmem:[%s1 + $0x330] sm:$0xff]
    %v326 = vld [vmem:[%s1 + $0x338] sm:$0xff]
    %v327 = vld [vmem:[%s1 + $0x340] sm:$0xff]
    %v328 = vld [vmem:[%s1 + $0x348] sm:$0xff]
    %v329 = vld [vmem:[%s1 + $0x350] sm:$0xff]
    %v330 = vld [vmem:[%s1 + $0x358] sm:$0xff]
    %v331 = vld [vmem:[%s1 + $0x360] sm:$0xff]
    %v332 = vld [vmem:[%s1 + $0x368] sm:$0xff]
    %v333 = vld [vmem:[%s1 + $0x370] sm:$0xff]
    %v334 = vld [vmem:[%s1 + $0x378] sm:$0xff]
    %v335 = vld [vmem:[%s1 + $0x380] sm:$0xff]
    %v336 = vld [vmem:[%s1 + $0x388] sm:$0xff]
    %v337 = vld [vmem:[%s1 + $0x390] sm:$0xff]
    %v338 = vld [vmem:[%s1 + $0x398] sm:$0xff]
    %v339 = vld [vmem:[%s1 + $0x3a0] sm:$0xff]
    %v340 = vld [vmem:[%s1 + $0x3a8] sm:$0xff]
    %v341 = vld [vmem:[%s1 + $0x3b0] sm:$0xff]
    %v342 = vld [vmem:[%s1 + $0x3b8] sm:$0xff]
    %v343 = vld [vmem:[%s1 + $0x3c0] sm:$0xff]
    %v344 = vld [vmem:[%s1 + $0x3c8] sm:$0xff]
    %v345 = vld [vmem:[%s1 + $0x3d0] sm:$0xff]
    %v346 = vld [vmem:[%s1 + $0x3d8] sm:$0xff]
    %v347 = vld [vmem:[%s1 + $0x3e0] sm:$0xff]
    %v348 = vld [vmem:[%s1 + $0x3e8] sm:$0xff]
    %v349 = vld [vmem:[%s1 + $0x3f0] sm:$0xff]
    %v350 = vld [vmem:[%s1 + $0x3f8] sm:$0xff]
    %v351 = vld [vmem:[%s1 + $0x400] sm:$0xff]
    %v352 = vld [vmem:[%s1 + $0x408] sm:$0xff]
    %v353 = vld [vmem:[%s1 + $0x410] sm:$0xff]
    %v354 = vld [vmem:[%s1 + $0x418] sm:$0xff]
    %v355 = vld [vmem:[%s1 + $0x420] sm:$0xff]
    %v356 = vld [vmem:[%s1 + $0x428] sm:$0xff]
    %v357 = vld [vmem:[%s1 + $0x430] sm:$0xff]
    %v358 = vld [vmem:[%s1 + $0x438] sm:$0xff]
    %v359 = vld [vmem:[%s1 + $0x440] sm:$0xff]
    %v360 = vld [vmem:[%s1 + $0x448] sm:$0xff]
    %v361 = vld [vmem:[%s1 + $0x450] sm:$0xff]
    %v362 = vld [vmem:[%s1 + $0x458] sm:$0xff]
    %v363 = vld [vmem:[%s1 + $0x460] sm:$0xff]
    %v364 = vld [vmem:[%s1 + $0x468] sm:$0xff]
    %v365 = vld [vmem:[%s1 + $0x470] sm:$0xff]
    %v366 = vld [vmem:[%s1 + $0x478] sm:$0xff]
    %v367 = vld [vmem:[%s1 + $0x480] sm:$0xff]
    %v368 = vld [vmem:[%s1 + $0x488] sm:$0xff]
    %v369 = vld [vmem:[%s1 + $0x490] sm:$0xff]
    %v370 = vld [vmem:[%s1 + $0x498] sm:$0xff]
    %v371 = vld [vmem:[%s1 + $0x4a0] sm:$0xff]
    %v372 = vld [vmem:[%s1 + $0x4a8] sm:$0xff]
    %v373 = vld [vmem:[%s1 + $0x4b0] sm:$0xff]
    %v374 = vld [vmem:[%s1 + $0x4b8] sm:$0xff]
    %v375 = vld [vmem:[%s1 + $0x4c0] sm:$0xff]
    %v376 = vld [vmem:[%s1 + $0x4c8] sm:$0xff]
    %v377 = vld [vmem:[%s1 + $0x4d0] sm:$0xff]
    %v378 = vld [vmem:[%s1 + $0x4d8] sm:$0xff]
    %v379 = vld [vmem:[%s1 + $0x4e0] sm:$0xff]
    %v380 = vld [vmem:[%s1 + $0x4e8] sm:$0xff]
    %v381 = vld [vmem:[%s1 + $0x4f0] sm:$0xff]
    %v382 = vld [vmem:[%s1 + $0x4f8] sm:$0xff]
    %v383 = vld [vmem:[%s1 + $0x500] sm:$0xff]
    %v384 = vld [vmem:[%s1 + $0x508] sm:$0xff]
    %v385 = vld [vmem:[%s1 + $0x510] sm:$0xff]
    %v386 = vld [vmem:[%s1 + $0x518] sm:$0xff]
    %v387 = vld [vmem:[%s1 + $0x520] sm:$0xff]
    %v388 = vld [vmem:[%s1 + $0x528] sm:$0xff]
    %v389 = vld [vmem:[%s1 + $0x530] sm:$0xff]
    %v390 = vld [vmem:[%s1 + $0x538] sm:$0xff]
    %v391 = vld [vmem:[%s1 + $0x540] sm:$0xff]
    %v392 = vld [vmem:[%s1 + $0x548] sm:$0xff]
    %v393 = vld [vmem:[%s1 + $0x550] sm:$0xff]
    %v394 = vld [vmem:[%s1 + $0x558] sm:$0xff]
    %v395 = vld [vmem:[%s1 + $0x560] sm:$0xff]
    %v396 = vld [vmem:[%s1 + $0x568] sm:$0xff]
    %v397 = vld [vmem:[%s1 + $0x570] sm:$0xff]
    %v398 = vld [vmem:[%s1 + $0x578] sm:$0xff]
    %v399 = vld [vmem:[%s1 + $0x580] sm:$0xff]
    %v400 = vld [vmem:[%s1 + $0x588] sm:$0xff]
    %v401 = vld [vmem:[%s1 + $0x590] sm:$0xff]
    %v402 = vld [vmem:[%s1 + $0x598] sm:$0xff]
    %v403 = vld [vmem:[%s1 + $0x5a0] sm:$0xff]
    %v404 = vld [vmem:[%s1 + $0x5a8] sm:$0xff]
    %v405 = vld [vmem:[%s1 + $0x5b0] sm:$0xff]
    %v406 = vld [vmem:[%s1 + $0x5b8] sm:$0xff]
    %v407 = vld [vmem:[%s1 + $0x5c0] sm:$0xff]
    %v408 = vld [vmem:[%s1 + $0x5c8] sm:$0xff]
    %v409 = vld [vmem:[%s1 + $0x5d0] sm:$0xff]
    %v410 = vld [vmem:[%s1 + $0x5d8] sm:$0xff]
    %v411 = vld [vmem:[%s1 + $0x5e0] sm:$0xff]
    %v412 = vld [vmem:[%s1 + $0x5e8] sm:$0xff]
    %v413 = vld [vmem:[%s1 + $0x5f0] sm:$0xff]
    %v414 = vld [vmem:[%s1 + $0x5f8] sm:$0xff]
    %v415 = vld [vmem:[%s1 + $0x600] sm:$0xff]
    %v416 = vld [vmem:[%s1 + $0x608] sm:$0xff]
    %v417 = vld [vmem:[%s1 + $0x610] sm:$0xff]
    %v418 = vld [vmem:[%s1 + $0x618] sm:$0xff]
    %v419 = vld [vmem:[%s2] sm:$0xf]
    %v421 = vlaneseq
    %v422 = vshrl.u32 %v421, 7
    %v423 = vsub.s32 0, %v422
    %v424 = vrot.slane %v419, %v423
    %v425 = vlaneseq
    %v426 = vshrl.u32 %v425, 7
    %v427 = vsub.s32 1, %v426
    %v428 = vrot.slane %v419, %v427
    %v429 = vlaneseq
    %v430 = vshrl.u32 %v429, 7
    %v431 = vsub.s32 2, %v430
    %v432 = vrot.slane %v419, %v431
    %v433 = vlaneseq
    %v434 = vshrl.u32 %v433, 7
    %v435 = vsub.s32 3, %v434
    %v436 = vrot.slane %v419, %v435
    %v637 = vunpack.c.l.b16 %v223
    %v638 = vunpack.c.h.b16 %v223
    %v639 = vunpack.c.l.b16 %v224
    %v640 = vunpack.c.h.b16 %v224
    %v641 = vunpack.c.l.b16 %v225
    %v642 = vunpack.c.h.b16 %v225
    %v643 = vunpack.c.l.b16 %v226
    %v644 = vunpack.c.h.b16 %v226
    %v645 = vunpack.c.l.b16 %v227
    %v646 = vunpack.c.h.b16 %v227
    %v647 = vunpack.c.l.b16 %v228
    %v648 = vunpack.c.h.b16 %v228
    %v649 = vunpack.c.l.b16 %v229
    %v650 = vunpack.c.h.b16 %v229
    %v651 = vunpack.c.l.b16 %v230
    %v652 = vunpack.c.h.b16 %v230
    %v653 = vunpack.c.l.b16 %v231
    %v654 = vunpack.c.h.b16 %v231
    %v655 = vunpack.c.l.b16 %v232
    %v656 = vunpack.c.h.b16 %v232
    %v657 = vunpack.c.l.b16 %v233
    %v658 = vunpack.c.h.b16 %v233
    %v659 = vunpack.c.l.b16 %v234
    %v660 = vunpack.c.h.b16 %v234
    %v661 = vunpack.c.l.b16 %v235
    %v662 = vunpack.c.h.b16 %v235
    %v663 = vunpack.c.l.b16 %v236
    %v664 = vunpack.c.h.b16 %v236
    %v665 = vunpack.c.l.b16 %v237
    %v666 = vunpack.c.h.b16 %v237
    %v667 = vunpack.c.l.b16 %v238
    %v668 = vunpack.c.h.b16 %v238
    %v669 = vunpack.c.l.b16 %v239
    %v670 = vunpack.c.h.b16 %v239
    %v671 = vunpack.c.l.b16 %v240
    %v672 = vunpack.c.h.b16 %v240
    %v673 = vunpack.c.l.b16 %v241
    %v674 = vunpack.c.h.b16 %v241
    %v675 = vunpack.c.l.b16 %v242
    %v676 = vunpack.c.h.b16 %v242
    %v677 = vunpack.c.l.b16 %v243
    %v678 = vunpack.c.h.b16 %v243
    %v679 = vunpack.c.l.b16 %v244
    %v680 = vunpack.c.h.b16 %v244
    %v681 = vunpack.c.l.b16 %v245
    %v682 = vunpack.c.h.b16 %v245
    %v683 = vunpack.c.l.b16 %v246
    %v684 = vunpack.c.h.b16 %v246
    %v685 = vunpack.c.l.b16 %v247
    %v686 = vunpack.c.h.b16 %v247
    %v687 = vunpack.c.l.b16 %v248
    %v688 = vunpack.c.h.b16 %v248
    %v689 = vunpack.c.l.b16 %v249
    %v690 = vunpack.c.h.b16 %v249
    %v691 = vunpack.c.l.b16 %v250
    %v692 = vunpack.c.h.b16 %v250
    %v693 = vunpack.c.l.b16 %v251
    %v694 = vunpack.c.h.b16 %v251
    %v695 = vunpack.c.l.b16 %v252
    %v696 = vunpack.c.h.b16 %v252
    %v697 = vunpack.c.l.b16 %v253
    %v698 = vunpack.c.h.b16 %v253
    %v699 = vunpack.c.l.b16 %v254
    %v700 = vunpack.c.h.b16 %v254
    %v701 = vunpack.c.l.b16 %v255
    %v702 = vunpack.c.h.b16 %v255
    %v703 = vunpack.c.l.b16 %v256
    %v704 = vunpack.c.h.b16 %v256
    %v705 = vunpack.c.l.b16 %v257
    %v706 = vunpack.c.h.b16 %v257
    %v707 = vunpack.c.l.b16 %v258
    %v708 = vunpack.c.h.b16 %v258
    %v709 = vunpack.c.l.b16 %v259
    %v710 = vunpack.c.h.b16 %v259
    %v711 = vunpack.c.l.b16 %v260
    %v712 = vunpack.c.h.b16 %v260
    %v713 = vunpack.c.l.b16 %v261
    %v714 = vunpack.c.h.b16 %v261
    %v715 = vunpack.c.l.b16 %v262
    %v716 = vunpack.c.h.b16 %v262
    %v717 = vunpack.c.l.b16 %v263
    %v718 = vunpack.c.h.b16 %v263
    %v719 = vunpack.c.l.b16 %v264
    %v720 = vunpack.c.h.b16 %v264
    %v721 = vunpack.c.l.b16 %v265
    %v722 = vunpack.c.h.b16 %v265
    %v723 = vunpack.c.l.b16 %v266
    %v724 = vunpack.c.h.b16 %v266
    %v725 = vunpack.c.l.b16 %v267
    %v726 = vunpack.c.h.b16 %v267
    %v727 = vunpack.c.l.b16 %v268
    %v728 = vunpack.c.h.b16 %v268
    %v729 = vunpack.c.l.b16 %v269
    %v730 = vunpack.c.h.b16 %v269
    %v731 = vunpack.c.l.b16 %v270
    %v732 = vunpack.c.h.b16 %v270
    %v733 = vunpack.c.l.b16 %v271
    %v734 = vunpack.c.h.b16 %v271
    %v735 = vunpack.c.l.b16 %v272
    %v736 = vunpack.c.h.b16 %v272
    %v737 = vunpack.c.l.b16 %v273
    %v738 = vunpack.c.h.b16 %v273
    %v739 = vunpack.c.l.b16 %v274
    %v740 = vunpack.c.h.b16 %v274
    %v741 = vunpack.c.l.b16 %v275
    %v742 = vunpack.c.h.b16 %v275
    %v743 = vunpack.c.l.b16 %v276
    %v744 = vunpack.c.h.b16 %v276
    %v745 = vunpack.c.l.b16 %v277
    %v746 = vunpack.c.h.b16 %v277
    %v747 = vunpack.c.l.b16 %v278
    %v748 = vunpack.c.h.b16 %v278
    %v749 = vunpack.c.l.b16 %v279
    %v750 = vunpack.c.h.b16 %v279
    %v751 = vunpack.c.l.b16 %v280
    %v752 = vunpack.c.h.b16 %v280
    %v753 = vunpack.c.l.b16 %v281
    %v754 = vunpack.c.h.b16 %v281
    %v755 = vunpack.c.l.b16 %v282
    %v756 = vunpack.c.h.b16 %v282
    %v757 = vunpack.c.l.b16 %v283
    %v758 = vunpack.c.h.b16 %v283
    %v759 = vunpack.c.l.b16 %v284
    %v760 = vunpack.c.h.b16 %v284
    %v761 = vunpack.c.l.b16 %v285
    %v762 = vunpack.c.h.b16 %v285
    %v763 = vunpack.c.l.b16 %v286
    %v764 = vunpack.c.h.b16 %v286
    %v765 = vunpack.c.l.b16 %v287
    %v766 = vunpack.c.h.b16 %v287
    %v767 = vunpack.c.l.b16 %v288
    %v768 = vunpack.c.h.b16 %v288
    %v769 = vunpack.c.l.b16 %v289
    %v770 = vunpack.c.h.b16 %v289
    %v771 = vunpack.c.l.b16 %v290
    %v772 = vunpack.c.h.b16 %v290
    %v773 = vunpack.c.l.b16 %v291
    %v774 = vunpack.c.h.b16 %v291
    %v775 = vunpack.c.l.b16 %v292
    %v776 = vunpack.c.h.b16 %v292
    %v777 = vunpack.c.l.b16 %v293
    %v778 = vunpack.c.h.b16 %v293
    %v779 = vunpack.c.l.b16 %v294
    %v780 = vunpack.c.h.b16 %v294
    %v781 = vunpack.c.l.b16 %v295
    %v782 = vunpack.c.h.b16 %v295
    %v783 = vunpack.c.l.b16 %v296
    %v784 = vunpack.c.h.b16 %v296
    %v785 = vunpack.c.l.b16 %v297
    %v786 = vunpack.c.h.b16 %v297
    %v787 = vunpack.c.l.b16 %v298
    %v788 = vunpack.c.h.b16 %v298
    %v789 = vunpack.c.l.b16 %v299
    %v790 = vunpack.c.h.b16 %v299
    %v791 = vunpack.c.l.b16 %v300
    %v792 = vunpack.c.h.b16 %v300
    %v793 = vunpack.c.l.b16 %v301
    %v794 = vunpack.c.h.b16 %v301
    %v795 = vunpack.c.l.b16 %v302
    %v796 = vunpack.c.h.b16 %v302
    %v797 = vunpack.c.l.b16 %v303
    %v798 = vunpack.c.h.b16 %v303
    %v799 = vunpack.c.l.b16 %v304
    %v800 = vunpack.c.h.b16 %v304
    %v801 = vunpack.c.l.b16 %v305
    %v802 = vunpack.c.h.b16 %v305
    %v803 = vunpack.c.l.b16 %v306
    %v804 = vunpack.c.h.b16 %v306
    %v805 = vunpack.c.l.b16 %v307
    %v806 = vunpack.c.h.b16 %v307
    %v807 = vunpack.c.l.b16 %v308
    %v808 = vunpack.c.h.b16 %v308
    %v809 = vunpack.c.l.b16 %v309
    %v810 = vunpack.c.h.b16 %v309
    %v811 = vunpack.c.l.b16 %v310
    %v812 = vunpack.c.h.b16 %v310
    %v813 = vunpack.c.l.b16 %v311
    %v814 = vunpack.c.h.b16 %v311
    %v815 = vunpack.c.l.b16 %v312
    %v816 = vunpack.c.h.b16 %v312
    %v817 = vunpack.c.l.b16 %v313
    %v818 = vunpack.c.h.b16 %v313
    %v819 = vunpack.c.l.b16 %v314
    %v820 = vunpack.c.h.b16 %v314
    %v821 = vunpack.c.l.b16 %v315
    %v822 = vunpack.c.h.b16 %v315
    %v823 = vunpack.c.l.b16 %v316
    %v824 = vunpack.c.h.b16 %v316
    %v825 = vunpack.c.l.b16 %v317
    %v826 = vunpack.c.h.b16 %v317
    %v827 = vunpack.c.l.b16 %v318
    %v828 = vunpack.c.h.b16 %v318
    %v829 = vunpack.c.l.b16 %v319
    %v830 = vunpack.c.h.b16 %v319
    %v831 = vunpack.c.l.b16 %v320
    %v832 = vunpack.c.h.b16 %v320
    %v833 = vunpack.c.l.b16 %v321
    %v834 = vunpack.c.h.b16 %v321
    %v835 = vunpack.c.l.b16 %v322
    %v836 = vunpack.c.h.b16 %v322
    %v837 = vunpack.c.l.b16 %v323
    %v838 = vunpack.c.h.b16 %v323
    %v839 = vunpack.c.l.b16 %v324
    %v840 = vunpack.c.h.b16 %v324
    %v841 = vunpack.c.l.b16 %v325
    %v842 = vunpack.c.h.b16 %v325
    %v843 = vunpack.c.l.b16 %v326
    %v844 = vunpack.c.h.b16 %v326
    %v845 = vunpack.c.l.b16 %v327
    %v846 = vunpack.c.h.b16 %v327
    %v847 = vunpack.c.l.b16 %v328
    %v848 = vunpack.c.h.b16 %v328
    %v849 = vunpack.c.l.b16 %v329
    %v850 = vunpack.c.h.b16 %v329
    %v851 = vunpack.c.l.b16 %v330
    %v852 = vunpack.c.h.b16 %v330
    %v853 = vunpack.c.l.b16 %v331
    %v854 = vunpack.c.h.b16 %v331
    %v855 = vunpack.c.l.b16 %v332
    %v856 = vunpack.c.h.b16 %v332
    %v857 = vunpack.c.l.b16 %v333
    %v858 = vunpack.c.h.b16 %v333
    %v859 = vunpack.c.l.b16 %v334
    %v860 = vunpack.c.h.b16 %v334
    %v861 = vunpack.c.l.b16 %v335
    %v862 = vunpack.c.h.b16 %v335
    %v863 = vunpack.c.l.b16 %v336
    %v864 = vunpack.c.h.b16 %v336
    %v865 = vunpack.c.l.b16 %v337
    %v866 = vunpack.c.h.b16 %v337
    %v867 = vunpack.c.l.b16 %v338
    %v868 = vunpack.c.h.b16 %v338
    %v869 = vunpack.c.l.b16 %v339
    %v870 = vunpack.c.h.b16 %v339
    %v871 = vunpack.c.l.b16 %v340
    %v872 = vunpack.c.h.b16 %v340
    %v873 = vunpack.c.l.b16 %v341
    %v874 = vunpack.c.h.b16 %v341
    %v875 = vunpack.c.l.b16 %v342
    %v876 = vunpack.c.h.b16 %v342
    %v877 = vunpack.c.l.b16 %v343
    %v878 = vunpack.c.h.b16 %v343
    %v879 = vunpack.c.l.b16 %v344
    %v880 = vunpack.c.h.b16 %v344
    %v881 = vunpack.c.l.b16 %v345
    %v882 = vunpack.c.h.b16 %v345
    %v883 = vunpack.c.l.b16 %v346
    %v884 = vunpack.c.h.b16 %v346
    %v885 = vunpack.c.l.b16 %v347
    %v886 = vunpack.c.h.b16 %v347
    %v887 = vunpack.c.l.b16 %v348
    %v888 = vunpack.c.h.b16 %v348
    %v889 = vunpack.c.l.b16 %v349
    %v890 = vunpack.c.h.b16 %v349
    %v891 = vunpack.c.l.b16 %v350
    %v892 = vunpack.c.h.b16 %v350
    %v893 = vunpack.c.l.b16 %v351
    %v894 = vunpack.c.h.b16 %v351
    %v895 = vunpack.c.l.b16 %v352
    %v896 = vunpack.c.h.b16 %v352
    %v897 = vunpack.c.l.b16 %v353
    %v898 = vunpack.c.h.b16 %v353
    %v899 = vunpack.c.l.b16 %v354
    %v900 = vunpack.c.h.b16 %v354
    %v901 = vunpack.c.l.b16 %v355
    %v902 = vunpack.c.h.b16 %v355
    %v903 = vunpack.c.l.b16 %v356
    %v904 = vunpack.c.h.b16 %v356
    %v905 = vunpack.c.l.b16 %v357
    %v906 = vunpack.c.h.b16 %v357
    %v907 = vunpack.c.l.b16 %v358
    %v908 = vunpack.c.h.b16 %v358
    %v909 = vunpack.c.l.b16 %v359
    %v910 = vunpack.c.h.b16 %v359
    %v911 = vunpack.c.l.b16 %v360
    %v912 = vunpack.c.h.b16 %v360
    %v913 = vunpack.c.l.b16 %v361
    %v914 = vunpack.c.h.b16 %v361
    %v915 = vunpack.c.l.b16 %v362
    %v916 = vunpack.c.h.b16 %v362
    %v917 = vunpack.c.l.b16 %v363
    %v918 = vunpack.c.h.b16 %v363
    %v919 = vunpack.c.l.b16 %v364
    %v920 = vunpack.c.h.b16 %v364
    %v921 = vunpack.c.l.b16 %v365
    %v922 = vunpack.c.h.b16 %v365
    %v923 = vunpack.c.l.b16 %v366
    %v924 = vunpack.c.h.b16 %v366
    %v925 = vunpack.c.l.b16 %v367
    %v926 = vunpack.c.h.b16 %v367
    %v927 = vunpack.c.l.b16 %v368
    %v928 = vunpack.c.h.b16 %v368
    %v929 = vunpack.c.l.b16 %v369
    %v930 = vunpack.c.h.b16 %v369
    %v931 = vunpack.c.l.b16 %v370
    %v932 = vunpack.c.h.b16 %v370
    %v933 = vunpack.c.l.b16 %v371
    %v934 = vunpack.c.h.b16 %v371
    %v935 = vunpack.c.l.b16 %v372
    %v936 = vunpack.c.h.b16 %v372
    %v937 = vunpack.c.l.b16 %v373
    %v938 = vunpack.c.h.b16 %v373
    %v939 = vunpack.c.l.b16 %v374
    %v940 = vunpack.c.h.b16 %v374
    %v941 = vunpack.c.l.b16 %v375
    %v942 = vunpack.c.h.b16 %v375
    %v943 = vunpack.c.l.b16 %v376
    %v944 = vunpack.c.h.b16 %v376
    %v945 = vunpack.c.l.b16 %v377
    %v946 = vunpack.c.h.b16 %v377
    %v947 = vunpack.c.l.b16 %v378
    %v948 = vunpack.c.h.b16 %v378
    %v949 = vunpack.c.l.b16 %v379
    %v950 = vunpack.c.h.b16 %v379
    %v951 = vunpack.c.l.b16 %v380
    %v952 = vunpack.c.h.b16 %v380
    %v953 = vunpack.c.l.b16 %v381
    %v954 = vunpack.c.h.b16 %v381
    %v955 = vunpack.c.l.b16 %v382
    %v956 = vunpack.c.h.b16 %v382
    %v957 = vunpack.c.l.b16 %v383
    %v958 = vunpack.c.h.b16 %v383
    %v959 = vunpack.c.l.b16 %v384
    %v960 = vunpack.c.h.b16 %v384
    %v961 = vunpack.c.l.b16 %v385
    %v962 = vunpack.c.h.b16 %v385
    %v963 = vunpack.c.l.b16 %v386
    %v964 = vunpack.c.h.b16 %v386
    %v965 = vunpack.c.l.b16 %v387
    %v966 = vunpack.c.h.b16 %v387
    %v967 = vunpack.c.l.b16 %v388
    %v968 = vunpack.c.h.b16 %v388
    %v969 = vunpack.c.l.b16 %v389
    %v970 = vunpack.c.h.b16 %v389
    %v971 = vunpack.c.l.b16 %v390
    %v972 = vunpack.c.h.b16 %v390
    %v973 = vunpack.c.l.b16 %v391
    %v974 = vunpack.c.h.b16 %v391
    %v975 = vunpack.c.l.b16 %v392
    %v976 = vunpack.c.h.b16 %v392
    %v977 = vunpack.c.l.b16 %v393
    %v978 = vunpack.c.h.b16 %v393
    %v979 = vunpack.c.l.b16 %v394
    %v980 = vunpack.c.h.b16 %v394
    %v981 = vunpack.c.l.b16 %v395
    %v982 = vunpack.c.h.b16 %v395
    %v983 = vunpack.c.l.b16 %v396
    %v984 = vunpack.c.h.b16 %v396
    %v985 = vunpack.c.l.b16 %v397
    %v986 = vunpack.c.h.b16 %v397
    %v987 = vunpack.c.l.b16 %v398
    %v988 = vunpack.c.h.b16 %v398
    %v989 = vunpack.c.l.b16 %v399
    %v990 = vunpack.c.h.b16 %v399
    %v991 = vunpack.c.l.b16 %v400
    %v992 = vunpack.c.h.b16 %v400
    %v993 = vunpack.c.l.b16 %v401
    %v994 = vunpack.c.h.b16 %v401
    %v995 = vunpack.c.l.b16 %v402
    %v996 = vunpack.c.h.b16 %v402
    %v997 = vunpack.c.l.b16 %v403
    %v998 = vunpack.c.h.b16 %v403
    %v999 = vunpack.c.l.b16 %v404
    %v1000 = vunpack.c.h.b16 %v404
    %v1001 = vunpack.c.l.b16 %v405
    %v1002 = vunpack.c.h.b16 %v405
    %v1003 = vunpack.c.l.b16 %v406
    %v1004 = vunpack.c.h.b16 %v406
    %v1005 = vunpack.c.l.b16 %v407
    %v1006 = vunpack.c.h.b16 %v407
    %v1007 = vunpack.c.l.b16 %v408
    %v1008 = vunpack.c.h.b16 %v408
    %v1009 = vunpack.c.l.b16 %v409
    %v1010 = vunpack.c.h.b16 %v409
    %v1011 = vunpack.c.l.b16 %v410
    %v1012 = vunpack.c.h.b16 %v410
    %v1013 = vunpack.c.l.b16 %v411
    %v1014 = vunpack.c.h.b16 %v411
    %v1015 = vunpack.c.l.b16 %v412
    %v1016 = vunpack.c.h.b16 %v412
    %v1017 = vunpack.c.l.b16 %v413
    %v1018 = vunpack.c.h.b16 %v413
    %v1019 = vunpack.c.l.b16 %v414
    %v1020 = vunpack.c.h.b16 %v414
    %v1021 = vunpack.c.l.b16 %v415
    %v1022 = vunpack.c.h.b16 %v415
    %v1023 = vunpack.c.l.b16 %v416
    %v1024 = vunpack.c.h.b16 %v416
    %v1025 = vunpack.c.l.b16 %v417
    %v1026 = vunpack.c.h.b16 %v417
    %v1027 = vunpack.c.l.b16 %v418
    %v1028 = vunpack.c.h.b16 %v418
    %v1029 = vpack.c.b16 %v641, %v637
    %v1030 = vpack.c.b16 %v642, %v638
    %v1031 = vpack.c.b16 %v643, %v639
    %v1032 = vpack.c.b16 %v644, %v640
    %v1033 = vpack.c.b16 %v649, %v645
    %v1034 = vpack.c.b16 %v650, %v646
    %v1035 = vpack.c.b16 %v651, %v647
    %v1036 = vpack.c.b16 %v652, %v648
    %v1037 = vpack.c.b16 %v657, %v653
    %v1038 = vpack.c.b16 %v658, %v654
    %v1039 = vpack.c.b16 %v659, %v655
    %v1040 = vpack.c.b16 %v660, %v656
    %v1041 = vpack.c.b16 %v665, %v661
    %v1042 = vpack.c.b16 %v666, %v662
    %v1043 = vpack.c.b16 %v667, %v663
    %v1044 = vpack.c.b16 %v668, %v664
    %v1045 = vpack.c.b16 %v673, %v669
    %v1046 = vpack.c.b16 %v674, %v670
    %v1047 = vpack.c.b16 %v675, %v671
    %v1048 = vpack.c.b16 %v676, %v672
    %v1049 = vpack.c.b16 %v681, %v677
    %v1050 = vpack.c.b16 %v682, %v678
    %v1051 = vpack.c.b16 %v683, %v679
    %v1052 = vpack.c.b16 %v684, %v680
    %v1053 = vpack.c.b16 %v689, %v685
    %v1054 = vpack.c.b16 %v690, %v686
    %v1055 = vpack.c.b16 %v691, %v687
    %v1056 = vpack.c.b16 %v692, %v688
    %v1057 = vpack.c.b16 %v697, %v693
    %v1058 = vpack.c.b16 %v698, %v694
    %v1059 = vpack.c.b16 %v699, %v695
    %v1060 = vpack.c.b16 %v700, %v696
    %v1061 = vpack.c.b16 %v705, %v701
    %v1062 = vpack.c.b16 %v706, %v702
    %v1063 = vpack.c.b16 %v707, %v703
    %v1064 = vpack.c.b16 %v708, %v704
    %v1065 = vpack.c.b16 %v713, %v709
    %v1066 = vpack.c.b16 %v714, %v710
    %v1067 = vpack.c.b16 %v715, %v711
    %v1068 = vpack.c.b16 %v716, %v712
    %v1069 = vpack.c.b16 %v721, %v717
    %v1070 = vpack.c.b16 %v722, %v718
    %v1071 = vpack.c.b16 %v723, %v719
    %v1072 = vpack.c.b16 %v724, %v720
    %v1073 = vpack.c.b16 %v729, %v725
    %v1074 = vpack.c.b16 %v730, %v726
    %v1075 = vpack.c.b16 %v731, %v727
    %v1076 = vpack.c.b16 %v732, %v728
    %v1077 = vpack.c.b16 %v737, %v733
    %v1078 = vpack.c.b16 %v738, %v734
    %v1079 = vpack.c.b16 %v739, %v735
    %v1080 = vpack.c.b16 %v740, %v736
    %v1081 = vpack.c.b16 %v745, %v741
    %v1082 = vpack.c.b16 %v746, %v742
    %v1083 = vpack.c.b16 %v747, %v743
    %v1084 = vpack.c.b16 %v748, %v744
    %v1085 = vpack.c.b16 %v753, %v749
    %v1086 = vpack.c.b16 %v754, %v750
    %v1087 = vpack.c.b16 %v755, %v751
    %v1088 = vpack.c.b16 %v756, %v752
    %v1089 = vpack.c.b16 %v761, %v757
    %v1090 = vpack.c.b16 %v762, %v758
    %v1091 = vpack.c.b16 %v763, %v759
    %v1092 = vpack.c.b16 %v764, %v760
    %v1093 = vpack.c.b16 %v769, %v765
    %v1094 = vpack.c.b16 %v770, %v766
    %v1095 = vpack.c.b16 %v771, %v767
    %v1096 = vpack.c.b16 %v772, %v768
    %v1097 = vpack.c.b16 %v777, %v773
    %v1098 = vpack.c.b16 %v778, %v774
    %v1099 = vpack.c.b16 %v779, %v775
    %v1100 = vpack.c.b16 %v780, %v776
    %v1101 = vpack.c.b16 %v785, %v781
    %v1102 = vpack.c.b16 %v786, %v782
    %v1103 = vpack.c.b16 %v787, %v783
    %v1104 = vpack.c.b16 %v788, %v784
    %v1105 = vpack.c.b16 %v793, %v789
    %v1106 = vpack.c.b16 %v794, %v790
    %v1107 = vpack.c.b16 %v795, %v791
    %v1108 = vpack.c.b16 %v796, %v792
    %v1109 = vpack.c.b16 %v801, %v797
    %v1110 = vpack.c.b16 %v802, %v798
    %v1111 = vpack.c.b16 %v803, %v799
    %v1112 = vpack.c.b16 %v804, %v800
    %v1113 = vpack.c.b16 %v809, %v805
    %v1114 = vpack.c.b16 %v810, %v806
    %v1115 = vpack.c.b16 %v811, %v807
    %v1116 = vpack.c.b16 %v812, %v808
    %v1117 = vpack.c.b16 %v817, %v813
    %v1118 = vpack.c.b16 %v818, %v814
    %v1119 = vpack.c.b16 %v819, %v815
    %v1120 = vpack.c.b16 %v820, %v816
    %v1121 = vpack.c.b16 %v825, %v821
    %v1122 = vpack.c.b16 %v826, %v822
    %v1123 = vpack.c.b16 %v827, %v823
    %v1124 = vpack.c.b16 %v828, %v824
    %v1125 = vpack.c.b16 %v833, %v829
    %v1126 = vpack.c.b16 %v834, %v830
    %v1127 = vpack.c.b16 %v835, %v831
    %v1128 = vpack.c.b16 %v836, %v832
    %v1129 = vpack.c.b16 %v841, %v837
    %v1130 = vpack.c.b16 %v842, %v838
    %v1131 = vpack.c.b16 %v843, %v839
    %v1132 = vpack.c.b16 %v844, %v840
    %v1133 = vpack.c.b16 %v849, %v845
    %v1134 = vpack.c.b16 %v850, %v846
    %v1135 = vpack.c.b16 %v851, %v847
    %v1136 = vpack.c.b16 %v852, %v848
    %v1137 = vpack.c.b16 %v857, %v853
    %v1138 = vpack.c.b16 %v858, %v854
    %v1139 = vpack.c.b16 %v859, %v855
    %v1140 = vpack.c.b16 %v860, %v856
    %v1141 = vpack.c.b16 %v865, %v861
    %v1142 = vpack.c.b16 %v866, %v862
    %v1143 = vpack.c.b16 %v867, %v863
    %v1144 = vpack.c.b16 %v868, %v864
    %v1145 = vpack.c.b16 %v873, %v869
    %v1146 = vpack.c.b16 %v874, %v870
    %v1147 = vpack.c.b16 %v875, %v871
    %v1148 = vpack.c.b16 %v876, %v872
    %v1149 = vpack.c.b16 %v881, %v877
    %v1150 = vpack.c.b16 %v882, %v878
    %v1151 = vpack.c.b16 %v883, %v879
    %v1152 = vpack.c.b16 %v884, %v880
    %v1153 = vpack.c.b16 %v889, %v885
    %v1154 = vpack.c.b16 %v890, %v886
    %v1155 = vpack.c.b16 %v891, %v887
    %v1156 = vpack.c.b16 %v892, %v888
    %v1157 = vpack.c.b16 %v897, %v893
    %v1158 = vpack.c.b16 %v898, %v894
    %v1159 = vpack.c.b16 %v899, %v895
    %v1160 = vpack.c.b16 %v900, %v896
    %v1161 = vpack.c.b16 %v905, %v901
    %v1162 = vpack.c.b16 %v906, %v902
    %v1163 = vpack.c.b16 %v907, %v903
    %v1164 = vpack.c.b16 %v908, %v904
    %v1165 = vpack.c.b16 %v913, %v909
    %v1166 = vpack.c.b16 %v914, %v910
    %v1167 = vpack.c.b16 %v915, %v911
    %v1168 = vpack.c.b16 %v916, %v912
    %v1169 = vpack.c.b16 %v921, %v917
    %v1170 = vpack.c.b16 %v922, %v918
    %v1171 = vpack.c.b16 %v923, %v919
    %v1172 = vpack.c.b16 %v924, %v920
    %v1173 = vpack.c.b16 %v929, %v925
    %v1174 = vpack.c.b16 %v930, %v926
    %v1175 = vpack.c.b16 %v931, %v927
    %v1176 = vpack.c.b16 %v932, %v928
    %v1177 = vpack.c.b16 %v937, %v933
    %v1178 = vpack.c.b16 %v938, %v934
    %v1179 = vpack.c.b16 %v939, %v935
    %v1180 = vpack.c.b16 %v940, %v936
    %v1181 = vpack.c.b16 %v945, %v941
    %v1182 = vpack.c.b16 %v946, %v942
    %v1183 = vpack.c.b16 %v947, %v943
    %v1184 = vpack.c.b16 %v948, %v944
    %v1185 = vpack.c.b16 %v953, %v949
    %v1186 = vpack.c.b16 %v954, %v950
    %v1187 = vpack.c.b16 %v955, %v951
    %v1188 = vpack.c.b16 %v956, %v952
    %v1189 = vpack.c.b16 %v961, %v957
    %v1190 = vpack.c.b16 %v962, %v958
    %v1191 = vpack.c.b16 %v963, %v959
    %v1192 = vpack.c.b16 %v964, %v960
    %v1193 = vpack.c.b16 %v969, %v965
    %v1194 = vpack.c.b16 %v970, %v966
    %v1195 = vpack.c.b16 %v971, %v967
    %v1196 = vpack.c.b16 %v972, %v968
    %v1197 = vpack.c.b16 %v977, %v973
    %v1198 = vpack.c.b16 %v978, %v974
    %v1199 = vpack.c.b16 %v979, %v975
    %v1200 = vpack.c.b16 %v980, %v976
    %v1201 = vpack.c.b16 %v985, %v981
    %v1202 = vpack.c.b16 %v986, %v982
    %v1203 = vpack.c.b16 %v987, %v983
    %v1204 = vpack.c.b16 %v988, %v984
    %v1205 = vpack.c.b16 %v993, %v989
    %v1206 = vpack.c.b16 %v994, %v990
    %v1207 = vpack.c.b16 %v995, %v991
    %v1208 = vpack.c.b16 %v996, %v992
    %v1209 = vpack.c.b16 %v1001, %v997
    %v1210 = vpack.c.b16 %v1002, %v998
    %v1211 = vpack.c.b16 %v1003, %v999
    %v1212 = vpack.c.b16 %v1004, %v1000
    %v1213 = vpack.c.b16 %v1009, %v1005
    %v1214 = vpack.c.b16 %v1010, %v1006
    %v1215 = vpack.c.b16 %v1011, %v1007
    %v1216 = vpack.c.b16 %v1012, %v1008
    %v1217 = vpack.c.b16 %v1017, %v1013
    %v1218 = vpack.c.b16 %v1018, %v1014
    %v1219 = vpack.c.b16 %v1019, %v1015
    %v1220 = vpack.c.b16 %v1020, %v1016
    %v1221 = vpack.c.b16 %v1025, %v1021
    %v1222 = vpack.c.b16 %v1026, %v1022
    %v1223 = vpack.c.b16 %v1027, %v1023
    %v1224 = vpack.c.b16 %v1028, %v1024
    %vm1421 = vcmask 130048
    %v1423 = vsel %vm1421, %v173, 0
    %v1426 = vsel %vm1421, %v180, 0
    %v1429 = vsel %vm1421, %v187, 0
    %v1432 = vsel %vm1421, %v194, 0
    %v1435 = vsel %vm1421, %v201, 0
    %v1438 = vsel %vm1421, %v208, 0
    %v1441 = vsel %vm1421, %v215, 0
    %v1444 = vsel %vm1421, %v222, 0
    %1446 = vmatprep.subr.bf16.mxu0 %v1058
    %1447 = vmatpush1.bf16.msra.mxu0 %v1057
    %1448 = vmatprep.subr.bf16.mxu0 %v1054
    %1449 = vmatpush1.bf16.msra.mxu0 %v1053
    %1450 = vmatprep.subr.bf16.mxu0 %v1050
    %1451 = vmatpush1.bf16.msra.mxu0 %v1049
    %1452 = vmatprep.subr.bf16.mxu0 %v1046
    %1453 = vmatpush1.bf16.msra.mxu0 %v1045
    %1454 = vmatprep.subr.bf16.mxu0 %v1042
    %1455 = vmatpush1.bf16.msra.mxu0 %v1041
    %1456 = vmatprep.subr.bf16.mxu0 %v1038
    %1457 = vmatpush1.bf16.msra.mxu0 %v1037
    %1458 = vmatprep.subr.bf16.mxu0 %v1034
    %1459 = vmatpush1.bf16.msra.mxu0 %v1033
    %1460 = vmatprep.subr.bf16.mxu0 %v1030
    %1461 = vmatpush1.bf16.msra.mxu0 %v1029
    %1462 = vmatprep.subr.bf16.mxu0 %v1090
    %1463 = vmatpush2.bf16.msra.mxu0 %v1089
    %1464 = vmatprep.subr.bf16.mxu0 %v1086
    %1465 = vmatpush2.bf16.msra.mxu0 %v1085
    %1466 = vmatprep.subr.bf16.mxu0 %v1082
    %1467 = vmatpush2.bf16.msra.mxu0 %v1081
    %1468 = vmatprep.subr.bf16.mxu0 %v1078
    %1469 = vmatpush2.bf16.msra.mxu0 %v1077
    %1470 = vmatprep.subr.bf16.mxu0 %v1074
    %1471 = vmatpush2.bf16.msra.mxu0 %v1073
    %1472 = vmatprep.subr.bf16.mxu0 %v1070
    %1473 = vmatpush2.bf16.msra.mxu0 %v1069
    %1474 = vmatprep.subr.bf16.mxu0 %v1066
    %1475 = vmatpush2.bf16.msra.mxu0 %v1065
    %1476 = vmatprep.subr.bf16.mxu0 %v1062
    %1477 = vmatpush2.bf16.msra.mxu0 %v1061
    %1478 = vmatprep.mubr.bf16.mxu0 %v168
    %1479 = vmatmul.mubr.bf16.gmra.mxu0 %v167
    %v1480 = vpop.f32.mrf.mxu0
    %v1481 = vadd.f32 %v424, %v1480
    %v1482 = vpop.f32.mrf.mxu0
    %v1483 = vadd.f32 %v428, %v1482
    %v1484 = vpop.f32.mrf.mxu0
    %v1485 = vadd.f32 %v424, %v1484
    %v1486 = vpop.f32.mrf.mxu0
    %v1487 = vadd.f32 %v428, %v1486
    %1488 = vmatprep.mubr.bf16.mxu0 %v175
    %1489 = vmatmul.mubr.bf16.gmra.mxu0 %v174
    %v1490 = vpop.f32.mrf.mxu0
    %v1491 = vadd.f32 %v424, %v1490
    %v1492 = vpop.f32.mrf.mxu0
    %v1493 = vadd.f32 %v428, %v1492
    %v1494 = vpop.f32.mrf.mxu0
    %v1495 = vadd.f32 %v424, %v1494
    %v1496 = vpop.f32.mrf.mxu0
    %v1497 = vadd.f32 %v428, %v1496
    %1498 = vmatprep.mubr.bf16.mxu0 %v182
    %1499 = vmatmul.mubr.bf16.gmra.mxu0 %v181
    %v1500 = vpop.f32.mrf.mxu0
    %v1501 = vadd.f32 %v424, %v1500
    %v1502 = vpop.f32.mrf.mxu0
    %v1503 = vadd.f32 %v428, %v1502
    %v1504 = vpop.f32.mrf.mxu0
    %v1505 = vadd.f32 %v424, %v1504
    %v1506 = vpop.f32.mrf.mxu0
    %v1507 = vadd.f32 %v428, %v1506
    %1508 = vmatprep.mubr.bf16.mxu0 %v189
    %1509 = vmatmul.mubr.bf16.gmra.mxu0 %v188
    %v1510 = vpop.f32.mrf.mxu0
    %v1511 = vadd.f32 %v424, %v1510
    %v1512 = vpop.f32.mrf.mxu0
    %v1513 = vadd.f32 %v428, %v1512
    %v1514 = vpop.f32.mrf.mxu0
    %v1515 = vadd.f32 %v424, %v1514
    %v1516 = vpop.f32.mrf.mxu0
    %v1517 = vadd.f32 %v428, %v1516
    %1518 = vmatprep.mubr.bf16.mxu0 %v196
    %1519 = vmatmul.mubr.bf16.gmra.mxu0 %v195
    %v1520 = vpop.f32.mrf.mxu0
    %v1521 = vadd.f32 %v424, %v1520
    %v1522 = vpop.f32.mrf.mxu0
    %v1523 = vadd.f32 %v428, %v1522
    %v1524 = vpop.f32.mrf.mxu0
    %v1525 = vadd.f32 %v424, %v1524
    %v1526 = vpop.f32.mrf.mxu0
    %v1527 = vadd.f32 %v428, %v1526
    %1528 = vmatprep.mubr.bf16.mxu0 %v203
    %1529 = vmatmul.mubr.bf16.gmra.mxu0 %v202
    %v1530 = vpop.f32.mrf.mxu0
    %v1531 = vadd.f32 %v424, %v1530
    %v1532 = vpop.f32.mrf.mxu0
    %v1533 = vadd.f32 %v428, %v1532
    %v1534 = vpop.f32.mrf.mxu0
    %v1535 = vadd.f32 %v424, %v1534
    %v1536 = vpop.f32.mrf.mxu0
    %v1537 = vadd.f32 %v428, %v1536
    %1538 = vmatprep.mubr.bf16.mxu0 %v210
    %1539 = vmatmul.mubr.bf16.gmra.mxu0 %v209
    %v1540 = vpop.f32.mrf.mxu0
    %v1541 = vadd.f32 %v424, %v1540
    %v1542 = vpop.f32.mrf.mxu0
    %v1543 = vadd.f32 %v428, %v1542
    %v1544 = vpop.f32.mrf.mxu0
    %v1545 = vadd.f32 %v424, %v1544
    %v1546 = vpop.f32.mrf.mxu0
    %v1547 = vadd.f32 %v428, %v1546
    %1548 = vmatprep.mubr.bf16.mxu0 %v217
    %1549 = vmatmul.mubr.bf16.gmra.mxu0 %v216
    %v1550 = vpop.f32.mrf.mxu0
    %v1551 = vadd.f32 %v424, %v1550
    %v1552 = vpop.f32.mrf.mxu0
    %v1553 = vadd.f32 %v428, %v1552
    %v1554 = vpop.f32.mrf.mxu0
    %v1555 = vadd.f32 %v424, %v1554
    %v1556 = vpop.f32.mrf.mxu0
    %v1557 = vadd.f32 %v428, %v1556
    %1558 = vdwg.mxu0
    %1559 = vmatprep.subr.bf16.mxu0 %v1122
    %1560 = vmatpush1.bf16.msra.mxu0 %v1121
    %1561 = vmatprep.subr.bf16.mxu0 %v1118
    %1562 = vmatpush1.bf16.msra.mxu0 %v1117
    %1563 = vmatprep.subr.bf16.mxu0 %v1114
    %1564 = vmatpush1.bf16.msra.mxu0 %v1113
    %1565 = vmatprep.subr.bf16.mxu0 %v1110
    %1566 = vmatpush1.bf16.msra.mxu0 %v1109
    %1567 = vmatprep.subr.bf16.mxu0 %v1106
    %1568 = vmatpush1.bf16.msra.mxu0 %v1105
    %1569 = vmatprep.subr.bf16.mxu0 %v1102
    %1570 = vmatpush1.bf16.msra.mxu0 %v1101
    %1571 = vmatprep.subr.bf16.mxu0 %v1098
    %1572 = vmatpush1.bf16.msra.mxu0 %v1097
    %1573 = vmatprep.subr.bf16.mxu0 %v1094
    %1574 = vmatpush1.bf16.msra.mxu0 %v1093
    %1575 = vmatprep.subr.bf16.mxu0 %v1154
    %1576 = vmatpush2.bf16.msra.mxu0 %v1153
    %1577 = vmatprep.subr.bf16.mxu0 %v1150
    %1578 = vmatpush2.bf16.msra.mxu0 %v1149
    %1579 = vmatprep.subr.bf16.mxu0 %v1146
    %1580 = vmatpush2.bf16.msra.mxu0 %v1145
    %1581 = vmatprep.subr.bf16.mxu0 %v1142
    %1582 = vmatpush2.bf16.msra.mxu0 %v1141
    %1583 = vmatprep.subr.bf16.mxu0 %v1138
    %1584 = vmatpush2.bf16.msra.mxu0 %v1137
    %1585 = vmatprep.subr.bf16.mxu0 %v1134
    %1586 = vmatpush2.bf16.msra.mxu0 %v1133
    %1587 = vmatprep.subr.bf16.mxu0 %v1130
    %1588 = vmatpush2.bf16.msra.mxu0 %v1129
    %1589 = vmatprep.subr.bf16.mxu0 %v1126
    %1590 = vmatpush2.bf16.msra.mxu0 %v1125
    %1591 = vmatprep.mubr.bf16.mxu0 %v170
    %1592 = vmatmul.mubr.bf16.gmra.mxu0 %v169
    %v1593 = vpop.f32.mrf.mxu0
    %v1594 = vadd.f32 %v1481, %v1593
    %v1595 = vpop.f32.mrf.mxu0
    %v1596 = vadd.f32 %v1483, %v1595
    %v1597 = vpop.f32.mrf.mxu0
    %v1598 = vadd.f32 %v1485, %v1597
    %v1599 = vpop.f32.mrf.mxu0
    %v1600 = vadd.f32 %v1487, %v1599
    %1601 = vmatprep.mubr.bf16.mxu0 %v177
    %1602 = vmatmul.mubr.bf16.gmra.mxu0 %v176
    %v1603 = vpop.f32.mrf.mxu0
    %v1604 = vadd.f32 %v1491, %v1603
    %v1605 = vpop.f32.mrf.mxu0
    %v1606 = vadd.f32 %v1493, %v1605
    %v1607 = vpop.f32.mrf.mxu0
    %v1608 = vadd.f32 %v1495, %v1607
    %v1609 = vpop.f32.mrf.mxu0
    %v1610 = vadd.f32 %v1497, %v1609
    %1611 = vmatprep.mubr.bf16.mxu0 %v184
    %1612 = vmatmul.mubr.bf16.gmra.mxu0 %v183
    %v1613 = vpop.f32.mrf.mxu0
    %v1614 = vadd.f32 %v1501, %v1613
    %v1615 = vpop.f32.mrf.mxu0
    %v1616 = vadd.f32 %v1503, %v1615
    %v1617 = vpop.f32.mrf.mxu0
    %v1618 = vadd.f32 %v1505, %v1617
    %v1619 = vpop.f32.mrf.mxu0
    %v1620 = vadd.f32 %v1507, %v1619
    %1621 = vmatprep.mubr.bf16.mxu0 %v191
    %1622 = vmatmul.mubr.bf16.gmra.mxu0 %v190
    %v1623 = vpop.f32.mrf.mxu0
    %v1624 = vadd.f32 %v1511, %v1623
    %v1625 = vpop.f32.mrf.mxu0
    %v1626 = vadd.f32 %v1513, %v1625
    %v1627 = vpop.f32.mrf.mxu0
    %v1628 = vadd.f32 %v1515, %v1627
    %v1629 = vpop.f32.mrf.mxu0
    %v1630 = vadd.f32 %v1517, %v1629
    %1631 = vmatprep.mubr.bf16.mxu0 %v198
    %1632 = vmatmul.mubr.bf16.gmra.mxu0 %v197
    %v1633 = vpop.f32.mrf.mxu0
    %v1634 = vadd.f32 %v1521, %v1633
    %v1635 = vpop.f32.mrf.mxu0
    %v1636 = vadd.f32 %v1523, %v1635
    %v1637 = vpop.f32.mrf.mxu0
    %v1638 = vadd.f32 %v1525, %v1637
    %v1639 = vpop.f32.mrf.mxu0
    %v1640 = vadd.f32 %v1527, %v1639
    %1641 = vmatprep.mubr.bf16.mxu0 %v205
    %1642 = vmatmul.mubr.bf16.gmra.mxu0 %v204
    %v1643 = vpop.f32.mrf.mxu0
    %v1644 = vadd.f32 %v1531, %v1643
    %v1645 = vpop.f32.mrf.mxu0
    %v1646 = vadd.f32 %v1533, %v1645
    %v1647 = vpop.f32.mrf.mxu0
    %v1648 = vadd.f32 %v1535, %v1647
    %v1649 = vpop.f32.mrf.mxu0
    %v1650 = vadd.f32 %v1537, %v1649
    %1651 = vmatprep.mubr.bf16.mxu0 %v212
    %1652 = vmatmul.mubr.bf16.gmra.mxu0 %v211
    %v1653 = vpop.f32.mrf.mxu0
    %v1654 = vadd.f32 %v1541, %v1653
    %v1655 = vpop.f32.mrf.mxu0
    %v1656 = vadd.f32 %v1543, %v1655
    %v1657 = vpop.f32.mrf.mxu0
    %v1658 = vadd.f32 %v1545, %v1657
    %v1659 = vpop.f32.mrf.mxu0
    %v1660 = vadd.f32 %v1547, %v1659
    %1661 = vmatprep.mubr.bf16.mxu0 %v219
    %1662 = vmatmul.mubr.bf16.gmra.mxu0 %v218
    %v1663 = vpop.f32.mrf.mxu0
    %v1664 = vadd.f32 %v1551, %v1663
    %v1665 = vpop.f32.mrf.mxu0
    %v1666 = vadd.f32 %v1553, %v1665
    %v1667 = vpop.f32.mrf.mxu0
    %v1668 = vadd.f32 %v1555, %v1667
    %v1669 = vpop.f32.mrf.mxu0
    %v1670 = vadd.f32 %v1557, %v1669
    %1671 = vdwg.mxu0
    %1672 = vmatprep.subr.bf16.mxu0 %v1186
    %1673 = vmatpush1.bf16.msra.mxu0 %v1185
    %1674 = vmatprep.subr.bf16.mxu0 %v1182
    %1675 = vmatpush1.bf16.msra.mxu0 %v1181
    %1676 = vmatprep.subr.bf16.mxu0 %v1178
    %1677 = vmatpush1.bf16.msra.mxu0 %v1177
    %1678 = vmatprep.subr.bf16.mxu0 %v1174
    %1679 = vmatpush1.bf16.msra.mxu0 %v1173
    %1680 = vmatprep.subr.bf16.mxu0 %v1170
    %1681 = vmatpush1.bf16.msra.mxu0 %v1169
    %1682 = vmatprep.subr.bf16.mxu0 %v1166
    %1683 = vmatpush1.bf16.msra.mxu0 %v1165
    %1684 = vmatprep.subr.bf16.mxu0 %v1162
    %1685 = vmatpush1.bf16.msra.mxu0 %v1161
    %1686 = vmatprep.subr.bf16.mxu0 %v1158
    %1687 = vmatpush1.bf16.msra.mxu0 %v1157
    %1688 = vmatprep.subr.bf16.mxu0 %v1218
    %1689 = vmatpush2.bf16.msra.mxu0 %v1217
    %1690 = vmatprep.subr.bf16.mxu0 %v1214
    %1691 = vmatpush2.bf16.msra.mxu0 %v1213
    %1692 = vmatprep.subr.bf16.mxu0 %v1210
    %1693 = vmatpush2.bf16.msra.mxu0 %v1209
    %1694 = vmatprep.subr.bf16.mxu0 %v1206
    %1695 = vmatpush2.bf16.msra.mxu0 %v1205
    %1696 = vmatprep.subr.bf16.mxu0 %v1202
    %1697 = vmatpush2.bf16.msra.mxu0 %v1201
    %1698 = vmatprep.subr.bf16.mxu0 %v1198
    %1699 = vmatpush2.bf16.msra.mxu0 %v1197
    %1700 = vmatprep.subr.bf16.mxu0 %v1194
    %1701 = vmatpush2.bf16.msra.mxu0 %v1193
    %1702 = vmatprep.subr.bf16.mxu0 %v1190
    %1703 = vmatpush2.bf16.msra.mxu0 %v1189
    %1704 = vmatprep.mubr.bf16.mxu0 %v172
    %1705 = vmatmul.mubr.bf16.gmra.mxu0 %v171
    %v1706 = vpop.f32.mrf.mxu0
    %v1707 = vadd.f32 %v1594, %v1706
    %v1708 = vpop.f32.mrf.mxu0
    %v1709 = vadd.f32 %v1596, %v1708
    %v1710 = vpop.f32.mrf.mxu0
    %v1711 = vadd.f32 %v1598, %v1710
    %v1712 = vpop.f32.mrf.mxu0
    %v1713 = vadd.f32 %v1600, %v1712
    %1714 = vmatprep.mubr.bf16.mxu0 %v179
    %1715 = vmatmul.mubr.bf16.gmra.mxu0 %v178
    %v1716 = vpop.f32.mrf.mxu0
    %v1717 = vadd.f32 %v1604, %v1716
    %v1718 = vpop.f32.mrf.mxu0
    %v1719 = vadd.f32 %v1606, %v1718
    %v1720 = vpop.f32.mrf.mxu0
    %v1721 = vadd.f32 %v1608, %v1720
    %v1722 = vpop.f32.mrf.mxu0
    %v1723 = vadd.f32 %v1610, %v1722
    %1724 = vmatprep.mubr.bf16.mxu0 %v186
    %1725 = vmatmul.mubr.bf16.gmra.mxu0 %v185
    %v1726 = vpop.f32.mrf.mxu0
    %v1727 = vadd.f32 %v1614, %v1726
    %v1728 = vpop.f32.mrf.mxu0
    %v1729 = vadd.f32 %v1616, %v1728
    %v1730 = vpop.f32.mrf.mxu0
    %v1731 = vadd.f32 %v1618, %v1730
    %v1732 = vpop.f32.mrf.mxu0
    %v1733 = vadd.f32 %v1620, %v1732
    %1734 = vmatprep.mubr.bf16.mxu0 %v193
    %1735 = vmatmul.mubr.bf16.gmra.mxu0 %v192
    %v1736 = vpop.f32.mrf.mxu0
    %v1737 = vadd.f32 %v1624, %v1736
    %v1738 = vpop.f32.mrf.mxu0
    %v1739 = vadd.f32 %v1626, %v1738
    %v1740 = vpop.f32.mrf.mxu0
    %v1741 = vadd.f32 %v1628, %v1740
    %v1742 = vpop.f32.mrf.mxu0
    %v1743 = vadd.f32 %v1630, %v1742
    %1744 = vmatprep.mubr.bf16.mxu0 %v200
    %1745 = vmatmul.mubr.bf16.gmra.mxu0 %v199
    %v1746 = vpop.f32.mrf.mxu0
    %v1747 = vadd.f32 %v1634, %v1746
    %v1748 = vpop.f32.mrf.mxu0
    %v1749 = vadd.f32 %v1636, %v1748
    %v1750 = vpop.f32.mrf.mxu0
    %v1751 = vadd.f32 %v1638, %v1750
    %v1752 = vpop.f32.mrf.mxu0
    %v1753 = vadd.f32 %v1640, %v1752
    %1754 = vmatprep.mubr.bf16.mxu0 %v207
    %1755 = vmatmul.mubr.bf16.gmra.mxu0 %v206
    %v1756 = vpop.f32.mrf.mxu0
    %v1757 = vadd.f32 %v1644, %v1756
    %v1758 = vpop.f32.mrf.mxu0
    %v1759 = vadd.f32 %v1646, %v1758
    %v1760 = vpop.f32.mrf.mxu0
    %v1761 = vadd.f32 %v1648, %v1760
    %v1762 = vpop.f32.mrf.mxu0
    %v1763 = vadd.f32 %v1650, %v1762
    %1764 = vmatprep.mubr.bf16.mxu0 %v214
    %1765 = vmatmul.mubr.bf16.gmra.mxu0 %v213
    %v1766 = vpop.f32.mrf.mxu0
    %v1767 = vadd.f32 %v1654, %v1766
    %v1768 = vpop.f32.mrf.mxu0
    %v1769 = vadd.f32 %v1656, %v1768
    %v1770 = vpop.f32.mrf.mxu0
    %v1771 = vadd.f32 %v1658, %v1770
    %v1772 = vpop.f32.mrf.mxu0
    %v1773 = vadd.f32 %v1660, %v1772
    %1774 = vmatprep.mubr.bf16.mxu0 %v221
    %1775 = vmatmul.mubr.bf16.gmra.mxu0 %v220
    %v1776 = vpop.f32.mrf.mxu0
    %v1777 = vadd.f32 %v1664, %v1776
    %v1778 = vpop.f32.mrf.mxu0
    %v1779 = vadd.f32 %v1666, %v1778
    %v1780 = vpop.f32.mrf.mxu0
    %v1781 = vadd.f32 %v1668, %v1780
    %v1782 = vpop.f32.mrf.mxu0
    %v1783 = vadd.f32 %v1670, %v1782
    %1784 = vdwg.mxu0
    %1785 = vmatprep.subr.bf16.mxu0 0
    %1786 = vmatpush1.bf16.msra.mxu0 0
    %1787 = vmatprep.subr.bf16.mxu0 0
    %1788 = vmatpush1.bf16.msra.mxu0 0
    %1789 = vmatprep.subr.bf16.mxu0 0
    %1790 = vmatpush1.bf16.msra.mxu0 0
    %1791 = vmatprep.subr.bf16.mxu0 0
    %1792 = vmatpush1.bf16.msra.mxu0 0
    %1793 = vmatprep.subr.bf16.mxu0 0
    %1794 = vmatpush1.bf16.msra.mxu0 0
    %1795 = vmatprep.subr.bf16.mxu0 0
    %1796 = vmatpush1.bf16.msra.mxu0 0
    %1797 = vmatprep.subr.bf16.mxu0 0
    %1798 = vmatpush1.bf16.msra.mxu0 0
    %1799 = vmatprep.subr.bf16.mxu0 %v1222
    %1800 = vmatpush1.bf16.msra.mxu0 %v1221
    %1801 = vmatprep.subr.bf16.mxu0 0
    %1802 = vmatpush2.bf16.msra.mxu0 0
    %1803 = vmatprep.subr.bf16.mxu0 0
    %1804 = vmatpush2.bf16.msra.mxu0 0
    %1805 = vmatprep.subr.bf16.mxu0 0
    %1806 = vmatpush2.bf16.msra.mxu0 0
    %1807 = vmatprep.subr.bf16.mxu0 0
    %1808 = vmatpush2.bf16.msra.mxu0 0
    %1809 = vmatprep.subr.bf16.mxu0 0
    %1810 = vmatpush2.bf16.msra.mxu0 0
    %1811 = vmatprep.subr.bf16.mxu0 0
    %1812 = vmatpush2.bf16.msra.mxu0 0
    %1813 = vmatprep.subr.bf16.mxu0 0
    %1814 = vmatpush2.bf16.msra.mxu0 0
    %1815 = vmatprep.subr.bf16.mxu0 0
    %1816 = vmatpush2.bf16.msra.mxu0 0
    %1817 = vmatprep.mubr.bf16.mxu0 0
    %1818 = vmatmul.mubr.bf16.gmra.mxu0 %v1423
    %v1819 = vpop.f32.mrf.mxu0
    %v1820 = vadd.f32 %v1707, %v1819
    %v1821 = vpop.f32.mrf.mxu0
    %v1822 = vadd.f32 %v1709, %v1821
    %v1823 = vpop.f32.mrf.mxu0
    %v1824 = vadd.f32 %v1711, %v1823
    %v1825 = vpop.f32.mrf.mxu0
    %v1826 = vadd.f32 %v1713, %v1825
    %1827 = vmatprep.mubr.bf16.mxu0 0
    %1828 = vmatmul.mubr.bf16.gmra.mxu0 %v1426
    %v1829 = vpop.f32.mrf.mxu0
    %v1830 = vadd.f32 %v1717, %v1829
    %v1831 = vpop.f32.mrf.mxu0
    %v1832 = vadd.f32 %v1719, %v1831
    %v1833 = vpop.f32.mrf.mxu0
    %v1834 = vadd.f32 %v1721, %v1833
    %v1835 = vpop.f32.mrf.mxu0
    %v1836 = vadd.f32 %v1723, %v1835
    %1837 = vmatprep.mubr.bf16.mxu0 0
    %1838 = vmatmul.mubr.bf16.gmra.mxu0 %v1429
    %v1839 = vpop.f32.mrf.mxu0
    %v1840 = vadd.f32 %v1727, %v1839
    %v1841 = vpop.f32.mrf.mxu0
    %v1842 = vadd.f32 %v1729, %v1841
    %v1843 = vpop.f32.mrf.mxu0
    %v1844 = vadd.f32 %v1731, %v1843
    %v1845 = vpop.f32.mrf.mxu0
    %v1846 = vadd.f32 %v1733, %v1845
    %1847 = vmatprep.mubr.bf16.mxu0 0
    %1848 = vmatmul.mubr.bf16.gmra.mxu0 %v1432
    %v1849 = vpop.f32.mrf.mxu0
    %v1850 = vadd.f32 %v1737, %v1849
    %v1851 = vpop.f32.mrf.mxu0
    %v1852 = vadd.f32 %v1739, %v1851
    %v1853 = vpop.f32.mrf.mxu0
    %v1854 = vadd.f32 %v1741, %v1853
    %v1855 = vpop.f32.mrf.mxu0
    %v1856 = vadd.f32 %v1743, %v1855
    %1857 = vmatprep.mubr.bf16.mxu0 0
    %1858 = vmatmul.mubr.bf16.gmra.mxu0 %v1435
    %v1859 = vpop.f32.mrf.mxu0
    %v1860 = vadd.f32 %v1747, %v1859
    %v1861 = vpop.f32.mrf.mxu0
    %v1862 = vadd.f32 %v1749, %v1861
    %v1863 = vpop.f32.mrf.mxu0
    %v1864 = vadd.f32 %v1751, %v1863
    %v1865 = vpop.f32.mrf.mxu0
    %v1866 = vadd.f32 %v1753, %v1865
    %1867 = vmatprep.mubr.bf16.mxu0 0
    %1868 = vmatmul.mubr.bf16.gmra.mxu0 %v1438
    %v1869 = vpop.f32.mrf.mxu0
    %v1870 = vadd.f32 %v1757, %v1869
    %v1871 = vpop.f32.mrf.mxu0
    %v1872 = vadd.f32 %v1759, %v1871
    %v1873 = vpop.f32.mrf.mxu0
    %v1874 = vadd.f32 %v1761, %v1873
    %v1875 = vpop.f32.mrf.mxu0
    %v1876 = vadd.f32 %v1763, %v1875
    %1877 = vmatprep.mubr.bf16.mxu0 0
    %1878 = vmatmul.mubr.bf16.gmra.mxu0 %v1441
    %v1879 = vpop.f32.mrf.mxu0
    %v1880 = vadd.f32 %v1767, %v1879
    %v1881 = vpop.f32.mrf.mxu0
    %v1882 = vadd.f32 %v1769, %v1881
    %v1883 = vpop.f32.mrf.mxu0
    %v1884 = vadd.f32 %v1771, %v1883
    %v1885 = vpop.f32.mrf.mxu0
    %v1886 = vadd.f32 %v1773, %v1885
    %1887 = vmatprep.mubr.bf16.mxu0 0
    %1888 = vmatmul.mubr.bf16.gmra.mxu0 %v1444
    %v1889 = vpop.f32.mrf.mxu0
    %v1890 = vadd.f32 %v1777, %v1889
    %v1891 = vpop.f32.mrf.mxu0
    %v1892 = vadd.f32 %v1779, %v1891
    %v1893 = vpop.f32.mrf.mxu0
    %v1894 = vadd.f32 %v1781, %v1893
    %v1895 = vpop.f32.mrf.mxu0
    %v1896 = vadd.f32 %v1783, %v1895
    %1897 = vdwg.mxu0
    %1898 = vmatprep.subr.bf16.mxu0 %v1060
    %1899 = vmatpush1.bf16.msra.mxu0 %v1059
    %1900 = vmatprep.subr.bf16.mxu0 %v1056
    %1901 = vmatpush1.bf16.msra.mxu0 %v1055
    %1902 = vmatprep.subr.bf16.mxu0 %v1052
    %1903 = vmatpush1.bf16.msra.mxu0 %v1051
    %1904 = vmatprep.subr.bf16.mxu0 %v1048
    %1905 = vmatpush1.bf16.msra.mxu0 %v1047
    %1906 = vmatprep.subr.bf16.mxu0 %v1044
    %1907 = vmatpush1.bf16.msra.mxu0 %v1043
    %1908 = vmatprep.subr.bf16.mxu0 %v1040
    %1909 = vmatpush1.bf16.msra.mxu0 %v1039
    %1910 = vmatprep.subr.bf16.mxu0 %v1036
    %1911 = vmatpush1.bf16.msra.mxu0 %v1035
    %1912 = vmatprep.subr.bf16.mxu0 %v1032
    %1913 = vmatpush1.bf16.msra.mxu0 %v1031
    %1914 = vmatprep.subr.bf16.mxu0 %v1092
    %1915 = vmatpush2.bf16.msra.mxu0 %v1091
    %1916 = vmatprep.subr.bf16.mxu0 %v1088
    %1917 = vmatpush2.bf16.msra.mxu0 %v1087
    %1918 = vmatprep.subr.bf16.mxu0 %v1084
    %1919 = vmatpush2.bf16.msra.mxu0 %v1083
    %1920 = vmatprep.subr.bf16.mxu0 %v1080
    %1921 = vmatpush2.bf16.msra.mxu0 %v1079
    %1922 = vmatprep.subr.bf16.mxu0 %v1076
    %1923 = vmatpush2.bf16.msra.mxu0 %v1075
    %1924 = vmatprep.subr.bf16.mxu0 %v1072
    %1925 = vmatpush2.bf16.msra.mxu0 %v1071
    %1926 = vmatprep.subr.bf16.mxu0 %v1068
    %1927 = vmatpush2.bf16.msra.mxu0 %v1067
    %1928 = vmatprep.subr.bf16.mxu0 %v1064
    %1929 = vmatpush2.bf16.msra.mxu0 %v1063
    %1930 = vmatprep.mubr.bf16.mxu0 %v168
    %1931 = vmatmul.mubr.bf16.gmra.mxu0 %v167
    %v1932 = vpop.f32.mrf.mxu0
    %v1933 = vadd.f32 %v432, %v1932
    %v1934 = vpop.f32.mrf.mxu0
    %v1935 = vadd.f32 %v436, %v1934
    %v1936 = vpop.f32.mrf.mxu0
    %v1937 = vadd.f32 %v432, %v1936
    %v1938 = vpop.f32.mrf.mxu0
    %v1939 = vadd.f32 %v436, %v1938
    %1940 = vmatprep.mubr.bf16.mxu0 %v175
    %1941 = vmatmul.mubr.bf16.gmra.mxu0 %v174
    %v1942 = vpop.f32.mrf.mxu0
    %v1943 = vadd.f32 %v432, %v1942
    %v1944 = vpop.f32.mrf.mxu0
    %v1945 = vadd.f32 %v436, %v1944
    %v1946 = vpop.f32.mrf.mxu0
    %v1947 = vadd.f32 %v432, %v1946
    %v1948 = vpop.f32.mrf.mxu0
    %v1949 = vadd.f32 %v436, %v1948
    %1950 = vmatprep.mubr.bf16.mxu0 %v182
    %1951 = vmatmul.mubr.bf16.gmra.mxu0 %v181
    %v1952 = vpop.f32.mrf.mxu0
    %v1953 = vadd.f32 %v432, %v1952
    %v1954 = vpop.f32.mrf.mxu0
    %v1955 = vadd.f32 %v436, %v1954
    %v1956 = vpop.f32.mrf.mxu0
    %v1957 = vadd.f32 %v432, %v1956
    %v1958 = vpop.f32.mrf.mxu0
    %v1959 = vadd.f32 %v436, %v1958
    %1960 = vmatprep.mubr.bf16.mxu0 %v189
    %1961 = vmatmul.mubr.bf16.gmra.mxu0 %v188
    %v1962 = vpop.f32.mrf.mxu0
    %v1963 = vadd.f32 %v432, %v1962
    %v1964 = vpop.f32.mrf.mxu0
    %v1965 = vadd.f32 %v436, %v1964
    %v1966 = vpop.f32.mrf.mxu0
    %v1967 = vadd.f32 %v432, %v1966
    %v1968 = vpop.f32.mrf.mxu0
    %v1969 = vadd.f32 %v436, %v1968
    %1970 = vmatprep.mubr.bf16.mxu0 %v196
    %1971 = vmatmul.mubr.bf16.gmra.mxu0 %v195
    %v1972 = vpop.f32.mrf.mxu0
    %v1973 = vadd.f32 %v432, %v1972
    %v1974 = vpop.f32.mrf.mxu0
    %v1975 = vadd.f32 %v436, %v1974
    %v1976 = vpop.f32.mrf.mxu0
    %v1977 = vadd.f32 %v432, %v1976
    %v1978 = vpop.f32.mrf.mxu0
    %v1979 = vadd.f32 %v436, %v1978
    %1980 = vmatprep.mubr.bf16.mxu0 %v203
    %1981 = vmatmul.mubr.bf16.gmra.mxu0 %v202
    %v1982 = vpop.f32.mrf.mxu0
    %v1983 = vadd.f32 %v432, %v1982
    %v1984 = vpop.f32.mrf.mxu0
    %v1985 = vadd.f32 %v436, %v1984
    %v1986 = vpop.f32.mrf.mxu0
    %v1987 = vadd.f32 %v432, %v1986
    %v1988 = vpop.f32.mrf.mxu0
    %v1989 = vadd.f32 %v436, %v1988
    %1990 = vmatprep.mubr.bf16.mxu0 %v210
    %1991 = vmatmul.mubr.bf16.gmra.mxu0 %v209
    %v1992 = vpop.f32.mrf.mxu0
    %v1993 = vadd.f32 %v432, %v1992
    %v1994 = vpop.f32.mrf.mxu0
    %v1995 = vadd.f32 %v436, %v1994
    %v1996 = vpop.f32.mrf.mxu0
    %v1997 = vadd.f32 %v432, %v1996
    %v1998 = vpop.f32.mrf.mxu0
    %v1999 = vadd.f32 %v436, %v1998
    %2000 = vmatprep.mubr.bf16.mxu0 %v217
    %2001 = vmatmul.mubr.bf16.gmra.mxu0 %v216
    %v2002 = vpop.f32.mrf.mxu0
    %v2003 = vadd.f32 %v432, %v2002
    %v2004 = vpop.f32.mrf.mxu0
    %v2005 = vadd.f32 %v436, %v2004
    %v2006 = vpop.f32.mrf.mxu0
    %v2007 = vadd.f32 %v432, %v2006
    %v2008 = vpop.f32.mrf.mxu0
    %v2009 = vadd.f32 %v436, %v2008
    %2010 = vdwg.mxu0
    %2011 = vmatprep.subr.bf16.mxu0 %v1124
    %2012 = vmatpush1.bf16.msra.mxu0 %v1123
    %2013 = vmatprep.subr.bf16.mxu0 %v1120
    %2014 = vmatpush1.bf16.msra.mxu0 %v1119
    %2015 = vmatprep.subr.bf16.mxu0 %v1116
    %2016 = vmatpush1.bf16.msra.mxu0 %v1115
    %2017 = vmatprep.subr.bf16.mxu0 %v1112
    %2018 = vmatpush1.bf16.msra.mxu0 %v1111
    %2019 = vmatprep.subr.bf16.mxu0 %v1108
    %2020 = vmatpush1.bf16.msra.mxu0 %v1107
    %2021 = vmatprep.subr.bf16.mxu0 %v1104
    %2022 = vmatpush1.bf16.msra.mxu0 %v1103
    %2023 = vmatprep.subr.bf16.mxu0 %v1100
    %2024 = vmatpush1.bf16.msra.mxu0 %v1099
    %2025 = vmatprep.subr.bf16.mxu0 %v1096
    %2026 = vmatpush1.bf16.msra.mxu0 %v1095
    %2027 = vmatprep.subr.bf16.mxu0 %v1156
    %2028 = vmatpush2.bf16.msra.mxu0 %v1155
    %2029 = vmatprep.subr.bf16.mxu0 %v1152
    %2030 = vmatpush2.bf16.msra.mxu0 %v1151
    %2031 = vmatprep.subr.bf16.mxu0 %v1148
    %2032 = vmatpush2.bf16.msra.mxu0 %v1147
    %2033 = vmatprep.subr.bf16.mxu0 %v1144
    %2034 = vmatpush2.bf16.msra.mxu0 %v1143
    %2035 = vmatprep.subr.bf16.mxu0 %v1140
    %2036 = vmatpush2.bf16.msra.mxu0 %v1139
    %2037 = vmatprep.subr.bf16.mxu0 %v1136
    %2038 = vmatpush2.bf16.msra.mxu0 %v1135
    %2039 = vmatprep.subr.bf16.mxu0 %v1132
    %2040 = vmatpush2.bf16.msra.mxu0 %v1131
    %2041 = vmatprep.subr.bf16.mxu0 %v1128
    %2042 = vmatpush2.bf16.msra.mxu0 %v1127
    %2043 = vmatprep.mubr.bf16.mxu0 %v170
    %2044 = vmatmul.mubr.bf16.gmra.mxu0 %v169
    %v2045 = vpop.f32.mrf.mxu0
    %v2046 = vadd.f32 %v1933, %v2045
    %v2047 = vpop.f32.mrf.mxu0
    %v2048 = vadd.f32 %v1935, %v2047
    %v2049 = vpop.f32.mrf.mxu0
    %v2050 = vadd.f32 %v1937, %v2049
    %v2051 = vpop.f32.mrf.mxu0
    %v2052 = vadd.f32 %v1939, %v2051
    %2053 = vmatprep.mubr.bf16.mxu0 %v177
    %2054 = vmatmul.mubr.bf16.gmra.mxu0 %v176
    %v2055 = vpop.f32.mrf.mxu0
    %v2056 = vadd.f32 %v1943, %v2055
    %v2057 = vpop.f32.mrf.mxu0
    %v2058 = vadd.f32 %v1945, %v2057
    %v2059 = vpop.f32.mrf.mxu0
    %v2060 = vadd.f32 %v1947, %v2059
    %v2061 = vpop.f32.mrf.mxu0
    %v2062 = vadd.f32 %v1949, %v2061
    %2063 = vmatprep.mubr.bf16.mxu0 %v184
    %2064 = vmatmul.mubr.bf16.gmra.mxu0 %v183
    %v2065 = vpop.f32.mrf.mxu0
    %v2066 = vadd.f32 %v1953, %v2065
    %v2067 = vpop.f32.mrf.mxu0
    %v2068 = vadd.f32 %v1955, %v2067
    %v2069 = vpop.f32.mrf.mxu0
    %v2070 = vadd.f32 %v1957, %v2069
    %v2071 = vpop.f32.mrf.mxu0
    %v2072 = vadd.f32 %v1959, %v2071
    %2073 = vmatprep.mubr.bf16.mxu0 %v191
    %2074 = vmatmul.mubr.bf16.gmra.mxu0 %v190
    %v2075 = vpop.f32.mrf.mxu0
    %v2076 = vadd.f32 %v1963, %v2075
    %v2077 = vpop.f32.mrf.mxu0
    %v2078 = vadd.f32 %v1965, %v2077
    %v2079 = vpop.f32.mrf.mxu0
    %v2080 = vadd.f32 %v1967, %v2079
    %v2081 = vpop.f32.mrf.mxu0
    %v2082 = vadd.f32 %v1969, %v2081
    %2083 = vmatprep.mubr.bf16.mxu0 %v198
    %2084 = vmatmul.mubr.bf16.gmra.mxu0 %v197
    %v2085 = vpop.f32.mrf.mxu0
    %v2086 = vadd.f32 %v1973, %v2085
    %v2087 = vpop.f32.mrf.mxu0
    %v2088 = vadd.f32 %v1975, %v2087
    %v2089 = vpop.f32.mrf.mxu0
    %v2090 = vadd.f32 %v1977, %v2089
    %v2091 = vpop.f32.mrf.mxu0
    %v2092 = vadd.f32 %v1979, %v2091
    %2093 = vmatprep.mubr.bf16.mxu0 %v205
    %2094 = vmatmul.mubr.bf16.gmra.mxu0 %v204
    %v2095 = vpop.f32.mrf.mxu0
    %v2096 = vadd.f32 %v1983, %v2095
    %v2097 = vpop.f32.mrf.mxu0
    %v2098 = vadd.f32 %v1985, %v2097
    %v2099 = vpop.f32.mrf.mxu0
    %v2100 = vadd.f32 %v1987, %v2099
    %v2101 = vpop.f32.mrf.mxu0
    %v2102 = vadd.f32 %v1989, %v2101
    %2103 = vmatprep.mubr.bf16.mxu0 %v212
    %2104 = vmatmul.mubr.bf16.gmra.mxu0 %v211
    %v2105 = vpop.f32.mrf.mxu0
    %v2106 = vadd.f32 %v1993, %v2105
    %v2107 = vpop.f32.mrf.mxu0
    %v2108 = vadd.f32 %v1995, %v2107
    %v2109 = vpop.f32.mrf.mxu0
    %v2110 = vadd.f32 %v1997, %v2109
    %v2111 = vpop.f32.mrf.mxu0
    %v2112 = vadd.f32 %v1999, %v2111
    %2113 = vmatprep.mubr.bf16.mxu0 %v219
    %2114 = vmatmul.mubr.bf16.gmra.mxu0 %v218
    %v2115 = vpop.f32.mrf.mxu0
    %v2116 = vadd.f32 %v2003, %v2115
    %v2117 = vpop.f32.mrf.mxu0
    %v2118 = vadd.f32 %v2005, %v2117
    %v2119 = vpop.f32.mrf.mxu0
    %v2120 = vadd.f32 %v2007, %v2119
    %v2121 = vpop.f32.mrf.mxu0
    %v2122 = vadd.f32 %v2009, %v2121
    %2123 = vdwg.mxu0
    %2124 = vmatprep.subr.bf16.mxu0 %v1188
    %2125 = vmatpush1.bf16.msra.mxu0 %v1187
    %2126 = vmatprep.subr.bf16.mxu0 %v1184
    %2127 = vmatpush1.bf16.msra.mxu0 %v1183
    %2128 = vmatprep.subr.bf16.mxu0 %v1180
    %2129 = vmatpush1.bf16.msra.mxu0 %v1179
    %2130 = vmatprep.subr.bf16.mxu0 %v1176
    %2131 = vmatpush1.bf16.msra.mxu0 %v1175
    %2132 = vmatprep.subr.bf16.mxu0 %v1172
    %2133 = vmatpush1.bf16.msra.mxu0 %v1171
    %2134 = vmatprep.subr.bf16.mxu0 %v1168
    %2135 = vmatpush1.bf16.msra.mxu0 %v1167
    %2136 = vmatprep.subr.bf16.mxu0 %v1164
    %2137 = vmatpush1.bf16.msra.mxu0 %v1163
    %2138 = vmatprep.subr.bf16.mxu0 %v1160
    %2139 = vmatpush1.bf16.msra.mxu0 %v1159
    %2140 = vmatprep.subr.bf16.mxu0 %v1220
    %2141 = vmatpush2.bf16.msra.mxu0 %v1219
    %2142 = vmatprep.subr.bf16.mxu0 %v1216
    %2143 = vmatpush2.bf16.msra.mxu0 %v1215
    %2144 = vmatprep.subr.bf16.mxu0 %v1212
    %2145 = vmatpush2.bf16.msra.mxu0 %v1211
    %2146 = vmatprep.subr.bf16.mxu0 %v1208
    %2147 = vmatpush2.bf16.msra.mxu0 %v1207
    %2148 = vmatprep.subr.bf16.mxu0 %v1204
    %2149 = vmatpush2.bf16.msra.mxu0 %v1203
    %2150 = vmatprep.subr.bf16.mxu0 %v1200
    %2151 = vmatpush2.bf16.msra.mxu0 %v1199
    %2152 = vmatprep.subr.bf16.mxu0 %v1196
    %2153 = vmatpush2.bf16.msra.mxu0 %v1195
    %2154 = vmatprep.subr.bf16.mxu0 %v1192
    %2155 = vmatpush2.bf16.msra.mxu0 %v1191
    %2156 = vmatprep.mubr.bf16.mxu0 %v172
    %2157 = vmatmul.mubr.bf16.gmra.mxu0 %v171
    %v2158 = vpop.f32.mrf.mxu0
    %v2159 = vadd.f32 %v2046, %v2158
    %v2160 = vpop.f32.mrf.mxu0
    %v2161 = vadd.f32 %v2048, %v2160
    %v2162 = vpop.f32.mrf.mxu0
    %v2163 = vadd.f32 %v2050, %v2162
    %v2164 = vpop.f32.mrf.mxu0
    %v2165 = vadd.f32 %v2052, %v2164
    %2166 = vmatprep.mubr.bf16.mxu0 %v179
    %2167 = vmatmul.mubr.bf16.gmra.mxu0 %v178
    %v2168 = vpop.f32.mrf.mxu0
    %v2169 = vadd.f32 %v2056, %v2168
    %v2170 = vpop.f32.mrf.mxu0
    %v2171 = vadd.f32 %v2058, %v2170
    %v2172 = vpop.f32.mrf.mxu0
    %v2173 = vadd.f32 %v2060, %v2172
    %v2174 = vpop.f32.mrf.mxu0
    %v2175 = vadd.f32 %v2062, %v2174
    %2176 = vmatprep.mubr.bf16.mxu0 %v186
    %2177 = vmatmul.mubr.bf16.gmra.mxu0 %v185
    %v2178 = vpop.f32.mrf.mxu0
    %v2179 = vadd.f32 %v2066, %v2178
    %v2180 = vpop.f32.mrf.mxu0
    %v2181 = vadd.f32 %v2068, %v2180
    %v2182 = vpop.f32.mrf.mxu0
    %v2183 = vadd.f32 %v2070, %v2182
    %v2184 = vpop.f32.mrf.mxu0
    %v2185 = vadd.f32 %v2072, %v2184
    %2186 = vmatprep.mubr.bf16.mxu0 %v193
    %2187 = vmatmul.mubr.bf16.gmra.mxu0 %v192
    %v2188 = vpop.f32.mrf.mxu0
    %v2189 = vadd.f32 %v2076, %v2188
    %v2190 = vpop.f32.mrf.mxu0
    %v2191 = vadd.f32 %v2078, %v2190
    %v2192 = vpop.f32.mrf.mxu0
    %v2193 = vadd.f32 %v2080, %v2192
    %v2194 = vpop.f32.mrf.mxu0
    %v2195 = vadd.f32 %v2082, %v2194
    %2196 = vmatprep.mubr.bf16.mxu0 %v200
    %2197 = vmatmul.mubr.bf16.gmra.mxu0 %v199
    %v2198 = vpop.f32.mrf.mxu0
    %v2199 = vadd.f32 %v2086, %v2198
    %v2200 = vpop.f32.mrf.mxu0
    %v2201 = vadd.f32 %v2088, %v2200
    %v2202 = vpop.f32.mrf.mxu0
    %v2203 = vadd.f32 %v2090, %v2202
    %v2204 = vpop.f32.mrf.mxu0
    %v2205 = vadd.f32 %v2092, %v2204
    %2206 = vmatprep.mubr.bf16.mxu0 %v207
    %2207 = vmatmul.mubr.bf16.gmra.mxu0 %v206
    %v2208 = vpop.f32.mrf.mxu0
    %v2209 = vadd.f32 %v2096, %v2208
    %v2210 = vpop.f32.mrf.mxu0
    %v2211 = vadd.f32 %v2098, %v2210
    %v2212 = vpop.f32.mrf.mxu0
    %v2213 = vadd.f32 %v2100, %v2212
    %v2214 = vpop.f32.mrf.mxu0
    %v2215 = vadd.f32 %v2102, %v2214
    %2216 = vmatprep.mubr.bf16.mxu0 %v214
    %2217 = vmatmul.mubr.bf16.gmra.mxu0 %v213
    %v2218 = vpop.f32.mrf.mxu0
    %v2219 = vadd.f32 %v2106, %v2218
    %v2220 = vpop.f32.mrf.mxu0
    %v2221 = vadd.f32 %v2108, %v2220
    %v2222 = vpop.f32.mrf.mxu0
    %v2223 = vadd.f32 %v2110, %v2222
    %v2224 = vpop.f32.mrf.mxu0
    %v2225 = vadd.f32 %v2112, %v2224
    %2226 = vmatprep.mubr.bf16.mxu0 %v221
    %2227 = vmatmul.mubr.bf16.gmra.mxu0 %v220
    %v2228 = vpop.f32.mrf.mxu0
    %v2229 = vadd.f32 %v2116, %v2228
    %v2230 = vpop.f32.mrf.mxu0
    %v2231 = vadd.f32 %v2118, %v2230
    %v2232 = vpop.f32.mrf.mxu0
    %v2233 = vadd.f32 %v2120, %v2232
    %v2234 = vpop.f32.mrf.mxu0
    %v2235 = vadd.f32 %v2122, %v2234
    %2236 = vdwg.mxu0
    %2237 = vmatprep.subr.bf16.mxu0 0
    %2238 = vmatpush1.bf16.msra.mxu0 0
    %2239 = vmatprep.subr.bf16.mxu0 0
    %2240 = vmatpush1.bf16.msra.mxu0 0
    %2241 = vmatprep.subr.bf16.mxu0 0
    %2242 = vmatpush1.bf16.msra.mxu0 0
    %2243 = vmatprep.subr.bf16.mxu0 0
    %2244 = vmatpush1.bf16.msra.mxu0 0
    %2245 = vmatprep.subr.bf16.mxu0 0
    %2246 = vmatpush1.bf16.msra.mxu0 0
    %2247 = vmatprep.subr.bf16.mxu0 0
    %2248 = vmatpush1.bf16.msra.mxu0 0
    %2249 = vmatprep.subr.bf16.mxu0 0
    %2250 = vmatpush1.bf16.msra.mxu0 0
    %2251 = vmatprep.subr.bf16.mxu0 %v1224
    %2252 = vmatpush1.bf16.msra.mxu0 %v1223
    %2253 = vmatprep.subr.bf16.mxu0 0
    %2254 = vmatpush2.bf16.msra.mxu0 0
    %2255 = vmatprep.subr.bf16.mxu0 0
    %2256 = vmatpush2.bf16.msra.mxu0 0
    %2257 = vmatprep.subr.bf16.mxu0 0
    %2258 = vmatpush2.bf16.msra.mxu0 0
    %2259 = vmatprep.subr.bf16.mxu0 0
    %2260 = vmatpush2.bf16.msra.mxu0 0
    %2261 = vmatprep.subr.bf16.mxu0 0
    %2262 = vmatpush2.bf16.msra.mxu0 0
    %2263 = vmatprep.subr.bf16.mxu0 0
    %2264 = vmatpush2.bf16.msra.mxu0 0
    %2265 = vmatprep.subr.bf16.mxu0 0
    %2266 = vmatpush2.bf16.msra.mxu0 0
    %2267 = vmatprep.subr.bf16.mxu0 0
    %2268 = vmatpush2.bf16.msra.mxu0 0
    %2269 = vmatprep.mubr.bf16.mxu0 0
    %2270 = vmatmul.mubr.bf16.gmra.mxu0 %v1423
    %v2271 = vpop.f32.mrf.mxu0
    %v2272 = vadd.f32 %v2159, %v2271
    %v2273 = vpop.f32.mrf.mxu0
    %v2274 = vadd.f32 %v2161, %v2273
    %v2275 = vpop.f32.mrf.mxu0
    %v2276 = vadd.f32 %v2163, %v2275
    %v2277 = vpop.f32.mrf.mxu0
    %v2278 = vadd.f32 %v2165, %v2277
    %2279 = vmatprep.mubr.bf16.mxu0 0
    %2280 = vmatmul.mubr.bf16.gmra.mxu0 %v1426
    %v2281 = vpop.f32.mrf.mxu0
    %v2282 = vadd.f32 %v2169, %v2281
    %v2283 = vpop.f32.mrf.mxu0
    %v2284 = vadd.f32 %v2171, %v2283
    %v2285 = vpop.f32.mrf.mxu0
    %v2286 = vadd.f32 %v2173, %v2285
    %v2287 = vpop.f32.mrf.mxu0
    %v2288 = vadd.f32 %v2175, %v2287
    %2289 = vmatprep.mubr.bf16.mxu0 0
    %2290 = vmatmul.mubr.bf16.gmra.mxu0 %v1429
    %v2291 = vpop.f32.mrf.mxu0
    %v2292 = vadd.f32 %v2179, %v2291
    %v2293 = vpop.f32.mrf.mxu0
    %v2294 = vadd.f32 %v2181, %v2293
    %v2295 = vpop.f32.mrf.mxu0
    %v2296 = vadd.f32 %v2183, %v2295
    %v2297 = vpop.f32.mrf.mxu0
    %v2298 = vadd.f32 %v2185, %v2297
    %2299 = vmatprep.mubr.bf16.mxu0 0
    %2300 = vmatmul.mubr.bf16.gmra.mxu0 %v1432
    %v2301 = vpop.f32.mrf.mxu0
    %v2302 = vadd.f32 %v2189, %v2301
    %v2303 = vpop.f32.mrf.mxu0
    %v2304 = vadd.f32 %v2191, %v2303
    %v2305 = vpop.f32.mrf.mxu0
    %v2306 = vadd.f32 %v2193, %v2305
    %v2307 = vpop.f32.mrf.mxu0
    %v2308 = vadd.f32 %v2195, %v2307
    %2309 = vmatprep.mubr.bf16.mxu0 0
    %2310 = vmatmul.mubr.bf16.gmra.mxu0 %v1435
    %v2311 = vpop.f32.mrf.mxu0
    %v2312 = vadd.f32 %v2199, %v2311
    %v2313 = vpop.f32.mrf.mxu0
    %v2314 = vadd.f32 %v2201, %v2313
    %v2315 = vpop.f32.mrf.mxu0
    %v2316 = vadd.f32 %v2203, %v2315
    %v2317 = vpop.f32.mrf.mxu0
    %v2318 = vadd.f32 %v2205, %v2317
    %2319 = vmatprep.mubr.bf16.mxu0 0
    %2320 = vmatmul.mubr.bf16.gmra.mxu0 %v1438
    %v2321 = vpop.f32.mrf.mxu0
    %v2322 = vadd.f32 %v2209, %v2321
    %v2323 = vpop.f32.mrf.mxu0
    %v2324 = vadd.f32 %v2211, %v2323
    %v2325 = vpop.f32.mrf.mxu0
    %v2326 = vadd.f32 %v2213, %v2325
    %v2327 = vpop.f32.mrf.mxu0
    %v2328 = vadd.f32 %v2215, %v2327
    %2329 = vmatprep.mubr.bf16.mxu0 0
    %2330 = vmatmul.mubr.bf16.gmra.mxu0 %v1441
    %v2331 = vpop.f32.mrf.mxu0
    %v2332 = vadd.f32 %v2219, %v2331
    %v2333 = vpop.f32.mrf.mxu0
    %v2334 = vadd.f32 %v2221, %v2333
    %v2335 = vpop.f32.mrf.mxu0
    %v2336 = vadd.f32 %v2223, %v2335
    %v2337 = vpop.f32.mrf.mxu0
    %v2338 = vadd.f32 %v2225, %v2337
    %2339 = vmatprep.mubr.bf16.mxu0 0
    %2340 = vmatmul.mubr.bf16.gmra.mxu0 %v1444
    %v2341 = vpop.f32.mrf.mxu0
    %v2342 = vadd.f32 %v2229, %v2341
    %v2343 = vpop.f32.mrf.mxu0
    %v2344 = vadd.f32 %v2231, %v2343
    %v2345 = vpop.f32.mrf.mxu0
    %v2346 = vadd.f32 %v2233, %v2345
    %v2347 = vpop.f32.mrf.mxu0
    %v2348 = vadd.f32 %v2235, %v2347
    %2349 = vdwg.mxu0
    %v2350 = vmax.f32 %v1820, 0.0
    %v2351 = vmax.f32 %v1822, 0.0
    %v2352 = vmax.f32 %v2272, 0.0
    %v2353 = vmax.f32 %v2274, 0.0
    %v2354 = vmax.f32 %v1824, 0.0
    %v2355 = vmax.f32 %v1826, 0.0
    %v2356 = vmax.f32 %v2276, 0.0
    %v2357 = vmax.f32 %v2278, 0.0
    %v2358 = vmax.f32 %v1830, 0.0
    %v2359 = vmax.f32 %v1832, 0.0
    %v2360 = vmax.f32 %v2282, 0.0
    %v2361 = vmax.f32 %v2284, 0.0
    %v2362 = vmax.f32 %v1834, 0.0
    %v2363 = vmax.f32 %v1836, 0.0
    %v2364 = vmax.f32 %v2286, 0.0
    %v2365 = vmax.f32 %v2288, 0.0
    %v2366 = vmax.f32 %v1840, 0.0
    %v2367 = vmax.f32 %v1842, 0.0
    %v2368 = vmax.f32 %v2292, 0.0
    %v2369 = vmax.f32 %v2294, 0.0
    %v2370 = vmax.f32 %v1844, 0.0
    %v2371 = vmax.f32 %v1846, 0.0
    %v2372 = vmax.f32 %v2296, 0.0
    %v2373 = vmax.f32 %v2298, 0.0
    %v2374 = vmax.f32 %v1850, 0.0
    %v2375 = vmax.f32 %v1852, 0.0
    %v2376 = vmax.f32 %v2302, 0.0
    %v2377 = vmax.f32 %v2304, 0.0
    %v2378 = vmax.f32 %v1854, 0.0
    %v2379 = vmax.f32 %v1856, 0.0
    %v2380 = vmax.f32 %v2306, 0.0
    %v2381 = vmax.f32 %v2308, 0.0
    %v2382 = vmax.f32 %v1860, 0.0
    %v2383 = vmax.f32 %v1862, 0.0
    %v2384 = vmax.f32 %v2312, 0.0
    %v2385 = vmax.f32 %v2314, 0.0
    %v2386 = vmax.f32 %v1864, 0.0
    %v2387 = vmax.f32 %v1866, 0.0
    %v2388 = vmax.f32 %v2316, 0.0
    %v2389 = vmax.f32 %v2318, 0.0
    %v2390 = vmax.f32 %v1870, 0.0
    %v2391 = vmax.f32 %v1872, 0.0
    %v2392 = vmax.f32 %v2322, 0.0
    %v2393 = vmax.f32 %v2324, 0.0
    %v2394 = vmax.f32 %v1874, 0.0
    %v2395 = vmax.f32 %v1876, 0.0
    %v2396 = vmax.f32 %v2326, 0.0
    %v2397 = vmax.f32 %v2328, 0.0
    %v2398 = vmax.f32 %v1880, 0.0
    %v2399 = vmax.f32 %v1882, 0.0
    %v2400 = vmax.f32 %v2332, 0.0
    %v2401 = vmax.f32 %v2334, 0.0
    %v2402 = vmax.f32 %v1884, 0.0
    %v2403 = vmax.f32 %v1886, 0.0
    %v2404 = vmax.f32 %v2336, 0.0
    %v2405 = vmax.f32 %v2338, 0.0
    %v2406 = vmax.f32 %v1890, 0.0
    %v2407 = vmax.f32 %v1892, 0.0
    %v2408 = vmax.f32 %v2342, 0.0
    %v2409 = vmax.f32 %v2344, 0.0
    %v2410 = vmax.f32 %v1894, 0.0
    %v2411 = vmax.f32 %v1896, 0.0
    %v2412 = vmax.f32 %v2346, 0.0
    %v2413 = vmax.f32 %v2348, 0.0
    %v2414 = vpack.c.bf16 %v2354, %v2350
    %v2415 = vpack.c.bf16 %v2355, %v2351
    %v2416 = vpack.c.bf16 %v2356, %v2352
    %v2417 = vpack.c.bf16 %v2357, %v2353
    %v2418 = vpack.c.bf16 %v2362, %v2358
    %v2419 = vpack.c.bf16 %v2363, %v2359
    %v2420 = vpack.c.bf16 %v2364, %v2360
    %v2421 = vpack.c.bf16 %v2365, %v2361
    %v2422 = vpack.c.bf16 %v2370, %v2366
    %v2423 = vpack.c.bf16 %v2371, %v2367
    %v2424 = vpack.c.bf16 %v2372, %v2368
    %v2425 = vpack.c.bf16 %v2373, %v2369
    %v2426 = vpack.c.bf16 %v2378, %v2374
    %v2427 = vpack.c.bf16 %v2379, %v2375
    %v2428 = vpack.c.bf16 %v2380, %v2376
    %v2429 = vpack.c.bf16 %v2381, %v2377
    %v2430 = vpack.c.bf16 %v2386, %v2382
    %v2431 = vpack.c.bf16 %v2387, %v2383
    %v2432 = vpack.c.bf16 %v2388, %v2384
    %v2433 = vpack.c.bf16 %v2389, %v2385
    %v2434 = vpack.c.bf16 %v2394, %v2390
    %v2435 = vpack.c.bf16 %v2395, %v2391
    %v2436 = vpack.c.bf16 %v2396, %v2392
    %v2437 = vpack.c.bf16 %v2397, %v2393
    %v2438 = vpack.c.bf16 %v2402, %v2398
    %v2439 = vpack.c.bf16 %v2403, %v2399
    %v2440 = vpack.c.bf16 %v2404, %v2400
    %v2441 = vpack.c.bf16 %v2405, %v2401
    %v2442 = vpack.c.bf16 %v2410, %v2406
    %v2443 = vpack.c.bf16 %v2411, %v2407
    %v2444 = vpack.c.bf16 %v2412, %v2408
    %v2445 = vpack.c.bf16 %v2413, %v2409
    %v2446 = vld [vmem:[#allocation2] sm:$0xff]
    %v2447 = vld [vmem:[#allocation2 + $0x8] sm:$0xff]
    %v2448 = vld [vmem:[#allocation2 + $0x10] sm:$0xff]
    %v2449 = vld [vmem:[#allocation2 + $0x18] sm:$0xff]
    %v2450 = vld [vmem:[#allocation2 + $0x20] sm:$0xff]
    %v2451 = vld [vmem:[#allocation2 + $0x28] sm:$0xff]
    %v2452 = vld [vmem:[#allocation2 + $0x30] sm:$0xff]
    %v2453 = vld [vmem:[#allocation2 + $0x38] sm:$0xff]
    %v2454 = vld [vmem:[#allocation2 + $0x40] sm:$0xff]
    %v2455 = vld [vmem:[#allocation2 + $0x48] sm:$0xff]
    %v2456 = vld [vmem:[#allocation2 + $0x50] sm:$0xff]
    %v2457 = vld [vmem:[#allocation2 + $0x58] sm:$0xff]
    %v2458 = vld [vmem:[#allocation2 + $0x60] sm:$0xff]
    %v2459 = vld [vmem:[#allocation2 + $0x68] sm:$0xff]
    %v2460 = vld [vmem:[#allocation2 + $0x70] sm:$0xff]
    %v2461 = vld [vmem:[#allocation2 + $0x78] sm:$0xff]
    %v2462 = vld [vmem:[#allocation2 + $0x80] sm:$0xff]
    %v2463 = vld [vmem:[#allocation2 + $0x88] sm:$0xff]
    %v2464 = vld [vmem:[#allocation2 + $0x90] sm:$0xff]
    %v2465 = vld [vmem:[#allocation2 + $0x98] sm:$0xff]
    %v2466 = vld [vmem:[#allocation2 + $0xa0] sm:$0xff]
    %v2467 = vld [vmem:[#allocation2 + $0xa8] sm:$0xff]
    %v2468 = vld [vmem:[#allocation2 + $0xb0] sm:$0xff]
    %v2469 = vld [vmem:[#allocation2 + $0xb8] sm:$0xff]
    %v2470 = vld [vmem:[#allocation2 + $0xc0] sm:$0xff]
    %v2471 = vld [vmem:[#allocation2 + $0xc8] sm:$0xff]
    %v2472 = vld [vmem:[#allocation2 + $0xd0] sm:$0xff]
    %v2473 = vld [vmem:[#allocation2 + $0xd8] sm:$0xff]
    %v2474 = vld [vmem:[#allocation2 + $0xe0] sm:$0xff]
    %v2475 = vld [vmem:[#allocation2 + $0xe8] sm:$0xff]
    %v2476 = vld [vmem:[#allocation2 + $0xf0] sm:$0xff]
    %v2477 = vld [vmem:[#allocation2 + $0xf8] sm:$0xff]
    %v2478 = vld [vmem:[#allocation2 + $0x100] sm:$0xff]
    %v2479 = vld [vmem:[#allocation2 + $0x108] sm:$0xff]
    %v2480 = vld [vmem:[#allocation2 + $0x110] sm:$0xff]
    %v2481 = vld [vmem:[#allocation2 + $0x118] sm:$0xff]
    %v2482 = vld [vmem:[#allocation2 + $0x120] sm:$0xff]
    %v2483 = vld [vmem:[#allocation2 + $0x128] sm:$0xff]
    %v2484 = vld [vmem:[#allocation2 + $0x130] sm:$0xff]
    %v2485 = vld [vmem:[#allocation2 + $0x138] sm:$0xff]
    %v2486 = vld [vmem:[#allocation2 + $0x140] sm:$0xff]
    %v2487 = vld [vmem:[#allocation2 + $0x148] sm:$0xff]
    %v2488 = vld [vmem:[#allocation2 + $0x150] sm:$0xff]
    %v2489 = vld [vmem:[#allocation2 + $0x158] sm:$0xff]
    %v2490 = vld [vmem:[#allocation2 + $0x160] sm:$0xff]
    %v2491 = vld [vmem:[#allocation2 + $0x168] sm:$0xff]
    %v2492 = vld [vmem:[#allocation2 + $0x170] sm:$0xff]
    %v2493 = vld [vmem:[#allocation2 + $0x178] sm:$0xff]
    %v2494 = vld [vmem:[#allocation2 + $0x180] sm:$0xff]
    %v2495 = vld [vmem:[#allocation2 + $0x188] sm:$0xff]
    %v2496 = vld [vmem:[#allocation2 + $0x190] sm:$0xff]
    %v2497 = vld [vmem:[#allocation2 + $0x198] sm:$0xff]
    %v2498 = vld [vmem:[#allocation2 + $0x1a0] sm:$0xff]
    %v2499 = vld [vmem:[#allocation2 + $0x1a8] sm:$0xff]
    %v2500 = vld [vmem:[#allocation2 + $0x1b0] sm:$0xff]
    %v2501 = vld [vmem:[#allocation2 + $0x1b8] sm:$0xff]
    %v2502 = vld [vmem:[#allocation2 + $0x1c0] sm:$0xff]
    %v2503 = vld [vmem:[#allocation2 + $0x1c8] sm:$0xff]
    %v2504 = vld [vmem:[#allocation2 + $0x1d0] sm:$0xff]
    %v2505 = vld [vmem:[#allocation2 + $0x1d8] sm:$0xff]
    %v2506 = vld [vmem:[#allocation2 + $0x1e0] sm:$0xff]
    %v2507 = vld [vmem:[#allocation2 + $0x1e8] sm:$0xff]
    %v2508 = vld [vmem:[#allocation2 + $0x1f0] sm:$0xff]
    %v2509 = vld [vmem:[#allocation2 + $0x1f8] sm:$0xff]
    %v2510 = vld [vmem:[%s4] sm:$0x3]
    %v2512 = vlaneseq
    %v2513 = vshrl.u32 %v2512, 7
    %v2514 = vsub.s32 0, %v2513
    %v2515 = vrot.slane %v2510, %v2514
    %v2516 = vlaneseq
    %v2517 = vshrl.u32 %v2516, 7
    %v2518 = vsub.s32 1, %v2517
    %v2519 = vrot.slane %v2510, %v2518
    %v2586 = vunpack.c.l.b16 %v2446
    %v2587 = vunpack.c.h.b16 %v2446
    %v2588 = vunpack.c.l.b16 %v2447
    %v2589 = vunpack.c.h.b16 %v2447
    %v2590 = vunpack.c.l.b16 %v2448
    %v2591 = vunpack.c.h.b16 %v2448
    %v2592 = vunpack.c.l.b16 %v2449
    %v2593 = vunpack.c.h.b16 %v2449
    %v2594 = vunpack.c.l.b16 %v2450
    %v2595 = vunpack.c.h.b16 %v2450
    %v2596 = vunpack.c.l.b16 %v2451
    %v2597 = vunpack.c.h.b16 %v2451
    %v2598 = vunpack.c.l.b16 %v2452
    %v2599 = vunpack.c.h.b16 %v2452
    %v2600 = vunpack.c.l.b16 %v2453
    %v2601 = vunpack.c.h.b16 %v2453
    %v2602 = vunpack.c.l.b16 %v2454
    %v2603 = vunpack.c.h.b16 %v2454
    %v2604 = vunpack.c.l.b16 %v2455
    %v2605 = vunpack.c.h.b16 %v2455
    %v2606 = vunpack.c.l.b16 %v2456
    %v2607 = vunpack.c.h.b16 %v2456
    %v2608 = vunpack.c.l.b16 %v2457
    %v2609 = vunpack.c.h.b16 %v2457
    %v2610 = vunpack.c.l.b16 %v2458
    %v2611 = vunpack.c.h.b16 %v2458
    %v2612 = vunpack.c.l.b16 %v2459
    %v2613 = vunpack.c.h.b16 %v2459
    %v2614 = vunpack.c.l.b16 %v2460
    %v2615 = vunpack.c.h.b16 %v2460
    %v2616 = vunpack.c.l.b16 %v2461
    %v2617 = vunpack.c.h.b16 %v2461
    %v2618 = vunpack.c.l.b16 %v2462
    %v2619 = vunpack.c.h.b16 %v2462
    %v2620 = vunpack.c.l.b16 %v2463
    %v2621 = vunpack.c.h.b16 %v2463
    %v2622 = vunpack.c.l.b16 %v2464
    %v2623 = vunpack.c.h.b16 %v2464
    %v2624 = vunpack.c.l.b16 %v2465
    %v2625 = vunpack.c.h.b16 %v2465
    %v2626 = vunpack.c.l.b16 %v2466
    %v2627 = vunpack.c.h.b16 %v2466
    %v2628 = vunpack.c.l.b16 %v2467
    %v2629 = vunpack.c.h.b16 %v2467
    %v2630 = vunpack.c.l.b16 %v2468
    %v2631 = vunpack.c.h.b16 %v2468
    %v2632 = vunpack.c.l.b16 %v2469
    %v2633 = vunpack.c.h.b16 %v2469
    %v2634 = vunpack.c.l.b16 %v2470
    %v2635 = vunpack.c.h.b16 %v2470
    %v2636 = vunpack.c.l.b16 %v2471
    %v2637 = vunpack.c.h.b16 %v2471
    %v2638 = vunpack.c.l.b16 %v2472
    %v2639 = vunpack.c.h.b16 %v2472
    %v2640 = vunpack.c.l.b16 %v2473
    %v2641 = vunpack.c.h.b16 %v2473
    %v2642 = vunpack.c.l.b16 %v2474
    %v2643 = vunpack.c.h.b16 %v2474
    %v2644 = vunpack.c.l.b16 %v2475
    %v2645 = vunpack.c.h.b16 %v2475
    %v2646 = vunpack.c.l.b16 %v2476
    %v2647 = vunpack.c.h.b16 %v2476
    %v2648 = vunpack.c.l.b16 %v2477
    %v2649 = vunpack.c.h.b16 %v2477
    %v2650 = vunpack.c.l.b16 %v2478
    %v2651 = vunpack.c.h.b16 %v2478
    %v2652 = vunpack.c.l.b16 %v2479
    %v2653 = vunpack.c.h.b16 %v2479
    %v2654 = vunpack.c.l.b16 %v2480
    %v2655 = vunpack.c.h.b16 %v2480
    %v2656 = vunpack.c.l.b16 %v2481
    %v2657 = vunpack.c.h.b16 %v2481
    %v2658 = vunpack.c.l.b16 %v2482
    %v2659 = vunpack.c.h.b16 %v2482
    %v2660 = vunpack.c.l.b16 %v2483
    %v2661 = vunpack.c.h.b16 %v2483
    %v2662 = vunpack.c.l.b16 %v2484
    %v2663 = vunpack.c.h.b16 %v2484
    %v2664 = vunpack.c.l.b16 %v2485
    %v2665 = vunpack.c.h.b16 %v2485
    %v2666 = vunpack.c.l.b16 %v2486
    %v2667 = vunpack.c.h.b16 %v2486
    %v2668 = vunpack.c.l.b16 %v2487
    %v2669 = vunpack.c.h.b16 %v2487
    %v2670 = vunpack.c.l.b16 %v2488
    %v2671 = vunpack.c.h.b16 %v2488
    %v2672 = vunpack.c.l.b16 %v2489
    %v2673 = vunpack.c.h.b16 %v2489
    %v2674 = vunpack.c.l.b16 %v2490
    %v2675 = vunpack.c.h.b16 %v2490
    %v2676 = vunpack.c.l.b16 %v2491
    %v2677 = vunpack.c.h.b16 %v2491
    %v2678 = vunpack.c.l.b16 %v2492
    %v2679 = vunpack.c.h.b16 %v2492
    %v2680 = vunpack.c.l.b16 %v2493
    %v2681 = vunpack.c.h.b16 %v2493
    %v2682 = vunpack.c.l.b16 %v2494
    %v2683 = vunpack.c.h.b16 %v2494
    %v2684 = vunpack.c.l.b16 %v2495
    %v2685 = vunpack.c.h.b16 %v2495
    %v2686 = vunpack.c.l.b16 %v2496
    %v2687 = vunpack.c.h.b16 %v2496
    %v2688 = vunpack.c.l.b16 %v2497
    %v2689 = vunpack.c.h.b16 %v2497
    %v2690 = vunpack.c.l.b16 %v2498
    %v2691 = vunpack.c.h.b16 %v2498
    %v2692 = vunpack.c.l.b16 %v2499
    %v2693 = vunpack.c.h.b16 %v2499
    %v2694 = vunpack.c.l.b16 %v2500
    %v2695 = vunpack.c.h.b16 %v2500
    %v2696 = vunpack.c.l.b16 %v2501
    %v2697 = vunpack.c.h.b16 %v2501
    %v2698 = vunpack.c.l.b16 %v2502
    %v2699 = vunpack.c.h.b16 %v2502
    %v2700 = vunpack.c.l.b16 %v2503
    %v2701 = vunpack.c.h.b16 %v2503
    %v2702 = vunpack.c.l.b16 %v2504
    %v2703 = vunpack.c.h.b16 %v2504
    %v2704 = vunpack.c.l.b16 %v2505
    %v2705 = vunpack.c.h.b16 %v2505
    %v2706 = vunpack.c.l.b16 %v2506
    %v2707 = vunpack.c.h.b16 %v2506
    %v2708 = vunpack.c.l.b16 %v2507
    %v2709 = vunpack.c.h.b16 %v2507
    %v2710 = vunpack.c.l.b16 %v2508
    %v2711 = vunpack.c.h.b16 %v2508
    %v2712 = vunpack.c.l.b16 %v2509
    %v2713 = vunpack.c.h.b16 %v2509
    %v2714 = vpack.c.b16 %v2588, %v2586
    %v2715 = vpack.c.b16 %v2589, %v2587
    %v2716 = vpack.c.b16 %v2592, %v2590
    %v2717 = vpack.c.b16 %v2593, %v2591
    %v2718 = vpack.c.b16 %v2596, %v2594
    %v2719 = vpack.c.b16 %v2597, %v2595
    %v2720 = vpack.c.b16 %v2600, %v2598
    %v2721 = vpack.c.b16 %v2601, %v2599
    %v2722 = vpack.c.b16 %v2604, %v2602
    %v2723 = vpack.c.b16 %v2605, %v2603
    %v2724 = vpack.c.b16 %v2608, %v2606
    %v2725 = vpack.c.b16 %v2609, %v2607
    %v2726 = vpack.c.b16 %v2612, %v2610
    %v2727 = vpack.c.b16 %v2613, %v2611
    %v2728 = vpack.c.b16 %v2616, %v2614
    %v2729 = vpack.c.b16 %v2617, %v2615
    %v2730 = vpack.c.b16 %v2620, %v2618
    %v2731 = vpack.c.b16 %v2621, %v2619
    %v2732 = vpack.c.b16 %v2624, %v2622
    %v2733 = vpack.c.b16 %v2625, %v2623
    %v2734 = vpack.c.b16 %v2628, %v2626
    %v2735 = vpack.c.b16 %v2629, %v2627
    %v2736 = vpack.c.b16 %v2632, %v2630
    %v2737 = vpack.c.b16 %v2633, %v2631
    %v2738 = vpack.c.b16 %v2636, %v2634
    %v2739 = vpack.c.b16 %v2637, %v2635
    %v2740 = vpack.c.b16 %v2640, %v2638
    %v2741 = vpack.c.b16 %v2641, %v2639
    %v2742 = vpack.c.b16 %v2644, %v2642
    %v2743 = vpack.c.b16 %v2645, %v2643
    %v2744 = vpack.c.b16 %v2648, %v2646
    %v2745 = vpack.c.b16 %v2649, %v2647
    %v2746 = vpack.c.b16 %v2652, %v2650
    %v2747 = vpack.c.b16 %v2653, %v2651
    %v2748 = vpack.c.b16 %v2656, %v2654
    %v2749 = vpack.c.b16 %v2657, %v2655
    %v2750 = vpack.c.b16 %v2660, %v2658
    %v2751 = vpack.c.b16 %v2661, %v2659
    %v2752 = vpack.c.b16 %v2664, %v2662
    %v2753 = vpack.c.b16 %v2665, %v2663
    %v2754 = vpack.c.b16 %v2668, %v2666
    %v2755 = vpack.c.b16 %v2669, %v2667
    %v2756 = vpack.c.b16 %v2672, %v2670
    %v2757 = vpack.c.b16 %v2673, %v2671
    %v2758 = vpack.c.b16 %v2676, %v2674
    %v2759 = vpack.c.b16 %v2677, %v2675
    %v2760 = vpack.c.b16 %v2680, %v2678
    %v2761 = vpack.c.b16 %v2681, %v2679
    %v2762 = vpack.c.b16 %v2684, %v2682
    %v2763 = vpack.c.b16 %v2685, %v2683
    %v2764 = vpack.c.b16 %v2688, %v2686
    %v2765 = vpack.c.b16 %v2689, %v2687
    %v2766 = vpack.c.b16 %v2692, %v2690
    %v2767 = vpack.c.b16 %v2693, %v2691
    %v2768 = vpack.c.b16 %v2696, %v2694
    %v2769 = vpack.c.b16 %v2697, %v2695
    %v2770 = vpack.c.b16 %v2700, %v2698
    %v2771 = vpack.c.b16 %v2701, %v2699
    %v2772 = vpack.c.b16 %v2704, %v2702
    %v2773 = vpack.c.b16 %v2705, %v2703
    %v2774 = vpack.c.b16 %v2708, %v2706
    %v2775 = vpack.c.b16 %v2709, %v2707
    %v2776 = vpack.c.b16 %v2712, %v2710
    %v2777 = vpack.c.b16 %v2713, %v2711
    %2842 = vmatprep.subr.bf16.mxu0 %v2729
    %2843 = vmatpush1.bf16.msra.mxu0 %v2728
    %2844 = vmatprep.subr.bf16.mxu0 %v2727
    %2845 = vmatpush1.bf16.msra.mxu0 %v2726
    %2846 = vmatprep.subr.bf16.mxu0 %v2725
    %2847 = vmatpush1.bf16.msra.mxu0 %v2724
    %2848 = vmatprep.subr.bf16.mxu0 %v2723
    %2849 = vmatpush1.bf16.msra.mxu0 %v2722
    %2850 = vmatprep.subr.bf16.mxu0 %v2721
    %2851 = vmatpush1.bf16.msra.mxu0 %v2720
    %2852 = vmatprep.subr.bf16.mxu0 %v2719
    %2853 = vmatpush1.bf16.msra.mxu0 %v2718
    %2854 = vmatprep.subr.bf16.mxu0 %v2717
    %2855 = vmatpush1.bf16.msra.mxu0 %v2716
    %2856 = vmatprep.subr.bf16.mxu0 %v2715
    %2857 = vmatpush1.bf16.msra.mxu0 %v2714
    %2858 = vmatprep.subr.bf16.mxu0 %v2745
    %2859 = vmatpush2.bf16.msra.mxu0 %v2744
    %2860 = vmatprep.subr.bf16.mxu0 %v2743
    %2861 = vmatpush2.bf16.msra.mxu0 %v2742
    %2862 = vmatprep.subr.bf16.mxu0 %v2741
    %2863 = vmatpush2.bf16.msra.mxu0 %v2740
    %2864 = vmatprep.subr.bf16.mxu0 %v2739
    %2865 = vmatpush2.bf16.msra.mxu0 %v2738
    %2866 = vmatprep.subr.bf16.mxu0 %v2737
    %2867 = vmatpush2.bf16.msra.mxu0 %v2736
    %2868 = vmatprep.subr.bf16.mxu0 %v2735
    %2869 = vmatpush2.bf16.msra.mxu0 %v2734
    %2870 = vmatprep.subr.bf16.mxu0 %v2733
    %2871 = vmatpush2.bf16.msra.mxu0 %v2732
    %2872 = vmatprep.subr.bf16.mxu0 %v2731
    %2873 = vmatpush2.bf16.msra.mxu0 %v2730
    %2874 = vmatprep.mubr.bf16.mxu0 %v2415
    %2875 = vmatmul.mubr.bf16.gmra.mxu0 %v2414
    %v2876 = vpop.f32.mrf.mxu0
    %v2877 = vadd.f32 %v2515, %v2876
    %v2878 = vpop.f32.mrf.mxu0
    %v2879 = vadd.f32 %v2519, %v2878
    %v2880 = vpop.f32.mrf.mxu0
    %v2881 = vadd.f32 %v2515, %v2880
    %v2882 = vpop.f32.mrf.mxu0
    %v2883 = vadd.f32 %v2519, %v2882
    %2884 = vmatprep.mubr.bf16.mxu0 %v2419
    %2885 = vmatmul.mubr.bf16.gmra.mxu0 %v2418
    %v2886 = vpop.f32.mrf.mxu0
    %v2887 = vadd.f32 %v2515, %v2886
    %v2888 = vpop.f32.mrf.mxu0
    %v2889 = vadd.f32 %v2519, %v2888
    %v2890 = vpop.f32.mrf.mxu0
    %v2891 = vadd.f32 %v2515, %v2890
    %v2892 = vpop.f32.mrf.mxu0
    %v2893 = vadd.f32 %v2519, %v2892
    %2894 = vmatprep.mubr.bf16.mxu0 %v2423
    %2895 = vmatmul.mubr.bf16.gmra.mxu0 %v2422
    %v2896 = vpop.f32.mrf.mxu0
    %v2897 = vadd.f32 %v2515, %v2896
    %v2898 = vpop.f32.mrf.mxu0
    %v2899 = vadd.f32 %v2519, %v2898
    %v2900 = vpop.f32.mrf.mxu0
    %v2901 = vadd.f32 %v2515, %v2900
    %v2902 = vpop.f32.mrf.mxu0
    %v2903 = vadd.f32 %v2519, %v2902
    %2904 = vmatprep.mubr.bf16.mxu0 %v2427
    %2905 = vmatmul.mubr.bf16.gmra.mxu0 %v2426
    %v2906 = vpop.f32.mrf.mxu0
    %v2907 = vadd.f32 %v2515, %v2906
    %v2908 = vpop.f32.mrf.mxu0
    %v2909 = vadd.f32 %v2519, %v2908
    %v2910 = vpop.f32.mrf.mxu0
    %v2911 = vadd.f32 %v2515, %v2910
    %v2912 = vpop.f32.mrf.mxu0
    %v2913 = vadd.f32 %v2519, %v2912
    %2914 = vmatprep.mubr.bf16.mxu0 %v2431
    %2915 = vmatmul.mubr.bf16.gmra.mxu0 %v2430
    %v2916 = vpop.f32.mrf.mxu0
    %v2917 = vadd.f32 %v2515, %v2916
    %v2918 = vpop.f32.mrf.mxu0
    %v2919 = vadd.f32 %v2519, %v2918
    %v2920 = vpop.f32.mrf.mxu0
    %v2921 = vadd.f32 %v2515, %v2920
    %v2922 = vpop.f32.mrf.mxu0
    %v2923 = vadd.f32 %v2519, %v2922
    %2924 = vmatprep.mubr.bf16.mxu0 %v2435
    %2925 = vmatmul.mubr.bf16.gmra.mxu0 %v2434
    %v2926 = vpop.f32.mrf.mxu0
    %v2927 = vadd.f32 %v2515, %v2926
    %v2928 = vpop.f32.mrf.mxu0
    %v2929 = vadd.f32 %v2519, %v2928
    %v2930 = vpop.f32.mrf.mxu0
    %v2931 = vadd.f32 %v2515, %v2930
    %v2932 = vpop.f32.mrf.mxu0
    %v2933 = vadd.f32 %v2519, %v2932
    %2934 = vmatprep.mubr.bf16.mxu0 %v2439
    %2935 = vmatmul.mubr.bf16.gmra.mxu0 %v2438
    %v2936 = vpop.f32.mrf.mxu0
    %v2937 = vadd.f32 %v2515, %v2936
    %v2938 = vpop.f32.mrf.mxu0
    %v2939 = vadd.f32 %v2519, %v2938
    %v2940 = vpop.f32.mrf.mxu0
    %v2941 = vadd.f32 %v2515, %v2940
    %v2942 = vpop.f32.mrf.mxu0
    %v2943 = vadd.f32 %v2519, %v2942
    %2944 = vmatprep.mubr.bf16.mxu0 %v2443
    %2945 = vmatmul.mubr.bf16.gmra.mxu0 %v2442
    %v2946 = vpop.f32.mrf.mxu0
    %v2947 = vadd.f32 %v2515, %v2946
    %v2948 = vpop.f32.mrf.mxu0
    %v2949 = vadd.f32 %v2519, %v2948
    %v2950 = vpop.f32.mrf.mxu0
    %v2951 = vadd.f32 %v2515, %v2950
    %v2952 = vpop.f32.mrf.mxu0
    %v2953 = vadd.f32 %v2519, %v2952
    %2954 = vdwg.mxu0
    %2955 = vmatprep.subr.bf16.mxu0 %v2761
    %2956 = vmatpush1.bf16.msra.mxu0 %v2760
    %2957 = vmatprep.subr.bf16.mxu0 %v2759
    %2958 = vmatpush1.bf16.msra.mxu0 %v2758
    %2959 = vmatprep.subr.bf16.mxu0 %v2757
    %2960 = vmatpush1.bf16.msra.mxu0 %v2756
    %2961 = vmatprep.subr.bf16.mxu0 %v2755
    %2962 = vmatpush1.bf16.msra.mxu0 %v2754
    %2963 = vmatprep.subr.bf16.mxu0 %v2753
    %2964 = vmatpush1.bf16.msra.mxu0 %v2752
    %2965 = vmatprep.subr.bf16.mxu0 %v2751
    %2966 = vmatpush1.bf16.msra.mxu0 %v2750
    %2967 = vmatprep.subr.bf16.mxu0 %v2749
    %2968 = vmatpush1.bf16.msra.mxu0 %v2748
    %2969 = vmatprep.subr.bf16.mxu0 %v2747
    %2970 = vmatpush1.bf16.msra.mxu0 %v2746
    %2971 = vmatprep.subr.bf16.mxu0 %v2777
    %2972 = vmatpush2.bf16.msra.mxu0 %v2776
    %2973 = vmatprep.subr.bf16.mxu0 %v2775
    %2974 = vmatpush2.bf16.msra.mxu0 %v2774
    %2975 = vmatprep.subr.bf16.mxu0 %v2773
    %2976 = vmatpush2.bf16.msra.mxu0 %v2772
    %2977 = vmatprep.subr.bf16.mxu0 %v2771
    %2978 = vmatpush2.bf16.msra.mxu0 %v2770
    %2979 = vmatprep.subr.bf16.mxu0 %v2769
    %2980 = vmatpush2.bf16.msra.mxu0 %v2768
    %2981 = vmatprep.subr.bf16.mxu0 %v2767
    %2982 = vmatpush2.bf16.msra.mxu0 %v2766
    %2983 = vmatprep.subr.bf16.mxu0 %v2765
    %2984 = vmatpush2.bf16.msra.mxu0 %v2764
    %2985 = vmatprep.subr.bf16.mxu0 %v2763
    %2986 = vmatpush2.bf16.msra.mxu0 %v2762
    %2987 = vmatprep.mubr.bf16.mxu0 %v2417
    %2988 = vmatmul.mubr.bf16.gmra.mxu0 %v2416
    %v2989 = vpop.f32.mrf.mxu0
    %v2990 = vadd.f32 %v2877, %v2989
    %v2991 = vpop.f32.mrf.mxu0
    %v2992 = vadd.f32 %v2879, %v2991
    %v2993 = vpop.f32.mrf.mxu0
    %v2994 = vadd.f32 %v2881, %v2993
    %v2995 = vpop.f32.mrf.mxu0
    %v2996 = vadd.f32 %v2883, %v2995
    %2997 = vmatprep.mubr.bf16.mxu0 %v2421
    %2998 = vmatmul.mubr.bf16.gmra.mxu0 %v2420
    %v2999 = vpop.f32.mrf.mxu0
    %v3000 = vadd.f32 %v2887, %v2999
    %v3001 = vpop.f32.mrf.mxu0
    %v3002 = vadd.f32 %v2889, %v3001
    %v3003 = vpop.f32.mrf.mxu0
    %v3004 = vadd.f32 %v2891, %v3003
    %v3005 = vpop.f32.mrf.mxu0
    %v3006 = vadd.f32 %v2893, %v3005
    %3007 = vmatprep.mubr.bf16.mxu0 %v2425
    %3008 = vmatmul.mubr.bf16.gmra.mxu0 %v2424
    %v3009 = vpop.f32.mrf.mxu0
    %v3010 = vadd.f32 %v2897, %v3009
    %v3011 = vpop.f32.mrf.mxu0
    %v3012 = vadd.f32 %v2899, %v3011
    %v3013 = vpop.f32.mrf.mxu0
    %v3014 = vadd.f32 %v2901, %v3013
    %v3015 = vpop.f32.mrf.mxu0
    %v3016 = vadd.f32 %v2903, %v3015
    %3017 = vmatprep.mubr.bf16.mxu0 %v2429
    %3018 = vmatmul.mubr.bf16.gmra.mxu0 %v2428
    %v3019 = vpop.f32.mrf.mxu0
    %v3020 = vadd.f32 %v2907, %v3019
    %v3021 = vpop.f32.mrf.mxu0
    %v3022 = vadd.f32 %v2909, %v3021
    %v3023 = vpop.f32.mrf.mxu0
    %v3024 = vadd.f32 %v2911, %v3023
    %v3025 = vpop.f32.mrf.mxu0
    %v3026 = vadd.f32 %v2913, %v3025
    %3027 = vmatprep.mubr.bf16.mxu0 %v2433
    %3028 = vmatmul.mubr.bf16.gmra.mxu0 %v2432
    %v3029 = vpop.f32.mrf.mxu0
    %v3030 = vadd.f32 %v2917, %v3029
    %v3031 = vpop.f32.mrf.mxu0
    %v3032 = vadd.f32 %v2919, %v3031
    %v3033 = vpop.f32.mrf.mxu0
    %v3034 = vadd.f32 %v2921, %v3033
    %v3035 = vpop.f32.mrf.mxu0
    %v3036 = vadd.f32 %v2923, %v3035
    %3037 = vmatprep.mubr.bf16.mxu0 %v2437
    %3038 = vmatmul.mubr.bf16.gmra.mxu0 %v2436
    %v3039 = vpop.f32.mrf.mxu0
    %v3040 = vadd.f32 %v2927, %v3039
    %v3041 = vpop.f32.mrf.mxu0
    %v3042 = vadd.f32 %v2929, %v3041
    %v3043 = vpop.f32.mrf.mxu0
    %v3044 = vadd.f32 %v2931, %v3043
    %v3045 = vpop.f32.mrf.mxu0
    %v3046 = vadd.f32 %v2933, %v3045
    %3047 = vmatprep.mubr.bf16.mxu0 %v2441
    %3048 = vmatmul.mubr.bf16.gmra.mxu0 %v2440
    %v3049 = vpop.f32.mrf.mxu0
    %v3050 = vadd.f32 %v2937, %v3049
    %v3051 = vpop.f32.mrf.mxu0
    %v3052 = vadd.f32 %v2939, %v3051
    %v3053 = vpop.f32.mrf.mxu0
    %v3054 = vadd.f32 %v2941, %v3053
    %v3055 = vpop.f32.mrf.mxu0
    %v3056 = vadd.f32 %v2943, %v3055
    %3057 = vmatprep.mubr.bf16.mxu0 %v2445
    %3058 = vmatmul.mubr.bf16.gmra.mxu0 %v2444
    %v3059 = vpop.f32.mrf.mxu0
    %v3060 = vadd.f32 %v2947, %v3059
    %v3061 = vpop.f32.mrf.mxu0
    %v3062 = vadd.f32 %v2949, %v3061
    %v3063 = vpop.f32.mrf.mxu0
    %v3064 = vadd.f32 %v2951, %v3063
    %v3065 = vpop.f32.mrf.mxu0
    %v3066 = vadd.f32 %v2953, %v3065
    %3067 = vdwg.mxu0
    %v3068 = vmax.f32 %v2990, 0.0
    %v3069 = vmax.f32 %v2992, 0.0
    %v3070 = vmax.f32 %v2994, 0.0
    %v3071 = vmax.f32 %v2996, 0.0
    %v3072 = vmax.f32 %v3000, 0.0
    %v3073 = vmax.f32 %v3002, 0.0
    %v3074 = vmax.f32 %v3004, 0.0
    %v3075 = vmax.f32 %v3006, 0.0
    %v3076 = vmax.f32 %v3010, 0.0
    %v3077 = vmax.f32 %v3012, 0.0
    %v3078 = vmax.f32 %v3014, 0.0
    %v3079 = vmax.f32 %v3016, 0.0
    %v3080 = vmax.f32 %v3020, 0.0
    %v3081 = vmax.f32 %v3022, 0.0
    %v3082 = vmax.f32 %v3024, 0.0
    %v3083 = vmax.f32 %v3026, 0.0
    %v3084 = vmax.f32 %v3030, 0.0
    %v3085 = vmax.f32 %v3032, 0.0
    %v3086 = vmax.f32 %v3034, 0.0
    %v3087 = vmax.f32 %v3036, 0.0
    %v3088 = vmax.f32 %v3040, 0.0
    %v3089 = vmax.f32 %v3042, 0.0
    %v3090 = vmax.f32 %v3044, 0.0
    %v3091 = vmax.f32 %v3046, 0.0
    %v3092 = vmax.f32 %v3050, 0.0
    %v3093 = vmax.f32 %v3052, 0.0
    %v3094 = vmax.f32 %v3054, 0.0
    %v3095 = vmax.f32 %v3056, 0.0
    %v3096 = vmax.f32 %v3060, 0.0
    %v3097 = vmax.f32 %v3062, 0.0
    %v3098 = vmax.f32 %v3064, 0.0
    %v3099 = vmax.f32 %v3066, 0.0
    %v3100 = vpack.c.bf16 %v3070, %v3068
    %v3101 = vpack.c.bf16 %v3071, %v3069
    %v3102 = vpack.c.bf16 %v3074, %v3072
    %v3103 = vpack.c.bf16 %v3075, %v3073
    %v3104 = vpack.c.bf16 %v3078, %v3076
    %v3105 = vpack.c.bf16 %v3079, %v3077
    %v3106 = vpack.c.bf16 %v3082, %v3080
    %v3107 = vpack.c.bf16 %v3083, %v3081
    %v3108 = vpack.c.bf16 %v3086, %v3084
    %v3109 = vpack.c.bf16 %v3087, %v3085
    %v3110 = vpack.c.bf16 %v3090, %v3088
    %v3111 = vpack.c.bf16 %v3091, %v3089
    %v3112 = vpack.c.bf16 %v3094, %v3092
    %v3113 = vpack.c.bf16 %v3095, %v3093
    %v3114 = vpack.c.bf16 %v3098, %v3096
    %v3115 = vpack.c.bf16 %v3099, %v3097
    %v3116 = vld [vmem:[#allocation4] sm:$0xf]
    %v3117 = vld [vmem:[#allocation4 + $0x4] sm:$0xf]
    %v3118 = vld [vmem:[#allocation4 + $0x8] sm:$0xf]
    %v3119 = vld [vmem:[#allocation4 + $0xc] sm:$0xf]
    %v3120 = vld [vmem:[#allocation4 + $0x10] sm:$0xf]
    %v3121 = vld [vmem:[#allocation4 + $0x14] sm:$0xf]
    %v3122 = vld [vmem:[#allocation4 + $0x18] sm:$0xf]
    %v3123 = vld [vmem:[#allocation4 + $0x1c] sm:$0xf]
    %v3124 = vld [vmem:[#allocation4 + $0x20] sm:$0xf]
    %v3125 = vld [vmem:[#allocation4 + $0x24] sm:$0xf]
    %v3126 = vld [vmem:[#allocation4 + $0x28] sm:$0xf]
    %v3127 = vld [vmem:[#allocation4 + $0x2c] sm:$0xf]
    %v3128 = vld [vmem:[#allocation4 + $0x30] sm:$0xf]
    %v3129 = vld [vmem:[#allocation4 + $0x34] sm:$0xf]
    %v3130 = vld [vmem:[#allocation4 + $0x38] sm:$0xf]
    %v3131 = vld [vmem:[#allocation4 + $0x3c] sm:$0xf]
    %v3132 = vld [vmem:[#allocation4 + $0x40] sm:$0xf]
    %v3133 = vld [vmem:[#allocation4 + $0x44] sm:$0xf]
    %v3134 = vld [vmem:[#allocation4 + $0x48] sm:$0xf]
    %v3135 = vld [vmem:[#allocation4 + $0x4c] sm:$0xf]
    %v3136 = vld [vmem:[#allocation4 + $0x50] sm:$0xf]
    %v3137 = vld [vmem:[#allocation4 + $0x54] sm:$0xf]
    %v3138 = vld [vmem:[#allocation4 + $0x58] sm:$0xf]
    %v3139 = vld [vmem:[#allocation4 + $0x5c] sm:$0xf]
    %v3140 = vld [vmem:[#allocation4 + $0x60] sm:$0xf]
    %v3141 = vld [vmem:[#allocation4 + $0x64] sm:$0xf]
    %v3142 = vld [vmem:[#allocation4 + $0x68] sm:$0xf]
    %v3143 = vld [vmem:[#allocation4 + $0x6c] sm:$0xf]
    %v3144 = vld [vmem:[#allocation4 + $0x70] sm:$0xf]
    %v3145 = vld [vmem:[#allocation4 + $0x74] sm:$0xf]
    %v3146 = vld [vmem:[#allocation4 + $0x78] sm:$0xf]
    %v3147 = vld [vmem:[#allocation4 + $0x7c] sm:$0xf]
    %v3148 = vld [vmem:[%s6] sm:$0x1]
    %v3150 = vlaneseq
    %v3151 = vshrl.u32 %v3150, 7
    %v3152 = vsub.s32 0, %v3151
    %v3153 = vrot.slane %v3148, %v3152
    %v3187 = vunpack.c.l.b16 %v3116
    %v3188 = vunpack.c.l.b16 %v3117
    %v3189 = vunpack.c.l.b16 %v3118
    %v3190 = vunpack.c.l.b16 %v3119
    %v3191 = vunpack.c.l.b16 %v3120
    %v3192 = vunpack.c.l.b16 %v3121
    %v3193 = vunpack.c.l.b16 %v3122
    %v3194 = vunpack.c.l.b16 %v3123
    %v3195 = vunpack.c.l.b16 %v3124
    %v3196 = vunpack.c.l.b16 %v3125
    %v3197 = vunpack.c.l.b16 %v3126
    %v3198 = vunpack.c.l.b16 %v3127
    %v3199 = vunpack.c.l.b16 %v3128
    %v3200 = vunpack.c.l.b16 %v3129
    %v3201 = vunpack.c.l.b16 %v3130
    %v3202 = vunpack.c.l.b16 %v3131
    %v3203 = vunpack.c.l.b16 %v3132
    %v3204 = vunpack.c.l.b16 %v3133
    %v3205 = vunpack.c.l.b16 %v3134
    %v3206 = vunpack.c.l.b16 %v3135
    %v3207 = vunpack.c.l.b16 %v3136
    %v3208 = vunpack.c.l.b16 %v3137
    %v3209 = vunpack.c.l.b16 %v3138
    %v3210 = vunpack.c.l.b16 %v3139
    %v3211 = vunpack.c.l.b16 %v3140
    %v3212 = vunpack.c.l.b16 %v3141
    %v3213 = vunpack.c.l.b16 %v3142
    %v3214 = vunpack.c.l.b16 %v3143
    %v3215 = vunpack.c.l.b16 %v3144
    %v3216 = vunpack.c.l.b16 %v3145
    %v3217 = vunpack.c.l.b16 %v3146
    %v3218 = vunpack.c.l.b16 %v3147
    %v3219 = vpack.c.b16 %v3188, %v3187
    %v3220 = vpack.c.b16 %v3190, %v3189
    %v3221 = vpack.c.b16 %v3192, %v3191
    %v3222 = vpack.c.b16 %v3194, %v3193
    %v3223 = vpack.c.b16 %v3196, %v3195
    %v3224 = vpack.c.b16 %v3198, %v3197
    %v3225 = vpack.c.b16 %v3200, %v3199
    %v3226 = vpack.c.b16 %v3202, %v3201
    %v3227 = vpack.c.b16 %v3204, %v3203
    %v3228 = vpack.c.b16 %v3206, %v3205
    %v3229 = vpack.c.b16 %v3208, %v3207
    %v3230 = vpack.c.b16 %v3210, %v3209
    %v3231 = vpack.c.b16 %v3212, %v3211
    %v3232 = vpack.c.b16 %v3214, %v3213
    %v3233 = vpack.c.b16 %v3216, %v3215
    %v3234 = vpack.c.b16 %v3218, %v3217
    %3251 = vmatprep.subr.bf16.mxu0 0
    %3252 = vmatpush1.bf16.msra.mxu0 %v3226
    %3253 = vmatprep.subr.bf16.mxu0 0
    %3254 = vmatpush1.bf16.msra.mxu0 %v3225
    %3255 = vmatprep.subr.bf16.mxu0 0
    %3256 = vmatpush1.bf16.msra.mxu0 %v3224
    %3257 = vmatprep.subr.bf16.mxu0 0
    %3258 = vmatpush1.bf16.msra.mxu0 %v3223
    %3259 = vmatprep.subr.bf16.mxu0 0
    %3260 = vmatpush1.bf16.msra.mxu0 %v3222
    %3261 = vmatprep.subr.bf16.mxu0 0
    %3262 = vmatpush1.bf16.msra.mxu0 %v3221
    %3263 = vmatprep.subr.bf16.mxu0 0
    %3264 = vmatpush1.bf16.msra.mxu0 %v3220
    %3265 = vmatprep.subr.bf16.mxu0 0
    %3266 = vmatpush1.bf16.msra.mxu0 %v3219
    %3267 = vmatprep.subr.bf16.mxu0 0
    %3268 = vmatpush2.bf16.msra.mxu0 %v3234
    %3269 = vmatprep.subr.bf16.mxu0 0
    %3270 = vmatpush2.bf16.msra.mxu0 %v3233
    %3271 = vmatprep.subr.bf16.mxu0 0
    %3272 = vmatpush2.bf16.msra.mxu0 %v3232
    %3273 = vmatprep.subr.bf16.mxu0 0
    %3274 = vmatpush2.bf16.msra.mxu0 %v3231
    %3275 = vmatprep.subr.bf16.mxu0 0
    %3276 = vmatpush2.bf16.msra.mxu0 %v3230
    %3277 = vmatprep.subr.bf16.mxu0 0
    %3278 = vmatpush2.bf16.msra.mxu0 %v3229
    %3279 = vmatprep.subr.bf16.mxu0 0
    %3280 = vmatpush2.bf16.msra.mxu0 %v3228
    %3281 = vmatprep.subr.bf16.mxu0 0
    %3282 = vmatpush2.bf16.msra.mxu0 %v3227
    %3283 = vmatprep.mubr.bf16.mxu0 %v3101
    %3284 = vmatmul.mubr.bf16.gmra.mxu0 %v3100
    %v3285 = vpop.f32.mrf.mxu0
    %v3286 = vadd.f32 %v3153, %v3285
    %v3287 = vpop.f32.mrf.mxu0
    %v3288 = vpop.f32.mrf.mxu0
    %v3289 = vadd.f32 %v3153, %v3288
    %v3290 = vpop.f32.mrf.mxu0
    %3291 = vmatprep.mubr.bf16.mxu0 %v3103
    %3292 = vmatmul.mubr.bf16.gmra.mxu0 %v3102
    %v3293 = vpop.f32.mrf.mxu0
    %v3294 = vadd.f32 %v3153, %v3293
    %v3295 = vpop.f32.mrf.mxu0
    %v3296 = vpop.f32.mrf.mxu0
    %v3297 = vadd.f32 %v3153, %v3296
    %v3298 = vpop.f32.mrf.mxu0
    %3299 = vmatprep.mubr.bf16.mxu0 %v3105
    %3300 = vmatmul.mubr.bf16.gmra.mxu0 %v3104
    %v3301 = vpop.f32.mrf.mxu0
    %v3302 = vadd.f32 %v3153, %v3301
    %v3303 = vpop.f32.mrf.mxu0
    %v3304 = vpop.f32.mrf.mxu0
    %v3305 = vadd.f32 %v3153, %v3304
    %v3306 = vpop.f32.mrf.mxu0
    %3307 = vmatprep.mubr.bf16.mxu0 %v3107
    %3308 = vmatmul.mubr.bf16.gmra.mxu0 %v3106
    %v3309 = vpop.f32.mrf.mxu0
    %v3310 = vadd.f32 %v3153, %v3309
    %v3311 = vpop.f32.mrf.mxu0
    %v3312 = vpop.f32.mrf.mxu0
    %v3313 = vadd.f32 %v3153, %v3312
    %v3314 = vpop.f32.mrf.mxu0
    %3315 = vmatprep.mubr.bf16.mxu0 %v3109
    %3316 = vmatmul.mubr.bf16.gmra.mxu0 %v3108
    %v3317 = vpop.f32.mrf.mxu0
    %v3318 = vadd.f32 %v3153, %v3317
    %v3319 = vpop.f32.mrf.mxu0
    %v3320 = vpop.f32.mrf.mxu0
    %v3321 = vadd.f32 %v3153, %v3320
    %v3322 = vpop.f32.mrf.mxu0
    %3323 = vmatprep.mubr.bf16.mxu0 %v3111
    %3324 = vmatmul.mubr.bf16.gmra.mxu0 %v3110
    %v3325 = vpop.f32.mrf.mxu0
    %v3326 = vadd.f32 %v3153, %v3325
    %v3327 = vpop.f32.mrf.mxu0
    %v3328 = vpop.f32.mrf.mxu0
    %v3329 = vadd.f32 %v3153, %v3328
    %v3330 = vpop.f32.mrf.mxu0
    %3331 = vmatprep.mubr.bf16.mxu0 %v3113
    %3332 = vmatmul.mubr.bf16.gmra.mxu0 %v3112
    %v3333 = vpop.f32.mrf.mxu0
    %v3334 = vadd.f32 %v3153, %v3333
    %v3335 = vpop.f32.mrf.mxu0
    %v3336 = vpop.f32.mrf.mxu0
    %v3337 = vadd.f32 %v3153, %v3336
    %v3338 = vpop.f32.mrf.mxu0
    %3339 = vmatprep.mubr.bf16.mxu0 %v3115
    %3340 = vmatmul.mubr.bf16.gmra.mxu0 %v3114
    %v3341 = vpop.f32.mrf.mxu0
    %v3342 = vadd.f32 %v3153, %v3341
    %v3343 = vpop.f32.mrf.mxu0
    %v3344 = vpop.f32.mrf.mxu0
    %v3345 = vadd.f32 %v3153, %v3344
    %v3346 = vpop.f32.mrf.mxu0
    %3347 = vdwg.mxu0
    %3348 = vmax.xlane.f32.xlu0 %v3286
    %v3349 = vpop.xlane.xlu0 %3348
    %3350 = vmax.xlane.f32.xlu0 %v3289
    %v3351 = vpop.xlane.xlu0 %3350
    %3352 = vmax.xlane.f32.xlu0 %v3294
    %v3353 = vpop.xlane.xlu0 %3352
    %3354 = vmax.xlane.f32.xlu0 %v3297
    %v3355 = vpop.xlane.xlu0 %3354
    %3356 = vmax.xlane.f32.xlu0 %v3302
    %v3357 = vpop.xlane.xlu0 %3356
    %3358 = vmax.xlane.f32.xlu0 %v3305
    %v3359 = vpop.xlane.xlu0 %3358
    %3360 = vmax.xlane.f32.xlu0 %v3310
    %v3361 = vpop.xlane.xlu0 %3360
    %3362 = vmax.xlane.f32.xlu0 %v3313
    %v3363 = vpop.xlane.xlu0 %3362
    %3364 = vmax.xlane.f32.xlu0 %v3318
    %v3365 = vpop.xlane.xlu0 %3364
    %3366 = vmax.xlane.f32.xlu0 %v3321
    %v3367 = vpop.xlane.xlu0 %3366
    %3368 = vmax.xlane.f32.xlu0 %v3326
    %v3369 = vpop.xlane.xlu0 %3368
    %3370 = vmax.xlane.f32.xlu0 %v3329
    %v3371 = vpop.xlane.xlu0 %3370
    %3372 = vmax.xlane.f32.xlu0 %v3334
    %v3373 = vpop.xlane.xlu0 %3372
    %3374 = vmax.xlane.f32.xlu0 %v3337
    %v3375 = vpop.xlane.xlu0 %3374
    %3376 = vmax.xlane.f32.xlu0 %v3342
    %v3377 = vpop.xlane.xlu0 %3376
    %3378 = vmax.xlane.f32.xlu0 %v3345
    %v3379 = vpop.xlane.xlu0 %3378
    %v3380 = vsub.f32 %v3286, %v3349
    %v3381 = vsub.f32 %v3289, %v3351
    %v3382 = vsub.f32 %v3294, %v3353
    %v3383 = vsub.f32 %v3297, %v3355
    %v3384 = vsub.f32 %v3302, %v3357
    %v3385 = vsub.f32 %v3305, %v3359
    %v3386 = vsub.f32 %v3310, %v3361
    %v3387 = vsub.f32 %v3313, %v3363
    %v3388 = vsub.f32 %v3318, %v3365
    %v3389 = vsub.f32 %v3321, %v3367
    %v3390 = vsub.f32 %v3326, %v3369
    %v3391 = vsub.f32 %v3329, %v3371
    %v3392 = vsub.f32 %v3334, %v3373
    %v3393 = vsub.f32 %v3337, %v3375
    %v3394 = vsub.f32 %v3342, %v3377
    %v3395 = vsub.f32 %v3345, %v3379
    %v3396 = vmul.f32 %v3380, 1.442695
    %v3397 = vpow.pop %v3396
    %v3398 = vmul.f32 %v3381, 1.442695
    %v3399 = vpow.pop %v3398
    %v3400 = vmul.f32 %v3382, 1.442695
    %v3401 = vpow.pop %v3400
    %v3402 = vmul.f32 %v3383, 1.442695
    %v3403 = vpow.pop %v3402
    %v3404 = vmul.f32 %v3384, 1.442695
    %v3405 = vpow.pop %v3404
    %v3406 = vmul.f32 %v3385, 1.442695
    %v3407 = vpow.pop %v3406
    %v3408 = vmul.f32 %v3386, 1.442695
    %v3409 = vpow.pop %v3408
    %v3410 = vmul.f32 %v3387, 1.442695
    %v3411 = vpow.pop %v3410
    %v3412 = vmul.f32 %v3388, 1.442695
    %v3413 = vpow.pop %v3412
    %v3414 = vmul.f32 %v3389, 1.442695
    %v3415 = vpow.pop %v3414
    %v3416 = vmul.f32 %v3390, 1.442695
    %v3417 = vpow.pop %v3416
    %v3418 = vmul.f32 %v3391, 1.442695
    %v3419 = vpow.pop %v3418
    %v3420 = vmul.f32 %v3392, 1.442695
    %v3421 = vpow.pop %v3420
    %v3422 = vmul.f32 %v3393, 1.442695
    %v3423 = vpow.pop %v3422
    %v3424 = vmul.f32 %v3394, 1.442695
    %v3425 = vpow.pop %v3424
    %v3426 = vmul.f32 %v3395, 1.442695
    %v3427 = vpow.pop %v3426
    %3428 = vadd.xlane.f32.xlu0 %v3397
    %v3429 = vpop.xlane.xlu0 %3428
    %3430 = vadd.xlane.f32.xlu0 %v3399
    %v3431 = vpop.xlane.xlu0 %3430
    %3432 = vadd.xlane.f32.xlu0 %v3401
    %v3433 = vpop.xlane.xlu0 %3432
    %3434 = vadd.xlane.f32.xlu0 %v3403
    %v3435 = vpop.xlane.xlu0 %3434
    %3436 = vadd.xlane.f32.xlu0 %v3405
    %v3437 = vpop.xlane.xlu0 %3436
    %3438 = vadd.xlane.f32.xlu0 %v3407
    %v3439 = vpop.xlane.xlu0 %3438
    %3440 = vadd.xlane.f32.xlu0 %v3409
    %v3441 = vpop.xlane.xlu0 %3440
    %3442 = vadd.xlane.f32.xlu0 %v3411
    %v3443 = vpop.xlane.xlu0 %3442
    %3444 = vadd.xlane.f32.xlu0 %v3413
    %v3445 = vpop.xlane.xlu0 %3444
    %3446 = vadd.xlane.f32.xlu0 %v3415
    %v3447 = vpop.xlane.xlu0 %3446
    %3448 = vadd.xlane.f32.xlu0 %v3417
    %v3449 = vpop.xlane.xlu0 %3448
    %3450 = vadd.xlane.f32.xlu0 %v3419
    %v3451 = vpop.xlane.xlu0 %3450
    %3452 = vadd.xlane.f32.xlu0 %v3421
    %v3453 = vpop.xlane.xlu0 %3452
    %3454 = vadd.xlane.f32.xlu0 %v3423
    %v3455 = vpop.xlane.xlu0 %3454
    %3456 = vadd.xlane.f32.xlu0 %v3425
    %v3457 = vpop.xlane.xlu0 %3456
    %3458 = vadd.xlane.f32.xlu0 %v3427
    %v3459 = vpop.xlane.xlu0 %3458
    %v3460 = vlog2.pop %v3429
    %v3461 = vmul.f32 %v3460, 0.6931472
    %v3462 = vlog2.pop %v3431
    %v3463 = vmul.f32 %v3462, 0.6931472
    %v3464 = vlog2.pop %v3433
    %v3465 = vmul.f32 %v3464, 0.6931472
    %v3466 = vlog2.pop %v3435
    %v3467 = vmul.f32 %v3466, 0.6931472
    %v3468 = vlog2.pop %v3437
    %v3469 = vmul.f32 %v3468, 0.6931472
    %v3470 = vlog2.pop %v3439
    %v3471 = vmul.f32 %v3470, 0.6931472
    %v3472 = vlog2.pop %v3441
    %v3473 = vmul.f32 %v3472, 0.6931472
    %v3474 = vlog2.pop %v3443
    %v3475 = vmul.f32 %v3474, 0.6931472
    %v3476 = vlog2.pop %v3445
    %v3477 = vmul.f32 %v3476, 0.6931472
    %v3478 = vlog2.pop %v3447
    %v3479 = vmul.f32 %v3478, 0.6931472
    %v3480 = vlog2.pop %v3449
    %v3481 = vmul.f32 %v3480, 0.6931472
    %v3482 = vlog2.pop %v3451
    %v3483 = vmul.f32 %v3482, 0.6931472
    %v3484 = vlog2.pop %v3453
    %v3485 = vmul.f32 %v3484, 0.6931472
    %v3486 = vlog2.pop %v3455
    %v3487 = vmul.f32 %v3486, 0.6931472
    %v3488 = vlog2.pop %v3457
    %v3489 = vmul.f32 %v3488, 0.6931472
    %v3490 = vlog2.pop %v3459
    %v3491 = vmul.f32 %v3490, 0.6931472
    %v3492 = vsub.f32 %v3380, %v3461
    %v3493 = vsub.f32 %v3381, %v3463
    %v3494 = vsub.f32 %v3382, %v3465
    %v3495 = vsub.f32 %v3383, %v3467
    %v3496 = vsub.f32 %v3384, %v3469
    %v3497 = vsub.f32 %v3385, %v3471
    %v3498 = vsub.f32 %v3386, %v3473
    %v3499 = vsub.f32 %v3387, %v3475
    %v3500 = vsub.f32 %v3388, %v3477
    %v3501 = vsub.f32 %v3389, %v3479
    %v3502 = vsub.f32 %v3390, %v3481
    %v3503 = vsub.f32 %v3391, %v3483
    %v3504 = vsub.f32 %v3392, %v3485
    %v3505 = vsub.f32 %v3393, %v3487
    %v3506 = vsub.f32 %v3394, %v3489
    %v3507 = vsub.f32 %v3395, %v3491
    %vm3508 = vcmask 80896
    %3509 = vst.msk [vmem:[%s7] sm:$0xff] %vm3508, %v3492
    %3510 = vst.msk [vmem:[%s7 + $0x8] sm:$0xff] %vm3508, %v3493
    %3511 = vst.msk [vmem:[%s7 + $0x10] sm:$0xff] %vm3508, %v3494
    %3512 = vst.msk [vmem:[%s7 + $0x18] sm:$0xff] %vm3508, %v3495
    %3513 = vst.msk [vmem:[%s7 + $0x20] sm:$0xff] %vm3508, %v3496
    %3514 = vst.msk [vmem:[%s7 + $0x28] sm:$0xff] %vm3508, %v3497
    %3515 = vst.msk [vmem:[%s7 + $0x30] sm:$0xff] %vm3508, %v3498
    %3516 = vst.msk [vmem:[%s7 + $0x38] sm:$0xff] %vm3508, %v3499
    %3517 = vst.msk [vmem:[%s7 + $0x40] sm:$0xff] %vm3508, %v3500
    %3518 = vst.msk [vmem:[%s7 + $0x48] sm:$0xff] %vm3508, %v3501
    %3519 = vst.msk [vmem:[%s7 + $0x50] sm:$0xff] %vm3508, %v3502
    %3520 = vst.msk [vmem:[%s7 + $0x58] sm:$0xff] %vm3508, %v3503
    %3521 = vst.msk [vmem:[%s7 + $0x60] sm:$0xff] %vm3508, %v3504
    %3522 = vst.msk [vmem:[%s7 + $0x68] sm:$0xff] %vm3508, %v3505
    %3523 = vst.msk [vmem:[%s7 + $0x70] sm:$0xff] %vm3508, %v3506
    %3524 = vst.msk [vmem:[%s7 + $0x78] sm:$0xff] %vm3508, %v3507
    // Predicated region
    $region38: #{tpu_custom_call.1} parent=1 // pred_check
      _
    $region39: #{tpu_custom_call.1} parent=1 // pred_check_branch
      %3526 = sbr.rel (0) target = $region41
    $region40: #{tpu_custom_call.1} parent=1 // pred_region
      _
    $region41: #{tpu_custom_call.1} parent=1 // pred_fallthru
      _
    // Predicated region
    $region42: #{tpu_custom_call.1} parent=1 // pred_check
      _
    $region43: #{tpu_custom_call.1} parent=1 // pred_check_branch
      %3528 = sbr.rel (0) target = $region45
    $region44: #{tpu_custom_call.1} parent=1 // pred_region
      _
    $region45: #{tpu_custom_call.1} parent=1 // pred_fallthru
      _
    %3529 = vsyncpa [#allocation3], 1
    %3530 = vsyncpa [#allocation5], 1

</llo_original>
